<compile_context>
chip_gen: v5e
topology: v5e:2x2
jax: 0.10.0
libtpu: 0.0.40
codegen_flags: <defaults>
</compile_context>

<pallas_src>
import jax
import jax.numpy as jnp
from jax.experimental import pallas as pl
from jax.experimental.pallas import tpu as pltpu


def _conv1x1_kernel(w_ref, x_ref, o_ref):
    # w_ref: (co_blk, Cin)      bf16  -- one Cout-slice of the weight matrix
    # x_ref: (1, Cin, Npix)     bf16  -- all output pixels of one batch element
    # o_ref: (1, co_blk, Npix)  f32
    o_ref[0] = jnp.dot(
        w_ref[...], x_ref[0], preferred_element_type=jnp.float32
    ).astype(o_ref.dtype)


def _pallas_conv1x1(w2d, x3d, *, co_blk):
    # w2d: (Cout, Cin) bf16, x3d: (N, Cin, Npix) bf16 -> (N, Cout, Npix) f32
    cout, cin = w2d.shape
    n, cin2, npix = x3d.shape
    assert cin == cin2 and cout % co_blk == 0
    return pl.pallas_call(
        _conv1x1_kernel,
        out_shape=jax.ShapeDtypeStruct((n, cout, npix), jnp.float32),
        grid_spec=pltpu.PrefetchScalarGridSpec(
            num_scalar_prefetch=0,
            grid=(n, cout // co_blk),
            in_specs=[
                # weight: tiled along Cout only
                pl.BlockSpec((co_blk, cin), lambda b, j: (j, 0)),
                # activations: resident per batch element (constant over j,
                # so Pallas fetches it once per batch step)
                pl.BlockSpec((1, cin, npix), lambda b, j: (b, 0, 0)),
            ],
            out_specs=pl.BlockSpec((1, co_blk, npix), lambda b, j: (b, j, 0)),
        ),
        compiler_params=pltpu.CompilerParams(
            dimension_semantics=("parallel", "parallel"),
        ),
    )(w2d, x3d)


def conv2d_1x1_stride2(x_nchw, weight_oihw):
    """1x1 conv, stride (2,2), no bias. x: [N, Cin, H, W], weight: [Cout, Cin, 1, 1]."""
    n, cin, h, w = x_nchw.shape
    cout = weight_oihw.shape[0]

    # stride-2 subsample (kernel is 1x1, so this is exact) + bf16 cast; XLA
    # fuses slice+convert into a single pass over x.
    # TODO(synk): the subsample could be fused into the kernel via a strided
    # pl.ds lane slice to save one small HBM round-trip; kept outside for
    # simplicity since it is secondary after removing the transposes.
    x_sub = x_nchw[:, :, ::2, ::2].astype(jnp.bfloat16)        # [N, Cin, Ho, Wo]
    ho, wo = x_sub.shape[2], x_sub.shape[3]
    x3d = x_sub.reshape(n, cin, ho * wo)                       # free reshape (NCHW)

    # [Cout, Cin, 1, 1] -> [Cout, Cin]; already the right orientation for W @ X.
    w2d = weight_oihw[:, :, 0, 0].astype(jnp.bfloat16)

    # Two Cout blocks -> two grid steps (megacore-friendly); else one big block.
    co_blk = cout // 2 if (cout % 2 == 0 and (cout // 2) % 8 == 0) else cout

    out = _pallas_conv1x1(w2d, x3d, co_blk=co_blk)             # [N, Cout, Ho*Wo] f32
    return out.reshape(n, cout, ho, wo)                        # free reshape (NCHW)


if __name__ == "__main__":
    key = jax.random.PRNGKey(0)
    kx, kw = jax.random.split(key)

    # shapes from the module: x25 = [1, 336, 56, 56], Conv2d(336, 672, 1x1, stride 2)
    x = jax.random.normal(kx, (1, 336, 56, 56), dtype=jnp.float32)
    weight = jax.random.normal(kw, (672, 336, 1, 1), dtype=jnp.float32) * 0.05

    y = conv2d_1x1_stride2(x, weight)
    y = jax.block_until_ready(y)
    assert y.shape == (1, 672, 28, 28), y.shape
    assert y.dtype == jnp.float32, y.dtype

    # reference with the same bf16-cast inputs and f32 accumulation (matches kernel math)
    y_ref = jax.lax.conv_general_dilated(
        x.astype(jnp.bfloat16), weight.astype(jnp.bfloat16),
        window_strides=(2, 2), padding="VALID",
        dimension_numbers=("NCHW", "OIHW", "NCHW"),
        preferred_element_type=jnp.float32,
    )
    y_ref = jax.block_until_ready(y_ref)
    assert jnp.allclose(y, y_ref, atol=1e-2, rtol=1e-2), \
        float(jnp.max(jnp.abs(y - y_ref)))

    # sanity vs the full-f32 conv (original module semantics); loose tol for bf16 inputs
    y_f32 = jax.lax.conv_general_dilated(
        x, weight, window_strides=(2, 2), padding="VALID",
        dimension_numbers=("NCHW", "OIHW", "NCHW"),
    )
    assert jnp.allclose(y, y_f32, atol=5e-2, rtol=5e-2), \
        float(jnp.max(jnp.abs(y - y_f32)))

    print("KERNEL_OK")
</pallas_src>

<mosaic_0001>
module attributes {stable_mosaic.version = 11 : i64} {
  func.func @_conv1x1_kernel(%arg0: i32, %arg1: i32, %arg2: memref<336x336xbf16, #tpu.memory_space<vmem>>, %arg3: memref<1x336x784xbf16, #tpu.memory_space<vmem>>, %arg4: memref<1x336x784xf32, #tpu.memory_space<vmem>>) attributes {dimension_semantics = [#tpu.dimension_semantics<parallel>, #tpu.dimension_semantics<parallel>], iteration_bounds = array<i64: 1, 2>, scalar_prefetch = 0 : i64, scratch_operands = 0 : i64, tpu.core_type = #tpu.core_type<tc>, window_params = [{transform_indices = @transform_0, window_bounds = array<i64: 336, 336>}, {transform_indices = @transform_1, window_bounds = array<i64: 1, 336, 784>}, {transform_indices = @transform_2, window_bounds = array<i64: 1, 336, 784>}]} {
    %c0 = arith.constant 0 : index
    %c0_0 = arith.constant 0 : index
    %0 = vector.load %arg2[%c0, %c0_0] : memref<336x336xbf16, #tpu.memory_space<vmem>>, vector<336x336xbf16>
    %c0_1 = arith.constant 0 : index
    %c0_2 = arith.constant 0 : index
    %c0_3 = arith.constant 0 : index
    %1 = vector.load %arg3[%c0_1, %c0_2, %c0_3] : memref<1x336x784xbf16, #tpu.memory_space<vmem>>, vector<1x336x784xbf16>
    %2 = vector.shape_cast %1 : vector<1x336x784xbf16> to vector<336x784xbf16>
    %cst = arith.constant dense<0.000000e+00> : vector<336x784xf32>
    %3 = tpu.matmul %0, %2, %cst {dimension_numbers = #tpu.dot_dimension_numbers<[1], [0], [0], [1], [0, 0, 1, 1], [], []>} : vector<336x336xbf16>, vector<336x784xbf16>, vector<336x784xf32> -> vector<336x784xf32>
    %c0_4 = arith.constant 0 : index
    %c0_5 = arith.constant 0 : index
    %c0_6 = arith.constant 0 : index
    %4 = vector.load %arg4[%c0_4, %c0_5, %c0_6] : memref<1x336x784xf32, #tpu.memory_space<vmem>>, vector<1x336x784xf32>
    %5 = vector.shape_cast %4 : vector<1x336x784xf32> to vector<336x784xf32>
    %6 = vector.shape_cast %3 : vector<336x784xf32> to vector<1x336x784xf32>
    tpu.vector_store %arg4[%c0_4, %c0_5, %c0_6], %6 {strides = array<i32>} : memref<1x336x784xf32, #tpu.memory_space<vmem>>, vector<1x336x784xf32>,
    return
  }
  func.func @transform_0(%arg0: i32, %arg1: i32) -> (i32, i32) {
    %c0_i32 = arith.constant 0 : i32
    %c0_i32_0 = arith.constant 0 : i32
    return %arg1, %c0_i32 : i32, i32
  }
  func.func @transform_1(%arg0: i32, %arg1: i32) -> (i32, i32, i32) {
    %c0_i32 = arith.constant 0 : i32
    %c0_i32_0 = arith.constant 0 : i32
    %c0_i32_1 = arith.constant 0 : i32
    return %arg0, %c0_i32, %c0_i32_0 : i32, i32, i32
  }
  func.func @transform_2(%arg0: i32, %arg1: i32) -> (i32, i32, i32) {
    %c0_i32 = arith.constant 0 : i32
    %c0_i32_0 = arith.constant 0 : i32
    return %arg0, %arg1, %c0_i32 : i32, i32, i32
  }
}

</mosaic_0001>

<llo_original>
// kernel: tpu_custom_call.1
$region0: #{tpu_custom_call.1}
  #allocation0 [shape = 'u32[]', space=smem, size = 0x4, offset = 0x4, fixed_abs, tag = 'smem constant byte address 0x4 - core index']
  #allocation1 [shape = 'u32[72,128]{1,0:T(1,128)}', space=vmem, size = 0x9000, scoped, tag = 'internal scratch']
  %s0 = inlined_call_operand.hbm [shape: bf16[672,336], index: 0, kind: input, shape index: {}]
  %s1 = inlined_call_operand.hbm [shape: bf16[1,336,784], index: 1, kind: input, shape index: {}]
  %s2 = inlined_call_operand.hbm [shape: f32[1,672,784], index: 2, kind: output, shape index: {}]
  %s3 = sld [smem:[#allocation0]]
  $region49: #{tpu_custom_call.1} parent=0
    _
  %s5 = ssub.s32 1, %s3
  %s6 = scalar_select 0, %s5, %s3
  $region1: #{tpu_custom_call.1} parent=0
    #allocation2 [shape = 'u8[516096]{0}', space=vmem, size = 0x7e000, scoped, tag = 'input window, operand 0']
    #allocation3 [shape = 's32[2]{0}', space=sflag, size = 0x8, scoped, tag = 'scoped memory for tpu_custom_call.1']
    #allocation4 [shape = 's32[2]{0}', space=sflag, size = 0x8, scoped, tag = 'scoped memory for tpu_custom_call.1']
    #allocation5 [shape = 'u8[602112]{0}', space=vmem, size = 0x93000, scoped, tag = 'input window, operand 1, single buffered']
    #allocation6 [shape = 's32[1]{0}', space=sflag, size = 0x4, scoped, tag = 'scoped memory for tpu_custom_call.1']
    #allocation7 [shape = 'u8[2408448]{0}', space=vmem, size = 0x24c000, scoped, tag = 'output window, operand 0']
    %7 = vsyncpa [#allocation3], 0
    %s8 = scalar_lea.sflag [#allocation3], 1
    %9 = vsyncpa %s8, 0
    %10 = vsyncpa [#allocation6], 0
    %11 = vsyncpa [#allocation4], 0
    %s12 = scalar_lea.sflag [#allocation4], 1
    %13 = vsyncpa %s12, 0
    loop: start=0, step=1, limit=4
    $region2: #{tpu_custom_call.1} parent=1 // loop_pre_header
      _
    $region3: #{tpu_custom_call.1} parent=1 // loop_header
      %s15 = sphi 0, %s19
      %p16 = scmp.ge.s32.totalorder %s15, 4
      %s22 = sphi 0, %s34
      %s23 = sphi 0, %s30
      %s24 = sphi 0, %s22
      %s25 = sphi 0, %s23
      %s26 = sphi 0, %s24
      %s27 = sphi 0, %s25
      %s37 = sphi 0, %s39
      %s40 = sphi 0, %s37
      %s41 = sphi 0, %s40
      %s57 = sphi 0, %s41
      %s63 = sphi 0, %s65
      %s66 = sphi 0, %s63
      %s67 = sphi 0, %s66
      %s83 = sphi 0, %s67
      %s91 = sphi 0, %s93
      %s94 = sphi 0, %s91
      %s95 = sphi 0, %s94
      %s111 = sphi 0, %s95
    $region4: #{tpu_custom_call.1} parent=1 // loop_header_branch
      %18 = sbr.rel (%p16) target = $region8
    $region5: #{tpu_custom_call.1} parent=1 // loop_body
      %s20 = ssub.s32 %s15, 1
      %s21 = ssub.s32 %s15, 2
      %s28 = sadd.s32 1, %s23
      %p29 = scmp.ge.s32.totalorder %s28, 2
      %s30 = scalar_select %p29, 0, %s28
      %s31 = sadd.s32 1, %s22
      %s32 = scalar_select %p29, %s31, %s22
      %p33 = scmp.ge.s32.totalorder %s32, 1
      %s34 = scalar_select %p33, 0, %s32
      %s35 = ssub.s32 %s23, %s30
      %p36 = scmp.eq.s32.totalorder %s35, 0
      %s38 = sadd.s32 %s37, 1
      %s39 = scalar_select %p36, %s37, %s38
      %p42 = pneg %p36
      %p43 = scmp.eq.s32.totalorder %s15, 1
      %p44 = por %p42, %p43
      %p45 = scmp.ne.s32.totalorder %s37, %s40
      %p46 = scmp.eq.s32.totalorder %s15, 0
      %p47 = por %p45, %p46
      %p48 = scmp.ne.s32.totalorder %s37, %s40
      %p49 = scmp.eq.s32.totalorder %s20, 1
      %p50 = por %p48, %p49
      %p51 = scmp.ne.s32.totalorder %s40, %s41
      %p52 = scmp.eq.s32.totalorder %s20, 0
      %p53 = por %p51, %p52
      %p54 = scmp.ne.s32.totalorder %s40, %s41
      %p55 = scmp.eq.s32.totalorder %s21, 1
      %p56 = por %p54, %p55
      %p58 = scmp.ne.s32.totalorder %s41, %s57
      %p59 = scmp.eq.s32.totalorder %s21, 0
      %p60 = por %p58, %p59
      %s61 = ssub.s32 %s22, %s34
      %p62 = scmp.eq.s32.totalorder %s61, 0
      %s64 = sadd.s32 %s63, 1
      %s65 = scalar_select %p62, %s63, %s64
      %p68 = pneg %p62
      %p69 = scmp.eq.s32.totalorder %s15, 1
      %p70 = por %p68, %p69
      %p71 = scmp.ne.s32.totalorder %s63, %s66
      %p72 = scmp.eq.s32.totalorder %s15, 0
      %p73 = por %p71, %p72
      %p74 = scmp.ne.s32.totalorder %s63, %s66
      %p75 = scmp.eq.s32.totalorder %s20, 1
      %p76 = por %p74, %p75
      %p77 = scmp.ne.s32.totalorder %s66, %s67
      %p78 = scmp.eq.s32.totalorder %s20, 0
      %p79 = por %p77, %p78
      %p80 = scmp.ne.s32.totalorder %s66, %s67
      %p81 = scmp.eq.s32.totalorder %s21, 1
      %p82 = por %p80, %p81
      %p84 = scmp.ne.s32.totalorder %s67, %s83
      %p85 = scmp.eq.s32.totalorder %s21, 0
      %p86 = por %p84, %p85
      %s87 = ssub.s32 %s22, %s34
      %s88 = ssub.s32 %s23, %s30
      %s89 = sor.u32 %s87, %s88
      %p90 = scmp.eq.s32.totalorder %s89, 0
      %s92 = sadd.s32 %s91, 1
      %s93 = scalar_select %p90, %s91, %s92
      %p96 = pneg %p90
      %p97 = scmp.eq.s32.totalorder %s15, 1
      %p98 = por %p96, %p97
      %p99 = scmp.ne.s32.totalorder %s91, %s94
      %p100 = scmp.eq.s32.totalorder %s15, 0
      %p101 = por %p99, %p100
      %p102 = scmp.ne.s32.totalorder %s91, %s94
      %p103 = scmp.eq.s32.totalorder %s20, 1
      %p104 = por %p102, %p103
      %p105 = scmp.ne.s32.totalorder %s94, %s95
      %p106 = scmp.eq.s32.totalorder %s20, 0
      %p107 = por %p105, %p106
      %p108 = scmp.ne.s32.totalorder %s94, %s95
      %p109 = scmp.eq.s32.totalorder %s21, 1
      %p110 = por %p108, %p109
      %p112 = scmp.ne.s32.totalorder %s95, %s111
      %p113 = scmp.eq.s32.totalorder %s21, 0
      %p114 = por %p112, %p113
      %p115 = scmp.le.s32.totalorder 1, %s15
      %p116 = scmp.lt.s32.totalorder %s15, 3
      %p117 = pnand %p115, %p116
      %p118 = pneg %p117
      // Predicated region
      $region9: #{tpu_custom_call.1} parent=5 // pred_check
        _
      $region10: #{tpu_custom_call.1} parent=5 // pred_check_branch
        %120 = sbr.rel (%p117) target = $region12
      $region11: #{tpu_custom_call.1} parent=5 // pred_region
        %s121 = ssub.s32 %s15, 1
        // Predicated region
        $region13: #{tpu_custom_call.1} parent=11 // pred_check
          %p122 = pneg %p79
        $region14: #{tpu_custom_call.1} parent=11 // pred_check_branch
          %124 = sbr.rel (%p122) target = $region16
        $region15: #{tpu_custom_call.1} parent=11 // pred_region
          %126 = vsyncadd [#allocation6], 0
          %s127 = smul.addr %s24, 294
          %s128 = smul.addr %s127, 4
          %s129 = scalar_lea.hbm %s1, %s128
          %s130 = sshll.u32 %s129, 4
          %s131 = int_to_ptr.hbm [resolvable:$true] %s130
          %s132 = sshll.u32 [#allocation5], 4
          %s133 = int_to_ptr.vmem [resolvable:$true] %s132
          %138 = dma.hbm_to_vmem [thread:$0]  %s131, 18816, %s133, [#allocation6], 448, 448, 28
        $region16: #{tpu_custom_call.1} parent=11 // pred_fallthru
          _
      $region12: #{tpu_custom_call.1} parent=5 // pred_fallthru
        _
      %p139 = scmp.lt.s32.totalorder %s15, 2
      // Predicated region
      $region17: #{tpu_custom_call.1} parent=5 // pred_check
        %p140 = pneg %p139
      $region18: #{tpu_custom_call.1} parent=5 // pred_check_branch
        %142 = sbr.rel (%p140) target = $region20
      $region19: #{tpu_custom_call.1} parent=5 // pred_region
        // Predicated region
        $region21: #{tpu_custom_call.1} parent=19 // pred_check
          %p143 = pneg %p47
        $region22: #{tpu_custom_call.1} parent=19 // pred_check_branch
          %145 = sbr.rel (%p143) target = $region24
        $region23: #{tpu_custom_call.1} parent=19 // pred_region
          %s146 = sand.u32 %s37, 1
          %s147 = scalar_lea.sflag [#allocation3], %s146
          %s148 = sand.u32 %s37, 1
          %s149 = smul.addr %s148, 504
          %s150 = scalar_lea.vmem [#allocation2], %s149
          %s151 = smul.u32 42, %s23
          %153 = vsyncadd %s147, 0
          %s154 = smul.addr %s151, 3
          %s155 = smul.addr %s154, 4
          %s156 = scalar_lea.hbm %s0, %s155
          %s157 = sshll.u32 %s156, 4
          %s158 = int_to_ptr.hbm [resolvable:$true] %s157
          %s159 = sshll.u32 %s150, 4
          %s160 = int_to_ptr.vmem [resolvable:$true] %s159
          %165 = dma.hbm_to_vmem [thread:$0]  %s158, 8064, %s160, %s147, 192, 192, 12
        $region24: #{tpu_custom_call.1} parent=19 // pred_fallthru
          _
      $region20: #{tpu_custom_call.1} parent=5 // pred_fallthru
        _
      %p166 = scmp.le.s32.totalorder 1, %s15
      %p167 = scmp.lt.s32.totalorder %s15, 3
      %p168 = pnand %p166, %p167
      %p169 = pneg %p168
      // Predicated region
      $region25: #{tpu_custom_call.1} parent=5 // pred_check
        _
      $region26: #{tpu_custom_call.1} parent=5 // pred_check_branch
        %171 = sbr.rel (%p168) target = $region28
      $region27: #{tpu_custom_call.1} parent=5 // pred_region
        %s172 = ssub.s32 %s15, 1
        %s173 = sand.u32 %s40, 1
        %s174 = scalar_lea.sflag [#allocation3], %s173
        %s175 = sand.u32 %s40, 1
        %s176 = smul.addr %s175, 504
        %s177 = scalar_lea.vmem [#allocation2], %s176
        // Predicated region
        $region29: #{tpu_custom_call.1} parent=27 // pred_check
          %p178 = pneg %p53
        $region30: #{tpu_custom_call.1} parent=27 // pred_check_branch
          %180 = sbr.rel (%p178) target = $region32
        $region31: #{tpu_custom_call.1} parent=27 // pred_region
          %182 = dma.done %s174, 8064
        $region32: #{tpu_custom_call.1} parent=27 // pred_fallthru
          _
        // Predicated region
        $region33: #{tpu_custom_call.1} parent=27 // pred_check
          %p183 = pneg %p79
        $region34: #{tpu_custom_call.1} parent=27 // pred_check_branch
          %185 = sbr.rel (%p183) target = $region36
        $region35: #{tpu_custom_call.1} parent=27 // pred_region
          %187 = dma.done [#allocation6], 18816
        $region36: #{tpu_custom_call.1} parent=27 // pred_fallthru
          _
        %s188 = sand.u32 %s40, 1
        %s189 = scalar_lea.sflag [#allocation3], %s188
        %s190 = sand.u32 %s40, 1
        %s191 = smul.addr %s190, 504
        %s192 = scalar_lea.vmem [#allocation2], %s191
        %p193 = pneg %p53
        %p194 = pneg %p50
        %p195 = pneg %p79
        %p196 = pneg %p76
        %p197 = pneg %p107
        %p198 = pneg %p104
        %s199 = sand.u32 %s94, 1
        %s200 = scalar_lea.sflag [#allocation4], %s199
        %s201 = sand.u32 %s94, 1
        %s202 = smul.addr %s201, 2352
        %s203 = scalar_lea.vmem [#allocation7], %s202
        %s204 = smul.u32 42, %s25
        %s205 = smul.u32 42, %s25
        %v207 = vld [vmem:[%s177] sm:$0xff]
        %v208 = vld [vmem:[%s177 + $0x8] sm:$0xf]
        %v209 = vld [vmem:[%s177 + $0xc] sm:$0xff]
        %v210 = vld [vmem:[%s177 + $0x14] sm:$0xf]
        %v211 = vld [vmem:[%s177 + $0x18] sm:$0xff]
        %v212 = vld [vmem:[%s177 + $0x20] sm:$0xf]
        %v213 = vld [vmem:[%s177 + $0x24] sm:$0xff]
        %v214 = vld [vmem:[%s177 + $0x2c] sm:$0xf]
        %v215 = vld [vmem:[%s177 + $0x30] sm:$0xff]
        %v216 = vld [vmem:[%s177 + $0x38] sm:$0xf]
        %v217 = vld [vmem:[%s177 + $0x3c] sm:$0xff]
        %v218 = vld [vmem:[%s177 + $0x44] sm:$0xf]
        %v219 = vld [vmem:[%s177 + $0x48] sm:$0xff]
        %v220 = vld [vmem:[%s177 + $0x50] sm:$0xf]
        %v221 = vld [vmem:[%s177 + $0x54] sm:$0xff]
        %v222 = vld [vmem:[%s177 + $0x5c] sm:$0xf]
        %v223 = vld [vmem:[%s177 + $0x60] sm:$0xff]
        %v224 = vld [vmem:[%s177 + $0x68] sm:$0xf]
        %v225 = vld [vmem:[%s177 + $0x6c] sm:$0xff]
        %v226 = vld [vmem:[%s177 + $0x74] sm:$0xf]
        %v227 = vld [vmem:[%s177 + $0x78] sm:$0xff]
        %v228 = vld [vmem:[%s177 + $0x80] sm:$0xf]
        %v229 = vld [vmem:[%s177 + $0x84] sm:$0xff]
        %v230 = vld [vmem:[%s177 + $0x8c] sm:$0xf]
        %v231 = vld [vmem:[%s177 + $0x90] sm:$0xff]
        %v232 = vld [vmem:[%s177 + $0x98] sm:$0xf]
        %v233 = vld [vmem:[%s177 + $0x9c] sm:$0xff]
        %v234 = vld [vmem:[%s177 + $0xa4] sm:$0xf]
        %v235 = vld [vmem:[%s177 + $0xa8] sm:$0xff]
        %v236 = vld [vmem:[%s177 + $0xb0] sm:$0xf]
        %v237 = vld [vmem:[%s177 + $0xb4] sm:$0xff]
        %v238 = vld [vmem:[%s177 + $0xbc] sm:$0xf]
        %v239 = vld [vmem:[%s177 + $0xc0] sm:$0xff]
        %v240 = vld [vmem:[%s177 + $0xc8] sm:$0xf]
        %v241 = vld [vmem:[%s177 + $0xcc] sm:$0xff]
        %v242 = vld [vmem:[%s177 + $0xd4] sm:$0xf]
        %v243 = vld [vmem:[%s177 + $0xd8] sm:$0xff]
        %v244 = vld [vmem:[%s177 + $0xe0] sm:$0xf]
        %v245 = vld [vmem:[%s177 + $0xe4] sm:$0xff]
        %v246 = vld [vmem:[%s177 + $0xec] sm:$0xf]
        %v247 = vld [vmem:[%s177 + $0xf0] sm:$0xff]
        %v248 = vld [vmem:[%s177 + $0xf8] sm:$0xf]
        %v249 = vld [vmem:[%s177 + $0xfc] sm:$0xff]
        %v250 = vld [vmem:[%s177 + $0x104] sm:$0xf]
        %v251 = vld [vmem:[%s177 + $0x108] sm:$0xff]
        %v252 = vld [vmem:[%s177 + $0x110] sm:$0xf]
        %v253 = vld [vmem:[%s177 + $0x114] sm:$0xff]
        %v254 = vld [vmem:[%s177 + $0x11c] sm:$0xf]
        %v255 = vld [vmem:[%s177 + $0x120] sm:$0xff]
        %v256 = vld [vmem:[%s177 + $0x128] sm:$0xf]
        %v257 = vld [vmem:[%s177 + $0x12c] sm:$0xff]
        %v258 = vld [vmem:[%s177 + $0x134] sm:$0xf]
        %v259 = vld [vmem:[%s177 + $0x138] sm:$0xff]
        %v260 = vld [vmem:[%s177 + $0x140] sm:$0xf]
        %v261 = vld [vmem:[%s177 + $0x144] sm:$0xff]
        %v262 = vld [vmem:[%s177 + $0x14c] sm:$0xf]
        %v263 = vld [vmem:[%s177 + $0x150] sm:$0xff]
        %v264 = vld [vmem:[%s177 + $0x158] sm:$0xf]
        %v265 = vld [vmem:[%s177 + $0x15c] sm:$0xff]
        %v266 = vld [vmem:[%s177 + $0x164] sm:$0xf]
        %v267 = vld [vmem:[%s177 + $0x168] sm:$0xff]
        %v268 = vld [vmem:[%s177 + $0x170] sm:$0xf]
        %v269 = vld [vmem:[%s177 + $0x174] sm:$0xff]
        %v270 = vld [vmem:[%s177 + $0x17c] sm:$0xf]
        %v271 = vld [vmem:[%s177 + $0x180] sm:$0xff]
        %v272 = vld [vmem:[%s177 + $0x188] sm:$0xf]
        %v273 = vld [vmem:[%s177 + $0x18c] sm:$0xff]
        %v274 = vld [vmem:[%s177 + $0x194] sm:$0xf]
        %v275 = vld [vmem:[%s177 + $0x198] sm:$0xff]
        %v276 = vld [vmem:[%s177 + $0x1a0] sm:$0xf]
        %v277 = vld [vmem:[%s177 + $0x1a4] sm:$0xff]
        %v278 = vld [vmem:[%s177 + $0x1ac] sm:$0xf]
        %v279 = vld [vmem:[%s177 + $0x1b0] sm:$0xff]
        %v280 = vld [vmem:[%s177 + $0x1b8] sm:$0xf]
        %v281 = vld [vmem:[%s177 + $0x1bc] sm:$0xff]
        %v282 = vld [vmem:[%s177 + $0x1c4] sm:$0xf]
        %v283 = vld [vmem:[%s177 + $0x1c8] sm:$0xff]
        %v284 = vld [vmem:[%s177 + $0x1d0] sm:$0xf]
        %v285 = vld [vmem:[%s177 + $0x1d4] sm:$0xff]
        %v286 = vld [vmem:[%s177 + $0x1dc] sm:$0xf]
        %v287 = vld [vmem:[%s177 + $0x1e0] sm:$0xff]
        %v288 = vld [vmem:[%s177 + $0x1e8] sm:$0xf]
        %v289 = vld [vmem:[%s177 + $0x1ec] sm:$0xff]
        %v290 = vld [vmem:[%s177 + $0x1f4] sm:$0xf]
        %v291 = vld [vmem:[#allocation5] sm:$0xff]
        %v292 = vld [vmem:[#allocation5 + $0x8] sm:$0xff]
        %v293 = vld [vmem:[#allocation5 + $0x10] sm:$0xff]
        %v294 = vld [vmem:[#allocation5 + $0x18] sm:$0xf]
        %v295 = vld [vmem:[#allocation5 + $0x1c] sm:$0xff]
        %v296 = vld [vmem:[#allocation5 + $0x24] sm:$0xff]
        %v297 = vld [vmem:[#allocation5 + $0x2c] sm:$0xff]
        %v298 = vld [vmem:[#allocation5 + $0x34] sm:$0xf]
        %v299 = vld [vmem:[#allocation5 + $0x38] sm:$0xff]
        %v300 = vld [vmem:[#allocation5 + $0x40] sm:$0xff]
        %v301 = vld [vmem:[#allocation5 + $0x48] sm:$0xff]
        %v302 = vld [vmem:[#allocation5 + $0x50] sm:$0xf]
        %v303 = vld [vmem:[#allocation5 + $0x54] sm:$0xff]
        %v304 = vld [vmem:[#allocation5 + $0x5c] sm:$0xff]
        %v305 = vld [vmem:[#allocation5 + $0x64] sm:$0xff]
        %v306 = vld [vmem:[#allocation5 + $0x6c] sm:$0xf]
        %v307 = vld [vmem:[#allocation5 + $0x70] sm:$0xff]
        %v308 = vld [vmem:[#allocation5 + $0x78] sm:$0xff]
        %v309 = vld [vmem:[#allocation5 + $0x80] sm:$0xff]
        %v310 = vld [vmem:[#allocation5 + $0x88] sm:$0xf]
        %v311 = vld [vmem:[#allocation5 + $0x8c] sm:$0xff]
        %v312 = vld [vmem:[#allocation5 + $0x94] sm:$0xff]
        %v313 = vld [vmem:[#allocation5 + $0x9c] sm:$0xff]
        %v314 = vld [vmem:[#allocation5 + $0xa4] sm:$0xf]
        %v315 = vld [vmem:[#allocation5 + $0xa8] sm:$0xff]
        %v316 = vld [vmem:[#allocation5 + $0xb0] sm:$0xff]
        %v317 = vld [vmem:[#allocation5 + $0xb8] sm:$0xff]
        %v318 = vld [vmem:[#allocation5 + $0xc0] sm:$0xf]
        %v319 = vld [vmem:[#allocation5 + $0xc4] sm:$0xff]
        %v320 = vld [vmem:[#allocation5 + $0xcc] sm:$0xff]
        %v321 = vld [vmem:[#allocation5 + $0xd4] sm:$0xff]
        %v322 = vld [vmem:[#allocation5 + $0xdc] sm:$0xf]
        %v323 = vld [vmem:[#allocation5 + $0xe0] sm:$0xff]
        %v324 = vld [vmem:[#allocation5 + $0xe8] sm:$0xff]
        %v325 = vld [vmem:[#allocation5 + $0xf0] sm:$0xff]
        %v326 = vld [vmem:[#allocation5 + $0xf8] sm:$0xf]
        %v327 = vld [vmem:[#allocation5 + $0xfc] sm:$0xff]
        %v328 = vld [vmem:[#allocation5 + $0x104] sm:$0xff]
        %v329 = vld [vmem:[#allocation5 + $0x10c] sm:$0xff]
        %v330 = vld [vmem:[#allocation5 + $0x114] sm:$0xf]
        %v331 = vld [vmem:[#allocation5 + $0x118] sm:$0xff]
        %v332 = vld [vmem:[#allocation5 + $0x120] sm:$0xff]
        %v333 = vld [vmem:[#allocation5 + $0x128] sm:$0xff]
        %v334 = vld [vmem:[#allocation5 + $0x130] sm:$0xf]
        %v335 = vld [vmem:[#allocation5 + $0x134] sm:$0xff]
        %v336 = vld [vmem:[#allocation5 + $0x13c] sm:$0xff]
        %v337 = vld [vmem:[#allocation5 + $0x144] sm:$0xff]
        %v338 = vld [vmem:[#allocation5 + $0x14c] sm:$0xf]
        %v339 = vld [vmem:[#allocation5 + $0x150] sm:$0xff]
        %v340 = vld [vmem:[#allocation5 + $0x158] sm:$0xff]
        %v341 = vld [vmem:[#allocation5 + $0x160] sm:$0xff]
        %v342 = vld [vmem:[#allocation5 + $0x168] sm:$0xf]
        %v343 = vld [vmem:[#allocation5 + $0x16c] sm:$0xff]
        %v344 = vld [vmem:[#allocation5 + $0x174] sm:$0xff]
        %v345 = vld [vmem:[#allocation5 + $0x17c] sm:$0xff]
        %v346 = vld [vmem:[#allocation5 + $0x184] sm:$0xf]
        %v347 = vld [vmem:[#allocation5 + $0x188] sm:$0xff]
        %v348 = vld [vmem:[#allocation5 + $0x190] sm:$0xff]
        %v349 = vld [vmem:[#allocation5 + $0x198] sm:$0xff]
        %v350 = vld [vmem:[#allocation5 + $0x1a0] sm:$0xf]
        %v351 = vld [vmem:[#allocation5 + $0x1a4] sm:$0xff]
        %v352 = vld [vmem:[#allocation5 + $0x1ac] sm:$0xff]
        %v353 = vld [vmem:[#allocation5 + $0x1b4] sm:$0xff]
        %v354 = vld [vmem:[#allocation5 + $0x1bc] sm:$0xf]
        %v355 = vld [vmem:[#allocation5 + $0x1c0] sm:$0xff]
        %v356 = vld [vmem:[#allocation5 + $0x1c8] sm:$0xff]
        %v357 = vld [vmem:[#allocation5 + $0x1d0] sm:$0xff]
        %v358 = vld [vmem:[#allocation5 + $0x1d8] sm:$0xf]
        %v359 = vld [vmem:[#allocation5 + $0x1dc] sm:$0xff]
        %v360 = vld [vmem:[#allocation5 + $0x1e4] sm:$0xff]
        %v361 = vld [vmem:[#allocation5 + $0x1ec] sm:$0xff]
        %v362 = vld [vmem:[#allocation5 + $0x1f4] sm:$0xf]
        %v363 = vld [vmem:[#allocation5 + $0x1f8] sm:$0xff]
        %v364 = vld [vmem:[#allocation5 + $0x200] sm:$0xff]
        %v365 = vld [vmem:[#allocation5 + $0x208] sm:$0xff]
        %v366 = vld [vmem:[#allocation5 + $0x210] sm:$0xf]
        %v367 = vld [vmem:[#allocation5 + $0x214] sm:$0xff]
        %v368 = vld [vmem:[#allocation5 + $0x21c] sm:$0xff]
        %v369 = vld [vmem:[#allocation5 + $0x224] sm:$0xff]
        %v370 = vld [vmem:[#allocation5 + $0x22c] sm:$0xf]
        %v371 = vld [vmem:[#allocation5 + $0x230] sm:$0xff]
        %v372 = vld [vmem:[#allocation5 + $0x238] sm:$0xff]
        %v373 = vld [vmem:[#allocation5 + $0x240] sm:$0xff]
        %v374 = vld [vmem:[#allocation5 + $0x248] sm:$0xf]
        %v375 = vld [vmem:[#allocation5 + $0x24c] sm:$0xff]
        %v376 = vld [vmem:[#allocation5 + $0x254] sm:$0xff]
        %v377 = vld [vmem:[#allocation5 + $0x25c] sm:$0xff]
        %v378 = vld [vmem:[#allocation5 + $0x264] sm:$0xf]
        %v379 = vld [vmem:[#allocation5 + $0x268] sm:$0xff]
        %v380 = vld [vmem:[#allocation5 + $0x270] sm:$0xff]
        %v381 = vld [vmem:[#allocation5 + $0x278] sm:$0xff]
        %v382 = vld [vmem:[#allocation5 + $0x280] sm:$0xf]
        %v383 = vld [vmem:[#allocation5 + $0x284] sm:$0xff]
        %v384 = vld [vmem:[#allocation5 + $0x28c] sm:$0xff]
        %v385 = vld [vmem:[#allocation5 + $0x294] sm:$0xff]
        %v386 = vld [vmem:[#allocation5 + $0x29c] sm:$0xf]
        %v387 = vld [vmem:[#allocation5 + $0x2a0] sm:$0xff]
        %v388 = vld [vmem:[#allocation5 + $0x2a8] sm:$0xff]
        %v389 = vld [vmem:[#allocation5 + $0x2b0] sm:$0xff]
        %v390 = vld [vmem:[#allocation5 + $0x2b8] sm:$0xf]
        %v391 = vld [vmem:[#allocation5 + $0x2bc] sm:$0xff]
        %v392 = vld [vmem:[#allocation5 + $0x2c4] sm:$0xff]
        %v393 = vld [vmem:[#allocation5 + $0x2cc] sm:$0xff]
        %v394 = vld [vmem:[#allocation5 + $0x2d4] sm:$0xf]
        %v395 = vld [vmem:[#allocation5 + $0x2d8] sm:$0xff]
        %v396 = vld [vmem:[#allocation5 + $0x2e0] sm:$0xff]
        %v397 = vld [vmem:[#allocation5 + $0x2e8] sm:$0xff]
        %v398 = vld [vmem:[#allocation5 + $0x2f0] sm:$0xf]
        %v399 = vld [vmem:[#allocation5 + $0x2f4] sm:$0xff]
        %v400 = vld [vmem:[#allocation5 + $0x2fc] sm:$0xff]
        %v401 = vld [vmem:[#allocation5 + $0x304] sm:$0xff]
        %v402 = vld [vmem:[#allocation5 + $0x30c] sm:$0xf]
        %v403 = vld [vmem:[#allocation5 + $0x310] sm:$0xff]
        %v404 = vld [vmem:[#allocation5 + $0x318] sm:$0xff]
        %v405 = vld [vmem:[#allocation5 + $0x320] sm:$0xff]
        %v406 = vld [vmem:[#allocation5 + $0x328] sm:$0xf]
        %v407 = vld [vmem:[#allocation5 + $0x32c] sm:$0xff]
        %v408 = vld [vmem:[#allocation5 + $0x334] sm:$0xff]
        %v409 = vld [vmem:[#allocation5 + $0x33c] sm:$0xff]
        %v410 = vld [vmem:[#allocation5 + $0x344] sm:$0xf]
        %v411 = vld [vmem:[#allocation5 + $0x348] sm:$0xff]
        %v412 = vld [vmem:[#allocation5 + $0x350] sm:$0xff]
        %v413 = vld [vmem:[#allocation5 + $0x358] sm:$0xff]
        %v414 = vld [vmem:[#allocation5 + $0x360] sm:$0xf]
        %v415 = vld [vmem:[#allocation5 + $0x364] sm:$0xff]
        %v416 = vld [vmem:[#allocation5 + $0x36c] sm:$0xff]
        %v417 = vld [vmem:[#allocation5 + $0x374] sm:$0xff]
        %v418 = vld [vmem:[#allocation5 + $0x37c] sm:$0xf]
        %v419 = vld [vmem:[#allocation5 + $0x380] sm:$0xff]
        %v420 = vld [vmem:[#allocation5 + $0x388] sm:$0xff]
        %v421 = vld [vmem:[#allocation5 + $0x390] sm:$0xff]
        %v422 = vld [vmem:[#allocation5 + $0x398] sm:$0xf]
        %v423 = vld [vmem:[#allocation5 + $0x39c] sm:$0xff]
        %v424 = vld [vmem:[#allocation5 + $0x3a4] sm:$0xff]
        %v425 = vld [vmem:[#allocation5 + $0x3ac] sm:$0xff]
        %v426 = vld [vmem:[#allocation5 + $0x3b4] sm:$0xf]
        %v427 = vld [vmem:[#allocation5 + $0x3b8] sm:$0xff]
        %v428 = vld [vmem:[#allocation5 + $0x3c0] sm:$0xff]
        %v429 = vld [vmem:[#allocation5 + $0x3c8] sm:$0xff]
        %v430 = vld [vmem:[#allocation5 + $0x3d0] sm:$0xf]
        %v431 = vld [vmem:[#allocation5 + $0x3d4] sm:$0xff]
        %v432 = vld [vmem:[#allocation5 + $0x3dc] sm:$0xff]
        %v433 = vld [vmem:[#allocation5 + $0x3e4] sm:$0xff]
        %v434 = vld [vmem:[#allocation5 + $0x3ec] sm:$0xf]
        %v435 = vld [vmem:[#allocation5 + $0x3f0] sm:$0xff]
        %v436 = vld [vmem:[#allocation5 + $0x3f8] sm:$0xff]
        %v437 = vld [vmem:[#allocation5 + $0x400] sm:$0xff]
        %v438 = vld [vmem:[#allocation5 + $0x408] sm:$0xf]
        %v439 = vld [vmem:[#allocation5 + $0x40c] sm:$0xff]
        %v440 = vld [vmem:[#allocation5 + $0x414] sm:$0xff]
        %v441 = vld [vmem:[#allocation5 + $0x41c] sm:$0xff]
        %v442 = vld [vmem:[#allocation5 + $0x424] sm:$0xf]
        %v443 = vld [vmem:[#allocation5 + $0x428] sm:$0xff]
        %v444 = vld [vmem:[#allocation5 + $0x430] sm:$0xff]
        %v445 = vld [vmem:[#allocation5 + $0x438] sm:$0xff]
        %v446 = vld [vmem:[#allocation5 + $0x440] sm:$0xf]
        %v447 = vld [vmem:[#allocation5 + $0x444] sm:$0xff]
        %v448 = vld [vmem:[#allocation5 + $0x44c] sm:$0xff]
        %v449 = vld [vmem:[#allocation5 + $0x454] sm:$0xff]
        %v450 = vld [vmem:[#allocation5 + $0x45c] sm:$0xf]
        %v451 = vld [vmem:[#allocation5 + $0x460] sm:$0xff]
        %v452 = vld [vmem:[#allocation5 + $0x468] sm:$0xff]
        %v453 = vld [vmem:[#allocation5 + $0x470] sm:$0xff]
        %v454 = vld [vmem:[#allocation5 + $0x478] sm:$0xf]
        %v455 = vld [vmem:[#allocation5 + $0x47c] sm:$0xff]
        %v456 = vld [vmem:[#allocation5 + $0x484] sm:$0xff]
        %v457 = vld [vmem:[#allocation5 + $0x48c] sm:$0xff]
        %v458 = vld [vmem:[#allocation5 + $0x494] sm:$0xf]
        %v543 = vunpack.c.l.b16 %v207
        %v544 = vunpack.c.h.b16 %v207
        %v545 = vunpack.c.l.b16 %v208
        %v546 = vunpack.c.l.b16 %v209
        %v547 = vunpack.c.h.b16 %v209
        %v548 = vunpack.c.l.b16 %v210
        %v549 = vunpack.c.l.b16 %v211
        %v550 = vunpack.c.h.b16 %v211
        %v551 = vunpack.c.l.b16 %v212
        %v552 = vunpack.c.l.b16 %v213
        %v553 = vunpack.c.h.b16 %v213
        %v554 = vunpack.c.l.b16 %v214
        %v555 = vunpack.c.l.b16 %v215
        %v556 = vunpack.c.h.b16 %v215
        %v557 = vunpack.c.l.b16 %v216
        %v558 = vunpack.c.l.b16 %v217
        %v559 = vunpack.c.h.b16 %v217
        %v560 = vunpack.c.l.b16 %v218
        %v561 = vunpack.c.l.b16 %v219
        %v562 = vunpack.c.h.b16 %v219
        %v563 = vunpack.c.l.b16 %v220
        %v564 = vunpack.c.l.b16 %v221
        %v565 = vunpack.c.h.b16 %v221
        %v566 = vunpack.c.l.b16 %v222
        %v567 = vunpack.c.l.b16 %v223
        %v568 = vunpack.c.h.b16 %v223
        %v569 = vunpack.c.l.b16 %v224
        %v570 = vunpack.c.l.b16 %v225
        %v571 = vunpack.c.h.b16 %v225
        %v572 = vunpack.c.l.b16 %v226
        %v573 = vunpack.c.l.b16 %v227
        %v574 = vunpack.c.h.b16 %v227
        %v575 = vunpack.c.l.b16 %v228
        %v576 = vunpack.c.l.b16 %v229
        %v577 = vunpack.c.h.b16 %v229
        %v578 = vunpack.c.l.b16 %v230
        %v579 = vunpack.c.l.b16 %v231
        %v580 = vunpack.c.h.b16 %v231
        %v581 = vunpack.c.l.b16 %v232
        %v582 = vunpack.c.l.b16 %v233
        %v583 = vunpack.c.h.b16 %v233
        %v584 = vunpack.c.l.b16 %v234
        %v585 = vunpack.c.l.b16 %v235
        %v586 = vunpack.c.h.b16 %v235
        %v587 = vunpack.c.l.b16 %v236
        %v588 = vunpack.c.l.b16 %v237
        %v589 = vunpack.c.h.b16 %v237
        %v590 = vunpack.c.l.b16 %v238
        %v591 = vunpack.c.l.b16 %v239
        %v592 = vunpack.c.h.b16 %v239
        %v593 = vunpack.c.l.b16 %v240
        %v594 = vunpack.c.l.b16 %v241
        %v595 = vunpack.c.h.b16 %v241
        %v596 = vunpack.c.l.b16 %v242
        %v597 = vunpack.c.l.b16 %v243
        %v598 = vunpack.c.h.b16 %v243
        %v599 = vunpack.c.l.b16 %v244
        %v600 = vunpack.c.l.b16 %v245
        %v601 = vunpack.c.h.b16 %v245
        %v602 = vunpack.c.l.b16 %v246
        %v603 = vunpack.c.l.b16 %v247
        %v604 = vunpack.c.h.b16 %v247
        %v605 = vunpack.c.l.b16 %v248
        %v606 = vunpack.c.l.b16 %v249
        %v607 = vunpack.c.h.b16 %v249
        %v608 = vunpack.c.l.b16 %v250
        %v609 = vunpack.c.l.b16 %v251
        %v610 = vunpack.c.h.b16 %v251
        %v611 = vunpack.c.l.b16 %v252
        %v612 = vunpack.c.l.b16 %v253
        %v613 = vunpack.c.h.b16 %v253
        %v614 = vunpack.c.l.b16 %v254
        %v615 = vunpack.c.l.b16 %v255
        %v616 = vunpack.c.h.b16 %v255
        %v617 = vunpack.c.l.b16 %v256
        %v618 = vunpack.c.l.b16 %v257
        %v619 = vunpack.c.h.b16 %v257
        %v620 = vunpack.c.l.b16 %v258
        %v621 = vunpack.c.l.b16 %v259
        %v622 = vunpack.c.h.b16 %v259
        %v623 = vunpack.c.l.b16 %v260
        %v624 = vunpack.c.l.b16 %v261
        %v625 = vunpack.c.h.b16 %v261
        %v626 = vunpack.c.l.b16 %v262
        %v627 = vunpack.c.l.b16 %v263
        %v628 = vunpack.c.h.b16 %v263
        %v629 = vunpack.c.l.b16 %v264
        %v630 = vunpack.c.l.b16 %v265
        %v631 = vunpack.c.h.b16 %v265
        %v632 = vunpack.c.l.b16 %v266
        %v633 = vunpack.c.l.b16 %v267
        %v634 = vunpack.c.h.b16 %v267
        %v635 = vunpack.c.l.b16 %v268
        %v636 = vunpack.c.l.b16 %v269
        %v637 = vunpack.c.h.b16 %v269
        %v638 = vunpack.c.l.b16 %v270
        %v639 = vunpack.c.l.b16 %v271
        %v640 = vunpack.c.h.b16 %v271
        %v641 = vunpack.c.l.b16 %v272
        %v642 = vunpack.c.l.b16 %v273
        %v643 = vunpack.c.h.b16 %v273
        %v644 = vunpack.c.l.b16 %v274
        %v645 = vunpack.c.l.b16 %v275
        %v646 = vunpack.c.h.b16 %v275
        %v647 = vunpack.c.l.b16 %v276
        %v648 = vunpack.c.l.b16 %v277
        %v649 = vunpack.c.h.b16 %v277
        %v650 = vunpack.c.l.b16 %v278
        %v651 = vunpack.c.l.b16 %v279
        %v652 = vunpack.c.h.b16 %v279
        %v653 = vunpack.c.l.b16 %v280
        %v654 = vunpack.c.l.b16 %v281
        %v655 = vunpack.c.h.b16 %v281
        %v656 = vunpack.c.l.b16 %v282
        %v657 = vunpack.c.l.b16 %v283
        %v658 = vunpack.c.h.b16 %v283
        %v659 = vunpack.c.l.b16 %v284
        %v660 = vunpack.c.l.b16 %v285
        %v661 = vunpack.c.h.b16 %v285
        %v662 = vunpack.c.l.b16 %v286
        %v663 = vunpack.c.l.b16 %v287
        %v664 = vunpack.c.h.b16 %v287
        %v665 = vunpack.c.l.b16 %v288
        %v666 = vunpack.c.l.b16 %v289
        %v667 = vunpack.c.h.b16 %v289
        %v668 = vunpack.c.l.b16 %v290
        %v669 = vpack.c.b16 %v546, %v543
        %v670 = vpack.c.b16 %v547, %v544
        %v671 = vpack.c.b16 %v548, %v545
        %v672 = vpack.c.b16 %v552, %v549
        %v673 = vpack.c.b16 %v553, %v550
        %v674 = vpack.c.b16 %v554, %v551
        %v675 = vpack.c.b16 %v558, %v555
        %v676 = vpack.c.b16 %v559, %v556
        %v677 = vpack.c.b16 %v560, %v557
        %v678 = vpack.c.b16 %v564, %v561
        %v679 = vpack.c.b16 %v565, %v562
        %v680 = vpack.c.b16 %v566, %v563
        %v681 = vpack.c.b16 %v570, %v567
        %v682 = vpack.c.b16 %v571, %v568
        %v683 = vpack.c.b16 %v572, %v569
        %v684 = vpack.c.b16 %v576, %v573
        %v685 = vpack.c.b16 %v577, %v574
        %v686 = vpack.c.b16 %v578, %v575
        %v687 = vpack.c.b16 %v582, %v579
        %v688 = vpack.c.b16 %v583, %v580
        %v689 = vpack.c.b16 %v584, %v581
        %v690 = vpack.c.b16 %v588, %v585
        %v691 = vpack.c.b16 %v589, %v586
        %v692 = vpack.c.b16 %v590, %v587
        %v693 = vpack.c.b16 %v594, %v591
        %v694 = vpack.c.b16 %v595, %v592
        %v695 = vpack.c.b16 %v596, %v593
        %v696 = vpack.c.b16 %v600, %v597
        %v697 = vpack.c.b16 %v601, %v598
        %v698 = vpack.c.b16 %v602, %v599
        %v699 = vpack.c.b16 %v606, %v603
        %v700 = vpack.c.b16 %v607, %v604
        %v701 = vpack.c.b16 %v608, %v605
        %v702 = vpack.c.b16 %v612, %v609
        %v703 = vpack.c.b16 %v613, %v610
        %v704 = vpack.c.b16 %v614, %v611
        %v705 = vpack.c.b16 %v618, %v615
        %v706 = vpack.c.b16 %v619, %v616
        %v707 = vpack.c.b16 %v620, %v617
        %v708 = vpack.c.b16 %v624, %v621
        %v709 = vpack.c.b16 %v625, %v622
        %v710 = vpack.c.b16 %v626, %v623
        %v711 = vpack.c.b16 %v630, %v627
        %v712 = vpack.c.b16 %v631, %v628
        %v713 = vpack.c.b16 %v632, %v629
        %v714 = vpack.c.b16 %v636, %v633
        %v715 = vpack.c.b16 %v637, %v634
        %v716 = vpack.c.b16 %v638, %v635
        %v717 = vpack.c.b16 %v642, %v639
        %v718 = vpack.c.b16 %v643, %v640
        %v719 = vpack.c.b16 %v644, %v641
        %v720 = vpack.c.b16 %v648, %v645
        %v721 = vpack.c.b16 %v649, %v646
        %v722 = vpack.c.b16 %v650, %v647
        %v723 = vpack.c.b16 %v654, %v651
        %v724 = vpack.c.b16 %v655, %v652
        %v725 = vpack.c.b16 %v656, %v653
        %v726 = vpack.c.b16 %v660, %v657
        %v727 = vpack.c.b16 %v661, %v658
        %v728 = vpack.c.b16 %v662, %v659
        %v729 = vpack.c.b16 %v666, %v663
        %v730 = vpack.c.b16 %v667, %v664
        %v731 = vpack.c.b16 %v668, %v665
        %v942 = vunpack.c.l.b16 %v291
        %v943 = vunpack.c.h.b16 %v291
        %v944 = vunpack.c.l.b16 %v292
        %v945 = vunpack.c.h.b16 %v292
        %v946 = vunpack.c.l.b16 %v293
        %v947 = vunpack.c.h.b16 %v293
        %v948 = vunpack.c.l.b16 %v294
        %v949 = vunpack.c.l.b16 %v295
        %v950 = vunpack.c.h.b16 %v295
        %v951 = vunpack.c.l.b16 %v296
        %v952 = vunpack.c.h.b16 %v296
        %v953 = vunpack.c.l.b16 %v297
        %v954 = vunpack.c.h.b16 %v297
        %v955 = vunpack.c.l.b16 %v298
        %v956 = vunpack.c.l.b16 %v299
        %v957 = vunpack.c.h.b16 %v299
        %v958 = vunpack.c.l.b16 %v300
        %v959 = vunpack.c.h.b16 %v300
        %v960 = vunpack.c.l.b16 %v301
        %v961 = vunpack.c.h.b16 %v301
        %v962 = vunpack.c.l.b16 %v302
        %v963 = vunpack.c.l.b16 %v303
        %v964 = vunpack.c.h.b16 %v303
        %v965 = vunpack.c.l.b16 %v304
        %v966 = vunpack.c.h.b16 %v304
        %v967 = vunpack.c.l.b16 %v305
        %v968 = vunpack.c.h.b16 %v305
        %v969 = vunpack.c.l.b16 %v306
        %v970 = vunpack.c.l.b16 %v307
        %v971 = vunpack.c.h.b16 %v307
        %v972 = vunpack.c.l.b16 %v308
        %v973 = vunpack.c.h.b16 %v308
        %v974 = vunpack.c.l.b16 %v309
        %v975 = vunpack.c.h.b16 %v309
        %v976 = vunpack.c.l.b16 %v310
        %v977 = vunpack.c.l.b16 %v311
        %v978 = vunpack.c.h.b16 %v311
        %v979 = vunpack.c.l.b16 %v312
        %v980 = vunpack.c.h.b16 %v312
        %v981 = vunpack.c.l.b16 %v313
        %v982 = vunpack.c.h.b16 %v313
        %v983 = vunpack.c.l.b16 %v314
        %v984 = vunpack.c.l.b16 %v315
        %v985 = vunpack.c.h.b16 %v315
        %v986 = vunpack.c.l.b16 %v316
        %v987 = vunpack.c.h.b16 %v316
        %v988 = vunpack.c.l.b16 %v317
        %v989 = vunpack.c.h.b16 %v317
        %v990 = vunpack.c.l.b16 %v318
        %v991 = vunpack.c.l.b16 %v319
        %v992 = vunpack.c.h.b16 %v319
        %v993 = vunpack.c.l.b16 %v320
        %v994 = vunpack.c.h.b16 %v320
        %v995 = vunpack.c.l.b16 %v321
        %v996 = vunpack.c.h.b16 %v321
        %v997 = vunpack.c.l.b16 %v322
        %v998 = vunpack.c.l.b16 %v323
        %v999 = vunpack.c.h.b16 %v323
        %v1000 = vunpack.c.l.b16 %v324
        %v1001 = vunpack.c.h.b16 %v324
        %v1002 = vunpack.c.l.b16 %v325
        %v1003 = vunpack.c.h.b16 %v325
        %v1004 = vunpack.c.l.b16 %v326
        %v1005 = vunpack.c.l.b16 %v327
        %v1006 = vunpack.c.h.b16 %v327
        %v1007 = vunpack.c.l.b16 %v328
        %v1008 = vunpack.c.h.b16 %v328
        %v1009 = vunpack.c.l.b16 %v329
        %v1010 = vunpack.c.h.b16 %v329
        %v1011 = vunpack.c.l.b16 %v330
        %v1012 = vunpack.c.l.b16 %v331
        %v1013 = vunpack.c.h.b16 %v331
        %v1014 = vunpack.c.l.b16 %v332
        %v1015 = vunpack.c.h.b16 %v332
        %v1016 = vunpack.c.l.b16 %v333
        %v1017 = vunpack.c.h.b16 %v333
        %v1018 = vunpack.c.l.b16 %v334
        %v1019 = vunpack.c.l.b16 %v335
        %v1020 = vunpack.c.h.b16 %v335
        %v1021 = vunpack.c.l.b16 %v336
        %v1022 = vunpack.c.h.b16 %v336
        %v1023 = vunpack.c.l.b16 %v337
        %v1024 = vunpack.c.h.b16 %v337
        %v1025 = vunpack.c.l.b16 %v338
        %v1026 = vunpack.c.l.b16 %v339
        %v1027 = vunpack.c.h.b16 %v339
        %v1028 = vunpack.c.l.b16 %v340
        %v1029 = vunpack.c.h.b16 %v340
        %v1030 = vunpack.c.l.b16 %v341
        %v1031 = vunpack.c.h.b16 %v341
        %v1032 = vunpack.c.l.b16 %v342
        %v1033 = vunpack.c.l.b16 %v343
        %v1034 = vunpack.c.h.b16 %v343
        %v1035 = vunpack.c.l.b16 %v344
        %v1036 = vunpack.c.h.b16 %v344
        %v1037 = vunpack.c.l.b16 %v345
        %v1038 = vunpack.c.h.b16 %v345
        %v1039 = vunpack.c.l.b16 %v346
        %v1040 = vunpack.c.l.b16 %v347
        %v1041 = vunpack.c.h.b16 %v347
        %v1042 = vunpack.c.l.b16 %v348
        %v1043 = vunpack.c.h.b16 %v348
        %v1044 = vunpack.c.l.b16 %v349
        %v1045 = vunpack.c.h.b16 %v349
        %v1046 = vunpack.c.l.b16 %v350
        %v1047 = vunpack.c.l.b16 %v351
        %v1048 = vunpack.c.h.b16 %v351
        %v1049 = vunpack.c.l.b16 %v352
        %v1050 = vunpack.c.h.b16 %v352
        %v1051 = vunpack.c.l.b16 %v353
        %v1052 = vunpack.c.h.b16 %v353
        %v1053 = vunpack.c.l.b16 %v354
        %v1054 = vunpack.c.l.b16 %v355
        %v1055 = vunpack.c.h.b16 %v355
        %v1056 = vunpack.c.l.b16 %v356
        %v1057 = vunpack.c.h.b16 %v356
        %v1058 = vunpack.c.l.b16 %v357
        %v1059 = vunpack.c.h.b16 %v357
        %v1060 = vunpack.c.l.b16 %v358
        %v1061 = vunpack.c.l.b16 %v359
        %v1062 = vunpack.c.h.b16 %v359
        %v1063 = vunpack.c.l.b16 %v360
        %v1064 = vunpack.c.h.b16 %v360
        %v1065 = vunpack.c.l.b16 %v361
        %v1066 = vunpack.c.h.b16 %v361
        %v1067 = vunpack.c.l.b16 %v362
        %v1068 = vunpack.c.l.b16 %v363
        %v1069 = vunpack.c.h.b16 %v363
        %v1070 = vunpack.c.l.b16 %v364
        %v1071 = vunpack.c.h.b16 %v364
        %v1072 = vunpack.c.l.b16 %v365
        %v1073 = vunpack.c.h.b16 %v365
        %v1074 = vunpack.c.l.b16 %v366
        %v1075 = vunpack.c.l.b16 %v367
        %v1076 = vunpack.c.h.b16 %v367
        %v1077 = vunpack.c.l.b16 %v368
        %v1078 = vunpack.c.h.b16 %v368
        %v1079 = vunpack.c.l.b16 %v369
        %v1080 = vunpack.c.h.b16 %v369
        %v1081 = vunpack.c.l.b16 %v370
        %v1082 = vunpack.c.l.b16 %v371
        %v1083 = vunpack.c.h.b16 %v371
        %v1084 = vunpack.c.l.b16 %v372
        %v1085 = vunpack.c.h.b16 %v372
        %v1086 = vunpack.c.l.b16 %v373
        %v1087 = vunpack.c.h.b16 %v373
        %v1088 = vunpack.c.l.b16 %v374
        %v1089 = vunpack.c.l.b16 %v375
        %v1090 = vunpack.c.h.b16 %v375
        %v1091 = vunpack.c.l.b16 %v376
        %v1092 = vunpack.c.h.b16 %v376
        %v1093 = vunpack.c.l.b16 %v377
        %v1094 = vunpack.c.h.b16 %v377
        %v1095 = vunpack.c.l.b16 %v378
        %v1096 = vunpack.c.l.b16 %v379
        %v1097 = vunpack.c.h.b16 %v379
        %v1098 = vunpack.c.l.b16 %v380
        %v1099 = vunpack.c.h.b16 %v380
        %v1100 = vunpack.c.l.b16 %v381
        %v1101 = vunpack.c.h.b16 %v381
        %v1102 = vunpack.c.l.b16 %v382
        %v1103 = vunpack.c.l.b16 %v383
        %v1104 = vunpack.c.h.b16 %v383
        %v1105 = vunpack.c.l.b16 %v384
        %v1106 = vunpack.c.h.b16 %v384
        %v1107 = vunpack.c.l.b16 %v385
        %v1108 = vunpack.c.h.b16 %v385
        %v1109 = vunpack.c.l.b16 %v386
        %v1110 = vunpack.c.l.b16 %v387
        %v1111 = vunpack.c.h.b16 %v387
        %v1112 = vunpack.c.l.b16 %v388
        %v1113 = vunpack.c.h.b16 %v388
        %v1114 = vunpack.c.l.b16 %v389
        %v1115 = vunpack.c.h.b16 %v389
        %v1116 = vunpack.c.l.b16 %v390
        %v1117 = vunpack.c.l.b16 %v391
        %v1118 = vunpack.c.h.b16 %v391
        %v1119 = vunpack.c.l.b16 %v392
        %v1120 = vunpack.c.h.b16 %v392
        %v1121 = vunpack.c.l.b16 %v393
        %v1122 = vunpack.c.h.b16 %v393
        %v1123 = vunpack.c.l.b16 %v394
        %v1124 = vunpack.c.l.b16 %v395
        %v1125 = vunpack.c.h.b16 %v395
        %v1126 = vunpack.c.l.b16 %v396
        %v1127 = vunpack.c.h.b16 %v396
        %v1128 = vunpack.c.l.b16 %v397
        %v1129 = vunpack.c.h.b16 %v397
        %v1130 = vunpack.c.l.b16 %v398
        %v1131 = vunpack.c.l.b16 %v399
        %v1132 = vunpack.c.h.b16 %v399
        %v1133 = vunpack.c.l.b16 %v400
        %v1134 = vunpack.c.h.b16 %v400
        %v1135 = vunpack.c.l.b16 %v401
        %v1136 = vunpack.c.h.b16 %v401
        %v1137 = vunpack.c.l.b16 %v402
        %v1138 = vunpack.c.l.b16 %v403
        %v1139 = vunpack.c.h.b16 %v403
        %v1140 = vunpack.c.l.b16 %v404
        %v1141 = vunpack.c.h.b16 %v404
        %v1142 = vunpack.c.l.b16 %v405
        %v1143 = vunpack.c.h.b16 %v405
        %v1144 = vunpack.c.l.b16 %v406
        %v1145 = vunpack.c.l.b16 %v407
        %v1146 = vunpack.c.h.b16 %v407
        %v1147 = vunpack.c.l.b16 %v408
        %v1148 = vunpack.c.h.b16 %v408
        %v1149 = vunpack.c.l.b16 %v409
        %v1150 = vunpack.c.h.b16 %v409
        %v1151 = vunpack.c.l.b16 %v410
        %v1152 = vunpack.c.l.b16 %v411
        %v1153 = vunpack.c.h.b16 %v411
        %v1154 = vunpack.c.l.b16 %v412
        %v1155 = vunpack.c.h.b16 %v412
        %v1156 = vunpack.c.l.b16 %v413
        %v1157 = vunpack.c.h.b16 %v413
        %v1158 = vunpack.c.l.b16 %v414
        %v1159 = vunpack.c.l.b16 %v415
        %v1160 = vunpack.c.h.b16 %v415
        %v1161 = vunpack.c.l.b16 %v416
        %v1162 = vunpack.c.h.b16 %v416
        %v1163 = vunpack.c.l.b16 %v417
        %v1164 = vunpack.c.h.b16 %v417
        %v1165 = vunpack.c.l.b16 %v418
        %v1166 = vunpack.c.l.b16 %v419
        %v1167 = vunpack.c.h.b16 %v419
        %v1168 = vunpack.c.l.b16 %v420
        %v1169 = vunpack.c.h.b16 %v420
        %v1170 = vunpack.c.l.b16 %v421
        %v1171 = vunpack.c.h.b16 %v421
        %v1172 = vunpack.c.l.b16 %v422
        %v1173 = vunpack.c.l.b16 %v423
        %v1174 = vunpack.c.h.b16 %v423
        %v1175 = vunpack.c.l.b16 %v424
        %v1176 = vunpack.c.h.b16 %v424
        %v1177 = vunpack.c.l.b16 %v425
        %v1178 = vunpack.c.h.b16 %v425
        %v1179 = vunpack.c.l.b16 %v426
        %v1180 = vunpack.c.l.b16 %v427
        %v1181 = vunpack.c.h.b16 %v427
        %v1182 = vunpack.c.l.b16 %v428
        %v1183 = vunpack.c.h.b16 %v428
        %v1184 = vunpack.c.l.b16 %v429
        %v1185 = vunpack.c.h.b16 %v429
        %v1186 = vunpack.c.l.b16 %v430
        %v1187 = vunpack.c.l.b16 %v431
        %v1188 = vunpack.c.h.b16 %v431
        %v1189 = vunpack.c.l.b16 %v432
        %v1190 = vunpack.c.h.b16 %v432
        %v1191 = vunpack.c.l.b16 %v433
        %v1192 = vunpack.c.h.b16 %v433
        %v1193 = vunpack.c.l.b16 %v434
        %v1194 = vunpack.c.l.b16 %v435
        %v1195 = vunpack.c.h.b16 %v435
        %v1196 = vunpack.c.l.b16 %v436
        %v1197 = vunpack.c.h.b16 %v436
        %v1198 = vunpack.c.l.b16 %v437
        %v1199 = vunpack.c.h.b16 %v437
        %v1200 = vunpack.c.l.b16 %v438
        %v1201 = vunpack.c.l.b16 %v439
        %v1202 = vunpack.c.h.b16 %v439
        %v1203 = vunpack.c.l.b16 %v440
        %v1204 = vunpack.c.h.b16 %v440
        %v1205 = vunpack.c.l.b16 %v441
        %v1206 = vunpack.c.h.b16 %v441
        %v1207 = vunpack.c.l.b16 %v442
        %v1208 = vunpack.c.l.b16 %v443
        %v1209 = vunpack.c.h.b16 %v443
        %v1210 = vunpack.c.l.b16 %v444
        %v1211 = vunpack.c.h.b16 %v444
        %v1212 = vunpack.c.l.b16 %v445
        %v1213 = vunpack.c.h.b16 %v445
        %v1214 = vunpack.c.l.b16 %v446
        %v1215 = vunpack.c.l.b16 %v447
        %v1216 = vunpack.c.h.b16 %v447
        %v1217 = vunpack.c.l.b16 %v448
        %v1218 = vunpack.c.h.b16 %v448
        %v1219 = vunpack.c.l.b16 %v449
        %v1220 = vunpack.c.h.b16 %v449
        %v1221 = vunpack.c.l.b16 %v450
        %v1222 = vunpack.c.l.b16 %v451
        %v1223 = vunpack.c.h.b16 %v451
        %v1224 = vunpack.c.l.b16 %v452
        %v1225 = vunpack.c.h.b16 %v452
        %v1226 = vunpack.c.l.b16 %v453
        %v1227 = vunpack.c.h.b16 %v453
        %v1228 = vunpack.c.l.b16 %v454
        %v1229 = vunpack.c.l.b16 %v455
        %v1230 = vunpack.c.h.b16 %v455
        %v1231 = vunpack.c.l.b16 %v456
        %v1232 = vunpack.c.h.b16 %v456
        %v1233 = vunpack.c.l.b16 %v457
        %v1234 = vunpack.c.h.b16 %v457
        %v1235 = vunpack.c.l.b16 %v458
        %v1236 = vpack.c.b16 %v949, %v942
        %v1237 = vpack.c.b16 %v950, %v943
        %v1238 = vpack.c.b16 %v951, %v944
        %v1239 = vpack.c.b16 %v952, %v945
        %v1240 = vpack.c.b16 %v953, %v946
        %v1241 = vpack.c.b16 %v954, %v947
        %v1242 = vpack.c.b16 %v955, %v948
        %v1243 = vpack.c.b16 %v963, %v956
        %v1244 = vpack.c.b16 %v964, %v957
        %v1245 = vpack.c.b16 %v965, %v958
        %v1246 = vpack.c.b16 %v966, %v959
        %v1247 = vpack.c.b16 %v967, %v960
        %v1248 = vpack.c.b16 %v968, %v961
        %v1249 = vpack.c.b16 %v969, %v962
        %v1250 = vpack.c.b16 %v977, %v970
        %v1251 = vpack.c.b16 %v978, %v971
        %v1252 = vpack.c.b16 %v979, %v972
        %v1253 = vpack.c.b16 %v980, %v973
        %v1254 = vpack.c.b16 %v981, %v974
        %v1255 = vpack.c.b16 %v982, %v975
        %v1256 = vpack.c.b16 %v983, %v976
        %v1257 = vpack.c.b16 %v991, %v984
        %v1258 = vpack.c.b16 %v992, %v985
        %v1259 = vpack.c.b16 %v993, %v986
        %v1260 = vpack.c.b16 %v994, %v987
        %v1261 = vpack.c.b16 %v995, %v988
        %v1262 = vpack.c.b16 %v996, %v989
        %v1263 = vpack.c.b16 %v997, %v990
        %v1264 = vpack.c.b16 %v1005, %v998
        %v1265 = vpack.c.b16 %v1006, %v999
        %v1266 = vpack.c.b16 %v1007, %v1000
        %v1267 = vpack.c.b16 %v1008, %v1001
        %v1268 = vpack.c.b16 %v1009, %v1002
        %v1269 = vpack.c.b16 %v1010, %v1003
        %v1270 = vpack.c.b16 %v1011, %v1004
        %v1271 = vpack.c.b16 %v1019, %v1012
        %v1272 = vpack.c.b16 %v1020, %v1013
        %v1273 = vpack.c.b16 %v1021, %v1014
        %v1274 = vpack.c.b16 %v1022, %v1015
        %v1275 = vpack.c.b16 %v1023, %v1016
        %v1276 = vpack.c.b16 %v1024, %v1017
        %v1277 = vpack.c.b16 %v1025, %v1018
        %v1278 = vpack.c.b16 %v1033, %v1026
        %v1279 = vpack.c.b16 %v1034, %v1027
        %v1280 = vpack.c.b16 %v1035, %v1028
        %v1281 = vpack.c.b16 %v1036, %v1029
        %v1282 = vpack.c.b16 %v1037, %v1030
        %v1283 = vpack.c.b16 %v1038, %v1031
        %v1284 = vpack.c.b16 %v1039, %v1032
        %v1285 = vpack.c.b16 %v1047, %v1040
        %v1286 = vpack.c.b16 %v1048, %v1041
        %v1287 = vpack.c.b16 %v1049, %v1042
        %v1288 = vpack.c.b16 %v1050, %v1043
        %v1289 = vpack.c.b16 %v1051, %v1044
        %v1290 = vpack.c.b16 %v1052, %v1045
        %v1291 = vpack.c.b16 %v1053, %v1046
        %v1292 = vpack.c.b16 %v1061, %v1054
        %v1293 = vpack.c.b16 %v1062, %v1055
        %v1294 = vpack.c.b16 %v1063, %v1056
        %v1295 = vpack.c.b16 %v1064, %v1057
        %v1296 = vpack.c.b16 %v1065, %v1058
        %v1297 = vpack.c.b16 %v1066, %v1059
        %v1298 = vpack.c.b16 %v1067, %v1060
        %v1299 = vpack.c.b16 %v1075, %v1068
        %v1300 = vpack.c.b16 %v1076, %v1069
        %v1301 = vpack.c.b16 %v1077, %v1070
        %v1302 = vpack.c.b16 %v1078, %v1071
        %v1303 = vpack.c.b16 %v1079, %v1072
        %v1304 = vpack.c.b16 %v1080, %v1073
        %v1305 = vpack.c.b16 %v1081, %v1074
        %v1306 = vpack.c.b16 %v1089, %v1082
        %v1307 = vpack.c.b16 %v1090, %v1083
        %v1308 = vpack.c.b16 %v1091, %v1084
        %v1309 = vpack.c.b16 %v1092, %v1085
        %v1310 = vpack.c.b16 %v1093, %v1086
        %v1311 = vpack.c.b16 %v1094, %v1087
        %v1312 = vpack.c.b16 %v1095, %v1088
        %v1313 = vpack.c.b16 %v1103, %v1096
        %v1314 = vpack.c.b16 %v1104, %v1097
        %v1315 = vpack.c.b16 %v1105, %v1098
        %v1316 = vpack.c.b16 %v1106, %v1099
        %v1317 = vpack.c.b16 %v1107, %v1100
        %v1318 = vpack.c.b16 %v1108, %v1101
        %v1319 = vpack.c.b16 %v1109, %v1102
        %v1320 = vpack.c.b16 %v1117, %v1110
        %v1321 = vpack.c.b16 %v1118, %v1111
        %v1322 = vpack.c.b16 %v1119, %v1112
        %v1323 = vpack.c.b16 %v1120, %v1113
        %v1324 = vpack.c.b16 %v1121, %v1114
        %v1325 = vpack.c.b16 %v1122, %v1115
        %v1326 = vpack.c.b16 %v1123, %v1116
        %v1327 = vpack.c.b16 %v1131, %v1124
        %v1328 = vpack.c.b16 %v1132, %v1125
        %v1329 = vpack.c.b16 %v1133, %v1126
        %v1330 = vpack.c.b16 %v1134, %v1127
        %v1331 = vpack.c.b16 %v1135, %v1128
        %v1332 = vpack.c.b16 %v1136, %v1129
        %v1333 = vpack.c.b16 %v1137, %v1130
        %v1334 = vpack.c.b16 %v1145, %v1138
        %v1335 = vpack.c.b16 %v1146, %v1139
        %v1336 = vpack.c.b16 %v1147, %v1140
        %v1337 = vpack.c.b16 %v1148, %v1141
        %v1338 = vpack.c.b16 %v1149, %v1142
        %v1339 = vpack.c.b16 %v1150, %v1143
        %v1340 = vpack.c.b16 %v1151, %v1144
        %v1341 = vpack.c.b16 %v1159, %v1152
        %v1342 = vpack.c.b16 %v1160, %v1153
        %v1343 = vpack.c.b16 %v1161, %v1154
        %v1344 = vpack.c.b16 %v1162, %v1155
        %v1345 = vpack.c.b16 %v1163, %v1156
        %v1346 = vpack.c.b16 %v1164, %v1157
        %v1347 = vpack.c.b16 %v1165, %v1158
        %v1348 = vpack.c.b16 %v1173, %v1166
        %v1349 = vpack.c.b16 %v1174, %v1167
        %v1350 = vpack.c.b16 %v1175, %v1168
        %v1351 = vpack.c.b16 %v1176, %v1169
        %v1352 = vpack.c.b16 %v1177, %v1170
        %v1353 = vpack.c.b16 %v1178, %v1171
        %v1354 = vpack.c.b16 %v1179, %v1172
        %v1355 = vpack.c.b16 %v1187, %v1180
        %v1356 = vpack.c.b16 %v1188, %v1181
        %v1357 = vpack.c.b16 %v1189, %v1182
        %v1358 = vpack.c.b16 %v1190, %v1183
        %v1359 = vpack.c.b16 %v1191, %v1184
        %v1360 = vpack.c.b16 %v1192, %v1185
        %v1361 = vpack.c.b16 %v1193, %v1186
        %v1362 = vpack.c.b16 %v1201, %v1194
        %v1363 = vpack.c.b16 %v1202, %v1195
        %v1364 = vpack.c.b16 %v1203, %v1196
        %v1365 = vpack.c.b16 %v1204, %v1197
        %v1366 = vpack.c.b16 %v1205, %v1198
        %v1367 = vpack.c.b16 %v1206, %v1199
        %v1368 = vpack.c.b16 %v1207, %v1200
        %v1369 = vpack.c.b16 %v1215, %v1208
        %v1370 = vpack.c.b16 %v1216, %v1209
        %v1371 = vpack.c.b16 %v1217, %v1210
        %v1372 = vpack.c.b16 %v1218, %v1211
        %v1373 = vpack.c.b16 %v1219, %v1212
        %v1374 = vpack.c.b16 %v1220, %v1213
        %v1375 = vpack.c.b16 %v1221, %v1214
        %v1376 = vpack.c.b16 %v1229, %v1222
        %v1377 = vpack.c.b16 %v1230, %v1223
        %v1378 = vpack.c.b16 %v1231, %v1224
        %v1379 = vpack.c.b16 %v1232, %v1225
        %v1380 = vpack.c.b16 %v1233, %v1226
        %v1381 = vpack.c.b16 %v1234, %v1227
        %v1382 = vpack.c.b16 %v1235, %v1228
        %vm1530 = vcmask 654336
        %v1532 = vsel %vm1530, %v671, 0
        %v1535 = vsel %vm1530, %v674, 0
        %v1538 = vsel %vm1530, %v677, 0
        %v1541 = vsel %vm1530, %v680, 0
        %v1544 = vsel %vm1530, %v683, 0
        %v1547 = vsel %vm1530, %v686, 0
        %v1550 = vsel %vm1530, %v689, 0
        %v1553 = vsel %vm1530, %v692, 0
        %v1556 = vsel %vm1530, %v695, 0
        %v1559 = vsel %vm1530, %v698, 0
        %v1562 = vsel %vm1530, %v701, 0
        %v1565 = vsel %vm1530, %v704, 0
        %v1568 = vsel %vm1530, %v707, 0
        %v1571 = vsel %vm1530, %v710, 0
        %v1574 = vsel %vm1530, %v713, 0
        %v1577 = vsel %vm1530, %v716, 0
        %v1580 = vsel %vm1530, %v719, 0
        %v1583 = vsel %vm1530, %v722, 0
        %v1586 = vsel %vm1530, %v725, 0
        %v1589 = vsel %vm1530, %v728, 0
        %v1592 = vsel %vm1530, %v731, 0
        %1594 = vmatpush.bf16.msra.mxu0 %v1285
        %1595 = vmatpush.bf16.msra.mxu0 %v1278
        %1596 = vmatpush.bf16.msra.mxu0 %v1271
        %1597 = vmatpush.bf16.msra.mxu0 %v1264
        %1598 = vmatpush.bf16.msra.mxu0 %v1257
        %1599 = vmatpush.bf16.msra.mxu0 %v1250
        %1600 = vmatpush.bf16.msra.mxu0 %v1243
        %1601 = vmatpush.bf16.msra.mxu0 %v1236
        %1602 = vmatmul.bf16.gmra.mxu0 %v669
        %v1603 = vpop.f32.mrf.mxu0
        %v1604 = vadd.f32 0.0, %v1603
        %v1605 = vpop.f32.mrf.mxu0
        %v1606 = vadd.f32 0.0, %v1605
        %1607 = vmatmul.bf16.gmra.mxu0 %v672
        %v1608 = vpop.f32.mrf.mxu0
        %v1609 = vadd.f32 0.0, %v1608
        %v1610 = vpop.f32.mrf.mxu0
        %v1611 = vadd.f32 0.0, %v1610
        %1612 = vmatmul.bf16.gmra.mxu0 %v675
        %v1613 = vpop.f32.mrf.mxu0
        %v1614 = vadd.f32 0.0, %v1613
        %v1615 = vpop.f32.mrf.mxu0
        %v1616 = vadd.f32 0.0, %v1615
        %1617 = vmatmul.bf16.gmra.mxu0 %v678
        %v1618 = vpop.f32.mrf.mxu0
        %v1619 = vadd.f32 0.0, %v1618
        %v1620 = vpop.f32.mrf.mxu0
        %v1621 = vadd.f32 0.0, %v1620
        %1622 = vmatmul.bf16.gmra.mxu0 %v681
        %v1623 = vpop.f32.mrf.mxu0
        %v1624 = vadd.f32 0.0, %v1623
        %v1625 = vpop.f32.mrf.mxu0
        %v1626 = vadd.f32 0.0, %v1625
        %1627 = vmatmul.bf16.gmra.mxu0 %v684
        %v1628 = vpop.f32.mrf.mxu0
        %v1629 = vadd.f32 0.0, %v1628
        %v1630 = vpop.f32.mrf.mxu0
        %v1631 = vadd.f32 0.0, %v1630
        %1632 = vmatmul.bf16.gmra.mxu0 %v687
        %v1633 = vpop.f32.mrf.mxu0
        %v1634 = vadd.f32 0.0, %v1633
        %v1635 = vpop.f32.mrf.mxu0
        %v1636 = vadd.f32 0.0, %v1635
        %1637 = vmatmul.bf16.gmra.mxu0 %v690
        %v1638 = vpop.f32.mrf.mxu0
        %v1639 = vadd.f32 0.0, %v1638
        %v1640 = vpop.f32.mrf.mxu0
        %v1641 = vadd.f32 0.0, %v1640
        %1642 = vmatmul.bf16.gmra.mxu0 %v693
        %v1643 = vpop.f32.mrf.mxu0
        %v1644 = vadd.f32 0.0, %v1643
        %v1645 = vpop.f32.mrf.mxu0
        %v1646 = vadd.f32 0.0, %v1645
        %1647 = vmatmul.bf16.gmra.mxu0 %v696
        %v1648 = vpop.f32.mrf.mxu0
        %v1649 = vadd.f32 0.0, %v1648
        %v1650 = vpop.f32.mrf.mxu0
        %v1651 = vadd.f32 0.0, %v1650
        %1652 = vmatmul.bf16.gmra.mxu0 %v699
        %v1653 = vpop.f32.mrf.mxu0
        %v1654 = vadd.f32 0.0, %v1653
        %v1655 = vpop.f32.mrf.mxu0
        %v1656 = vadd.f32 0.0, %v1655
        %1657 = vmatmul.bf16.gmra.mxu0 %v702
        %v1658 = vpop.f32.mrf.mxu0
        %v1659 = vadd.f32 0.0, %v1658
        %v1660 = vpop.f32.mrf.mxu0
        %v1661 = vadd.f32 0.0, %v1660
        %1662 = vmatmul.bf16.gmra.mxu0 %v705
        %v1663 = vpop.f32.mrf.mxu0
        %v1664 = vadd.f32 0.0, %v1663
        %v1665 = vpop.f32.mrf.mxu0
        %v1666 = vadd.f32 0.0, %v1665
        %1667 = vmatmul.bf16.gmra.mxu0 %v708
        %v1668 = vpop.f32.mrf.mxu0
        %v1669 = vadd.f32 0.0, %v1668
        %v1670 = vpop.f32.mrf.mxu0
        %v1671 = vadd.f32 0.0, %v1670
        %1672 = vmatmul.bf16.gmra.mxu0 %v711
        %v1673 = vpop.f32.mrf.mxu0
        %v1674 = vadd.f32 0.0, %v1673
        %v1675 = vpop.f32.mrf.mxu0
        %v1676 = vadd.f32 0.0, %v1675
        %1677 = vmatmul.bf16.gmra.mxu0 %v714
        %v1678 = vpop.f32.mrf.mxu0
        %v1679 = vadd.f32 0.0, %v1678
        %v1680 = vpop.f32.mrf.mxu0
        %v1681 = vadd.f32 0.0, %v1680
        %1682 = vmatmul.bf16.gmra.mxu0 %v717
        %v1683 = vpop.f32.mrf.mxu0
        %v1684 = vadd.f32 0.0, %v1683
        %v1685 = vpop.f32.mrf.mxu0
        %v1686 = vadd.f32 0.0, %v1685
        %1687 = vmatmul.bf16.gmra.mxu0 %v720
        %v1688 = vpop.f32.mrf.mxu0
        %v1689 = vadd.f32 0.0, %v1688
        %v1690 = vpop.f32.mrf.mxu0
        %v1691 = vadd.f32 0.0, %v1690
        %1692 = vmatmul.bf16.gmra.mxu0 %v723
        %v1693 = vpop.f32.mrf.mxu0
        %v1694 = vadd.f32 0.0, %v1693
        %v1695 = vpop.f32.mrf.mxu0
        %v1696 = vadd.f32 0.0, %v1695
        %1697 = vmatmul.bf16.gmra.mxu0 %v726
        %v1698 = vpop.f32.mrf.mxu0
        %v1699 = vadd.f32 0.0, %v1698
        %v1700 = vpop.f32.mrf.mxu0
        %v1701 = vadd.f32 0.0, %v1700
        %1702 = vmatmul.bf16.gmra.mxu0 %v729
        %v1703 = vpop.f32.mrf.mxu0
        %v1704 = vadd.f32 0.0, %v1703
        %v1705 = vpop.f32.mrf.mxu0
        %v1706 = vadd.f32 0.0, %v1705
        %1707 = vdwg.mxu0
        %1708 = vmatpush.bf16.msra.mxu0 %v1341
        %1709 = vmatpush.bf16.msra.mxu0 %v1334
        %1710 = vmatpush.bf16.msra.mxu0 %v1327
        %1711 = vmatpush.bf16.msra.mxu0 %v1320
        %1712 = vmatpush.bf16.msra.mxu0 %v1313
        %1713 = vmatpush.bf16.msra.mxu0 %v1306
        %1714 = vmatpush.bf16.msra.mxu0 %v1299
        %1715 = vmatpush.bf16.msra.mxu0 %v1292
        %1716 = vmatmul.bf16.gmra.mxu0 %v670
        %v1717 = vpop.f32.mrf.mxu0
        %v1718 = vadd.f32 %v1604, %v1717
        %v1719 = vpop.f32.mrf.mxu0
        %v1720 = vadd.f32 %v1606, %v1719
        %1721 = vmatmul.bf16.gmra.mxu0 %v673
        %v1722 = vpop.f32.mrf.mxu0
        %v1723 = vadd.f32 %v1609, %v1722
        %v1724 = vpop.f32.mrf.mxu0
        %v1725 = vadd.f32 %v1611, %v1724
        %1726 = vmatmul.bf16.gmra.mxu0 %v676
        %v1727 = vpop.f32.mrf.mxu0
        %v1728 = vadd.f32 %v1614, %v1727
        %v1729 = vpop.f32.mrf.mxu0
        %v1730 = vadd.f32 %v1616, %v1729
        %1731 = vmatmul.bf16.gmra.mxu0 %v679
        %v1732 = vpop.f32.mrf.mxu0
        %v1733 = vadd.f32 %v1619, %v1732
        %v1734 = vpop.f32.mrf.mxu0
        %v1735 = vadd.f32 %v1621, %v1734
        %1736 = vmatmul.bf16.gmra.mxu0 %v682
        %v1737 = vpop.f32.mrf.mxu0
        %v1738 = vadd.f32 %v1624, %v1737
        %v1739 = vpop.f32.mrf.mxu0
        %v1740 = vadd.f32 %v1626, %v1739
        %1741 = vmatmul.bf16.gmra.mxu0 %v685
        %v1742 = vpop.f32.mrf.mxu0
        %v1743 = vadd.f32 %v1629, %v1742
        %v1744 = vpop.f32.mrf.mxu0
        %v1745 = vadd.f32 %v1631, %v1744
        %1746 = vmatmul.bf16.gmra.mxu0 %v688
        %v1747 = vpop.f32.mrf.mxu0
        %v1748 = vadd.f32 %v1634, %v1747
        %v1749 = vpop.f32.mrf.mxu0
        %v1750 = vadd.f32 %v1636, %v1749
        %1751 = vmatmul.bf16.gmra.mxu0 %v691
        %v1752 = vpop.f32.mrf.mxu0
        %v1753 = vadd.f32 %v1639, %v1752
        %v1754 = vpop.f32.mrf.mxu0
        %v1755 = vadd.f32 %v1641, %v1754
        %1756 = vmatmul.bf16.gmra.mxu0 %v694
        %v1757 = vpop.f32.mrf.mxu0
        %v1758 = vadd.f32 %v1644, %v1757
        %v1759 = vpop.f32.mrf.mxu0
        %v1760 = vadd.f32 %v1646, %v1759
        %1761 = vmatmul.bf16.gmra.mxu0 %v697
        %v1762 = vpop.f32.mrf.mxu0
        %v1763 = vadd.f32 %v1649, %v1762
        %v1764 = vpop.f32.mrf.mxu0
        %v1765 = vadd.f32 %v1651, %v1764
        %1766 = vmatmul.bf16.gmra.mxu0 %v700
        %v1767 = vpop.f32.mrf.mxu0
        %v1768 = vadd.f32 %v1654, %v1767
        %v1769 = vpop.f32.mrf.mxu0
        %v1770 = vadd.f32 %v1656, %v1769
        %1771 = vmatmul.bf16.gmra.mxu0 %v703
        %v1772 = vpop.f32.mrf.mxu0
        %v1773 = vadd.f32 %v1659, %v1772
        %v1774 = vpop.f32.mrf.mxu0
        %v1775 = vadd.f32 %v1661, %v1774
        %1776 = vmatmul.bf16.gmra.mxu0 %v706
        %v1777 = vpop.f32.mrf.mxu0
        %v1778 = vadd.f32 %v1664, %v1777
        %v1779 = vpop.f32.mrf.mxu0
        %v1780 = vadd.f32 %v1666, %v1779
        %1781 = vmatmul.bf16.gmra.mxu0 %v709
        %v1782 = vpop.f32.mrf.mxu0
        %v1783 = vadd.f32 %v1669, %v1782
        %v1784 = vpop.f32.mrf.mxu0
        %v1785 = vadd.f32 %v1671, %v1784
        %1786 = vmatmul.bf16.gmra.mxu0 %v712
        %v1787 = vpop.f32.mrf.mxu0
        %v1788 = vadd.f32 %v1674, %v1787
        %v1789 = vpop.f32.mrf.mxu0
        %v1790 = vadd.f32 %v1676, %v1789
        %1791 = vmatmul.bf16.gmra.mxu0 %v715
        %v1792 = vpop.f32.mrf.mxu0
        %v1793 = vadd.f32 %v1679, %v1792
        %v1794 = vpop.f32.mrf.mxu0
        %v1795 = vadd.f32 %v1681, %v1794
        %1796 = vmatmul.bf16.gmra.mxu0 %v718
        %v1797 = vpop.f32.mrf.mxu0
        %v1798 = vadd.f32 %v1684, %v1797
        %v1799 = vpop.f32.mrf.mxu0
        %v1800 = vadd.f32 %v1686, %v1799
        %1801 = vmatmul.bf16.gmra.mxu0 %v721
        %v1802 = vpop.f32.mrf.mxu0
        %v1803 = vadd.f32 %v1689, %v1802
        %v1804 = vpop.f32.mrf.mxu0
        %v1805 = vadd.f32 %v1691, %v1804
        %1806 = vmatmul.bf16.gmra.mxu0 %v724
        %v1807 = vpop.f32.mrf.mxu0
        %v1808 = vadd.f32 %v1694, %v1807
        %v1809 = vpop.f32.mrf.mxu0
        %v1810 = vadd.f32 %v1696, %v1809
        %1811 = vmatmul.bf16.gmra.mxu0 %v727
        %v1812 = vpop.f32.mrf.mxu0
        %v1813 = vadd.f32 %v1699, %v1812
        %v1814 = vpop.f32.mrf.mxu0
        %v1815 = vadd.f32 %v1701, %v1814
        %1816 = vmatmul.bf16.gmra.mxu0 %v730
        %v1817 = vpop.f32.mrf.mxu0
        %v1818 = vadd.f32 %v1704, %v1817
        %v1819 = vpop.f32.mrf.mxu0
        %v1820 = vadd.f32 %v1706, %v1819
        %1821 = vdwg.mxu0
        %1822 = vmatpush.bf16.msra.mxu0 0
        %1823 = vmatpush.bf16.msra.mxu0 0
        %1824 = vmatpush.bf16.msra.mxu0 0
        %1825 = vmatpush.bf16.msra.mxu0 %v1376
        %1826 = vmatpush.bf16.msra.mxu0 %v1369
        %1827 = vmatpush.bf16.msra.mxu0 %v1362
        %1828 = vmatpush.bf16.msra.mxu0 %v1355
        %1829 = vmatpush.bf16.msra.mxu0 %v1348
        %1830 = vmatmul.bf16.gmra.mxu0 %v1532
        %v1831 = vpop.f32.mrf.mxu0
        %v1832 = vadd.f32 %v1718, %v1831
        %v1833 = vpop.f32.mrf.mxu0
        %v1834 = vadd.f32 %v1720, %v1833
        %1835 = vmatmul.bf16.gmra.mxu0 %v1535
        %v1836 = vpop.f32.mrf.mxu0
        %v1837 = vadd.f32 %v1723, %v1836
        %v1838 = vpop.f32.mrf.mxu0
        %v1839 = vadd.f32 %v1725, %v1838
        %1840 = vmatmul.bf16.gmra.mxu0 %v1538
        %v1841 = vpop.f32.mrf.mxu0
        %v1842 = vadd.f32 %v1728, %v1841
        %v1843 = vpop.f32.mrf.mxu0
        %v1844 = vadd.f32 %v1730, %v1843
        %1845 = vmatmul.bf16.gmra.mxu0 %v1541
        %v1846 = vpop.f32.mrf.mxu0
        %v1847 = vadd.f32 %v1733, %v1846
        %v1848 = vpop.f32.mrf.mxu0
        %v1849 = vadd.f32 %v1735, %v1848
        %1850 = vmatmul.bf16.gmra.mxu0 %v1544
        %v1851 = vpop.f32.mrf.mxu0
        %v1852 = vadd.f32 %v1738, %v1851
        %v1853 = vpop.f32.mrf.mxu0
        %v1854 = vadd.f32 %v1740, %v1853
        %1855 = vmatmul.bf16.gmra.mxu0 %v1547
        %v1856 = vpop.f32.mrf.mxu0
        %v1857 = vadd.f32 %v1743, %v1856
        %v1858 = vpop.f32.mrf.mxu0
        %v1859 = vadd.f32 %v1745, %v1858
        %1860 = vmatmul.bf16.gmra.mxu0 %v1550
        %v1861 = vpop.f32.mrf.mxu0
        %v1862 = vadd.f32 %v1748, %v1861
        %v1863 = vpop.f32.mrf.mxu0
        %v1864 = vadd.f32 %v1750, %v1863
        %1865 = vmatmul.bf16.gmra.mxu0 %v1553
        %v1866 = vpop.f32.mrf.mxu0
        %v1867 = vadd.f32 %v1753, %v1866
        %v1868 = vpop.f32.mrf.mxu0
        %v1869 = vadd.f32 %v1755, %v1868
        %1870 = vmatmul.bf16.gmra.mxu0 %v1556
        %v1871 = vpop.f32.mrf.mxu0
        %v1872 = vadd.f32 %v1758, %v1871
        %v1873 = vpop.f32.mrf.mxu0
        %v1874 = vadd.f32 %v1760, %v1873
        %1875 = vmatmul.bf16.gmra.mxu0 %v1559
        %v1876 = vpop.f32.mrf.mxu0
        %v1877 = vadd.f32 %v1763, %v1876
        %v1878 = vpop.f32.mrf.mxu0
        %v1879 = vadd.f32 %v1765, %v1878
        %1880 = vmatmul.bf16.gmra.mxu0 %v1562
        %v1881 = vpop.f32.mrf.mxu0
        %v1882 = vadd.f32 %v1768, %v1881
        %v1883 = vpop.f32.mrf.mxu0
        %v1884 = vadd.f32 %v1770, %v1883
        %1885 = vmatmul.bf16.gmra.mxu0 %v1565
        %v1886 = vpop.f32.mrf.mxu0
        %v1887 = vadd.f32 %v1773, %v1886
        %v1888 = vpop.f32.mrf.mxu0
        %v1889 = vadd.f32 %v1775, %v1888
        %1890 = vmatmul.bf16.gmra.mxu0 %v1568
        %v1891 = vpop.f32.mrf.mxu0
        %v1892 = vadd.f32 %v1778, %v1891
        %v1893 = vpop.f32.mrf.mxu0
        %v1894 = vadd.f32 %v1780, %v1893
        %1895 = vmatmul.bf16.gmra.mxu0 %v1571
        %v1896 = vpop.f32.mrf.mxu0
        %v1897 = vadd.f32 %v1783, %v1896
        %v1898 = vpop.f32.mrf.mxu0
        %v1899 = vadd.f32 %v1785, %v1898
        %1900 = vmatmul.bf16.gmra.mxu0 %v1574
        %v1901 = vpop.f32.mrf.mxu0
        %v1902 = vadd.f32 %v1788, %v1901
        %v1903 = vpop.f32.mrf.mxu0
        %v1904 = vadd.f32 %v1790, %v1903
        %1905 = vmatmul.bf16.gmra.mxu0 %v1577
        %v1906 = vpop.f32.mrf.mxu0
        %v1907 = vadd.f32 %v1793, %v1906
        %v1908 = vpop.f32.mrf.mxu0
        %v1909 = vadd.f32 %v1795, %v1908
        %1910 = vmatmul.bf16.gmra.mxu0 %v1580
        %v1911 = vpop.f32.mrf.mxu0
        %v1912 = vadd.f32 %v1798, %v1911
        %v1913 = vpop.f32.mrf.mxu0
        %v1914 = vadd.f32 %v1800, %v1913
        %1915 = vmatmul.bf16.gmra.mxu0 %v1583
        %v1916 = vpop.f32.mrf.mxu0
        %v1917 = vadd.f32 %v1803, %v1916
        %v1918 = vpop.f32.mrf.mxu0
        %v1919 = vadd.f32 %v1805, %v1918
        %1920 = vmatmul.bf16.gmra.mxu0 %v1586
        %v1921 = vpop.f32.mrf.mxu0
        %v1922 = vadd.f32 %v1808, %v1921
        %v1923 = vpop.f32.mrf.mxu0
        %v1924 = vadd.f32 %v1810, %v1923
        %1925 = vmatmul.bf16.gmra.mxu0 %v1589
        %v1926 = vpop.f32.mrf.mxu0
        %v1927 = vadd.f32 %v1813, %v1926
        %v1928 = vpop.f32.mrf.mxu0
        %v1929 = vadd.f32 %v1815, %v1928
        %1930 = vmatmul.bf16.gmra.mxu0 %v1592
        %v1931 = vpop.f32.mrf.mxu0
        %v1932 = vadd.f32 %v1818, %v1931
        %v1933 = vpop.f32.mrf.mxu0
        %v1934 = vadd.f32 %v1820, %v1933
        %1935 = vdwg.mxu0
        %1936 = vmatpush.bf16.msra.mxu0 %v1286
        %1937 = vmatpush.bf16.msra.mxu0 %v1279
        %1938 = vmatpush.bf16.msra.mxu0 %v1272
        %1939 = vmatpush.bf16.msra.mxu0 %v1265
        %1940 = vmatpush.bf16.msra.mxu0 %v1258
        %1941 = vmatpush.bf16.msra.mxu0 %v1251
        %1942 = vmatpush.bf16.msra.mxu0 %v1244
        %1943 = vmatpush.bf16.msra.mxu0 %v1237
        %1944 = vmatmul.bf16.gmra.mxu0 %v669
        %v1945 = vpop.f32.mrf.mxu0
        %v1946 = vadd.f32 0.0, %v1945
        %v1947 = vpop.f32.mrf.mxu0
        %v1948 = vadd.f32 0.0, %v1947
        %1949 = vmatmul.bf16.gmra.mxu0 %v672
        %v1950 = vpop.f32.mrf.mxu0
        %v1951 = vadd.f32 0.0, %v1950
        %v1952 = vpop.f32.mrf.mxu0
        %v1953 = vadd.f32 0.0, %v1952
        %1954 = vmatmul.bf16.gmra.mxu0 %v675
        %v1955 = vpop.f32.mrf.mxu0
        %v1956 = vadd.f32 0.0, %v1955
        %v1957 = vpop.f32.mrf.mxu0
        %v1958 = vadd.f32 0.0, %v1957
        %1959 = vmatmul.bf16.gmra.mxu0 %v678
        %v1960 = vpop.f32.mrf.mxu0
        %v1961 = vadd.f32 0.0, %v1960
        %v1962 = vpop.f32.mrf.mxu0
        %v1963 = vadd.f32 0.0, %v1962
        %1964 = vmatmul.bf16.gmra.mxu0 %v681
        %v1965 = vpop.f32.mrf.mxu0
        %v1966 = vadd.f32 0.0, %v1965
        %v1967 = vpop.f32.mrf.mxu0
        %v1968 = vadd.f32 0.0, %v1967
        %1969 = vmatmul.bf16.gmra.mxu0 %v684
        %v1970 = vpop.f32.mrf.mxu0
        %v1971 = vadd.f32 0.0, %v1970
        %v1972 = vpop.f32.mrf.mxu0
        %v1973 = vadd.f32 0.0, %v1972
        %1974 = vmatmul.bf16.gmra.mxu0 %v687
        %v1975 = vpop.f32.mrf.mxu0
        %v1976 = vadd.f32 0.0, %v1975
        %v1977 = vpop.f32.mrf.mxu0
        %v1978 = vadd.f32 0.0, %v1977
        %1979 = vmatmul.bf16.gmra.mxu0 %v690
        %v1980 = vpop.f32.mrf.mxu0
        %v1981 = vadd.f32 0.0, %v1980
        %v1982 = vpop.f32.mrf.mxu0
        %v1983 = vadd.f32 0.0, %v1982
        %1984 = vmatmul.bf16.gmra.mxu0 %v693
        %v1985 = vpop.f32.mrf.mxu0
        %v1986 = vadd.f32 0.0, %v1985
        %v1987 = vpop.f32.mrf.mxu0
        %v1988 = vadd.f32 0.0, %v1987
        %1989 = vmatmul.bf16.gmra.mxu0 %v696
        %v1990 = vpop.f32.mrf.mxu0
        %v1991 = vadd.f32 0.0, %v1990
        %v1992 = vpop.f32.mrf.mxu0
        %v1993 = vadd.f32 0.0, %v1992
        %1994 = vmatmul.bf16.gmra.mxu0 %v699
        %v1995 = vpop.f32.mrf.mxu0
        %v1996 = vadd.f32 0.0, %v1995
        %v1997 = vpop.f32.mrf.mxu0
        %v1998 = vadd.f32 0.0, %v1997
        %1999 = vmatmul.bf16.gmra.mxu0 %v702
        %v2000 = vpop.f32.mrf.mxu0
        %v2001 = vadd.f32 0.0, %v2000
        %v2002 = vpop.f32.mrf.mxu0
        %v2003 = vadd.f32 0.0, %v2002
        %2004 = vmatmul.bf16.gmra.mxu0 %v705
        %v2005 = vpop.f32.mrf.mxu0
        %v2006 = vadd.f32 0.0, %v2005
        %v2007 = vpop.f32.mrf.mxu0
        %v2008 = vadd.f32 0.0, %v2007
        %2009 = vmatmul.bf16.gmra.mxu0 %v708
        %v2010 = vpop.f32.mrf.mxu0
        %v2011 = vadd.f32 0.0, %v2010
        %v2012 = vpop.f32.mrf.mxu0
        %v2013 = vadd.f32 0.0, %v2012
        %2014 = vmatmul.bf16.gmra.mxu0 %v711
        %v2015 = vpop.f32.mrf.mxu0
        %v2016 = vadd.f32 0.0, %v2015
        %v2017 = vpop.f32.mrf.mxu0
        %v2018 = vadd.f32 0.0, %v2017
        %2019 = vmatmul.bf16.gmra.mxu0 %v714
        %v2020 = vpop.f32.mrf.mxu0
        %v2021 = vadd.f32 0.0, %v2020
        %v2022 = vpop.f32.mrf.mxu0
        %v2023 = vadd.f32 0.0, %v2022
        %2024 = vmatmul.bf16.gmra.mxu0 %v717
        %v2025 = vpop.f32.mrf.mxu0
        %v2026 = vadd.f32 0.0, %v2025
        %v2027 = vpop.f32.mrf.mxu0
        %v2028 = vadd.f32 0.0, %v2027
        %2029 = vmatmul.bf16.gmra.mxu0 %v720
        %v2030 = vpop.f32.mrf.mxu0
        %v2031 = vadd.f32 0.0, %v2030
        %v2032 = vpop.f32.mrf.mxu0
        %v2033 = vadd.f32 0.0, %v2032
        %2034 = vmatmul.bf16.gmra.mxu0 %v723
        %v2035 = vpop.f32.mrf.mxu0
        %v2036 = vadd.f32 0.0, %v2035
        %v2037 = vpop.f32.mrf.mxu0
        %v2038 = vadd.f32 0.0, %v2037
        %2039 = vmatmul.bf16.gmra.mxu0 %v726
        %v2040 = vpop.f32.mrf.mxu0
        %v2041 = vadd.f32 0.0, %v2040
        %v2042 = vpop.f32.mrf.mxu0
        %v2043 = vadd.f32 0.0, %v2042
        %2044 = vmatmul.bf16.gmra.mxu0 %v729
        %v2045 = vpop.f32.mrf.mxu0
        %v2046 = vadd.f32 0.0, %v2045
        %v2047 = vpop.f32.mrf.mxu0
        %v2048 = vadd.f32 0.0, %v2047
        %2049 = vdwg.mxu0
        %2050 = vmatpush.bf16.msra.mxu0 %v1342
        %2051 = vmatpush.bf16.msra.mxu0 %v1335
        %2052 = vmatpush.bf16.msra.mxu0 %v1328
        %2053 = vmatpush.bf16.msra.mxu0 %v1321
        %2054 = vmatpush.bf16.msra.mxu0 %v1314
        %2055 = vmatpush.bf16.msra.mxu0 %v1307
        %2056 = vmatpush.bf16.msra.mxu0 %v1300
        %2057 = vmatpush.bf16.msra.mxu0 %v1293
        %2058 = vmatmul.bf16.gmra.mxu0 %v670
        %v2059 = vpop.f32.mrf.mxu0
        %v2060 = vadd.f32 %v1946, %v2059
        %v2061 = vpop.f32.mrf.mxu0
        %v2062 = vadd.f32 %v1948, %v2061
        %2063 = vmatmul.bf16.gmra.mxu0 %v673
        %v2064 = vpop.f32.mrf.mxu0
        %v2065 = vadd.f32 %v1951, %v2064
        %v2066 = vpop.f32.mrf.mxu0
        %v2067 = vadd.f32 %v1953, %v2066
        %2068 = vmatmul.bf16.gmra.mxu0 %v676
        %v2069 = vpop.f32.mrf.mxu0
        %v2070 = vadd.f32 %v1956, %v2069
        %v2071 = vpop.f32.mrf.mxu0
        %v2072 = vadd.f32 %v1958, %v2071
        %2073 = vmatmul.bf16.gmra.mxu0 %v679
        %v2074 = vpop.f32.mrf.mxu0
        %v2075 = vadd.f32 %v1961, %v2074
        %v2076 = vpop.f32.mrf.mxu0
        %v2077 = vadd.f32 %v1963, %v2076
        %2078 = vmatmul.bf16.gmra.mxu0 %v682
        %v2079 = vpop.f32.mrf.mxu0
        %v2080 = vadd.f32 %v1966, %v2079
        %v2081 = vpop.f32.mrf.mxu0
        %v2082 = vadd.f32 %v1968, %v2081
        %2083 = vmatmul.bf16.gmra.mxu0 %v685
        %v2084 = vpop.f32.mrf.mxu0
        %v2085 = vadd.f32 %v1971, %v2084
        %v2086 = vpop.f32.mrf.mxu0
        %v2087 = vadd.f32 %v1973, %v2086
        %2088 = vmatmul.bf16.gmra.mxu0 %v688
        %v2089 = vpop.f32.mrf.mxu0
        %v2090 = vadd.f32 %v1976, %v2089
        %v2091 = vpop.f32.mrf.mxu0
        %v2092 = vadd.f32 %v1978, %v2091
        %2093 = vmatmul.bf16.gmra.mxu0 %v691
        %v2094 = vpop.f32.mrf.mxu0
        %v2095 = vadd.f32 %v1981, %v2094
        %v2096 = vpop.f32.mrf.mxu0
        %v2097 = vadd.f32 %v1983, %v2096
        %2098 = vmatmul.bf16.gmra.mxu0 %v694
        %v2099 = vpop.f32.mrf.mxu0
        %v2100 = vadd.f32 %v1986, %v2099
        %v2101 = vpop.f32.mrf.mxu0
        %v2102 = vadd.f32 %v1988, %v2101
        %2103 = vmatmul.bf16.gmra.mxu0 %v697
        %v2104 = vpop.f32.mrf.mxu0
        %v2105 = vadd.f32 %v1991, %v2104
        %v2106 = vpop.f32.mrf.mxu0
        %v2107 = vadd.f32 %v1993, %v2106
        %2108 = vmatmul.bf16.gmra.mxu0 %v700
        %v2109 = vpop.f32.mrf.mxu0
        %v2110 = vadd.f32 %v1996, %v2109
        %v2111 = vpop.f32.mrf.mxu0
        %v2112 = vadd.f32 %v1998, %v2111
        %2113 = vmatmul.bf16.gmra.mxu0 %v703
        %v2114 = vpop.f32.mrf.mxu0
        %v2115 = vadd.f32 %v2001, %v2114
        %v2116 = vpop.f32.mrf.mxu0
        %v2117 = vadd.f32 %v2003, %v2116
        %2118 = vmatmul.bf16.gmra.mxu0 %v706
        %v2119 = vpop.f32.mrf.mxu0
        %v2120 = vadd.f32 %v2006, %v2119
        %v2121 = vpop.f32.mrf.mxu0
        %v2122 = vadd.f32 %v2008, %v2121
        %2123 = vmatmul.bf16.gmra.mxu0 %v709
        %v2124 = vpop.f32.mrf.mxu0
        %v2125 = vadd.f32 %v2011, %v2124
        %v2126 = vpop.f32.mrf.mxu0
        %v2127 = vadd.f32 %v2013, %v2126
        %2128 = vmatmul.bf16.gmra.mxu0 %v712
        %v2129 = vpop.f32.mrf.mxu0
        %v2130 = vadd.f32 %v2016, %v2129
        %v2131 = vpop.f32.mrf.mxu0
        %v2132 = vadd.f32 %v2018, %v2131
        %2133 = vmatmul.bf16.gmra.mxu0 %v715
        %v2134 = vpop.f32.mrf.mxu0
        %v2135 = vadd.f32 %v2021, %v2134
        %v2136 = vpop.f32.mrf.mxu0
        %v2137 = vadd.f32 %v2023, %v2136
        %2138 = vmatmul.bf16.gmra.mxu0 %v718
        %v2139 = vpop.f32.mrf.mxu0
        %v2140 = vadd.f32 %v2026, %v2139
        %v2141 = vpop.f32.mrf.mxu0
        %v2142 = vadd.f32 %v2028, %v2141
        %2143 = vmatmul.bf16.gmra.mxu0 %v721
        %v2144 = vpop.f32.mrf.mxu0
        %v2145 = vadd.f32 %v2031, %v2144
        %v2146 = vpop.f32.mrf.mxu0
        %v2147 = vadd.f32 %v2033, %v2146
        %2148 = vmatmul.bf16.gmra.mxu0 %v724
        %v2149 = vpop.f32.mrf.mxu0
        %v2150 = vadd.f32 %v2036, %v2149
        %v2151 = vpop.f32.mrf.mxu0
        %v2152 = vadd.f32 %v2038, %v2151
        %2153 = vmatmul.bf16.gmra.mxu0 %v727
        %v2154 = vpop.f32.mrf.mxu0
        %v2155 = vadd.f32 %v2041, %v2154
        %v2156 = vpop.f32.mrf.mxu0
        %v2157 = vadd.f32 %v2043, %v2156
        %2158 = vmatmul.bf16.gmra.mxu0 %v730
        %v2159 = vpop.f32.mrf.mxu0
        %v2160 = vadd.f32 %v2046, %v2159
        %v2161 = vpop.f32.mrf.mxu0
        %v2162 = vadd.f32 %v2048, %v2161
        %2163 = vdwg.mxu0
        %2164 = vmatpush.bf16.msra.mxu0 0
        %2165 = vmatpush.bf16.msra.mxu0 0
        %2166 = vmatpush.bf16.msra.mxu0 0
        %2167 = vmatpush.bf16.msra.mxu0 %v1377
        %2168 = vmatpush.bf16.msra.mxu0 %v1370
        %2169 = vmatpush.bf16.msra.mxu0 %v1363
        %2170 = vmatpush.bf16.msra.mxu0 %v1356
        %2171 = vmatpush.bf16.msra.mxu0 %v1349
        %2172 = vmatmul.bf16.gmra.mxu0 %v1532
        %v2173 = vpop.f32.mrf.mxu0
        %v2174 = vadd.f32 %v2060, %v2173
        %v2175 = vpop.f32.mrf.mxu0
        %v2176 = vadd.f32 %v2062, %v2175
        %2177 = vmatmul.bf16.gmra.mxu0 %v1535
        %v2178 = vpop.f32.mrf.mxu0
        %v2179 = vadd.f32 %v2065, %v2178
        %v2180 = vpop.f32.mrf.mxu0
        %v2181 = vadd.f32 %v2067, %v2180
        %2182 = vmatmul.bf16.gmra.mxu0 %v1538
        %v2183 = vpop.f32.mrf.mxu0
        %v2184 = vadd.f32 %v2070, %v2183
        %v2185 = vpop.f32.mrf.mxu0
        %v2186 = vadd.f32 %v2072, %v2185
        %2187 = vmatmul.bf16.gmra.mxu0 %v1541
        %v2188 = vpop.f32.mrf.mxu0
        %v2189 = vadd.f32 %v2075, %v2188
        %v2190 = vpop.f32.mrf.mxu0
        %v2191 = vadd.f32 %v2077, %v2190
        %2192 = vmatmul.bf16.gmra.mxu0 %v1544
        %v2193 = vpop.f32.mrf.mxu0
        %v2194 = vadd.f32 %v2080, %v2193
        %v2195 = vpop.f32.mrf.mxu0
        %v2196 = vadd.f32 %v2082, %v2195
        %2197 = vmatmul.bf16.gmra.mxu0 %v1547
        %v2198 = vpop.f32.mrf.mxu0
        %v2199 = vadd.f32 %v2085, %v2198
        %v2200 = vpop.f32.mrf.mxu0
        %v2201 = vadd.f32 %v2087, %v2200
        %2202 = vmatmul.bf16.gmra.mxu0 %v1550
        %v2203 = vpop.f32.mrf.mxu0
        %v2204 = vadd.f32 %v2090, %v2203
        %v2205 = vpop.f32.mrf.mxu0
        %v2206 = vadd.f32 %v2092, %v2205
        %2207 = vmatmul.bf16.gmra.mxu0 %v1553
        %v2208 = vpop.f32.mrf.mxu0
        %v2209 = vadd.f32 %v2095, %v2208
        %v2210 = vpop.f32.mrf.mxu0
        %v2211 = vadd.f32 %v2097, %v2210
        %2212 = vmatmul.bf16.gmra.mxu0 %v1556
        %v2213 = vpop.f32.mrf.mxu0
        %v2214 = vadd.f32 %v2100, %v2213
        %v2215 = vpop.f32.mrf.mxu0
        %v2216 = vadd.f32 %v2102, %v2215
        %2217 = vmatmul.bf16.gmra.mxu0 %v1559
        %v2218 = vpop.f32.mrf.mxu0
        %v2219 = vadd.f32 %v2105, %v2218
        %v2220 = vpop.f32.mrf.mxu0
        %v2221 = vadd.f32 %v2107, %v2220
        %2222 = vmatmul.bf16.gmra.mxu0 %v1562
        %v2223 = vpop.f32.mrf.mxu0
        %v2224 = vadd.f32 %v2110, %v2223
        %v2225 = vpop.f32.mrf.mxu0
        %v2226 = vadd.f32 %v2112, %v2225
        %2227 = vmatmul.bf16.gmra.mxu0 %v1565
        %v2228 = vpop.f32.mrf.mxu0
        %v2229 = vadd.f32 %v2115, %v2228
        %v2230 = vpop.f32.mrf.mxu0
        %v2231 = vadd.f32 %v2117, %v2230
        %2232 = vmatmul.bf16.gmra.mxu0 %v1568
        %v2233 = vpop.f32.mrf.mxu0
        %v2234 = vadd.f32 %v2120, %v2233
        %v2235 = vpop.f32.mrf.mxu0
        %v2236 = vadd.f32 %v2122, %v2235
        %2237 = vmatmul.bf16.gmra.mxu0 %v1571
        %v2238 = vpop.f32.mrf.mxu0
        %v2239 = vadd.f32 %v2125, %v2238
        %v2240 = vpop.f32.mrf.mxu0
        %v2241 = vadd.f32 %v2127, %v2240
        %2242 = vmatmul.bf16.gmra.mxu0 %v1574
        %v2243 = vpop.f32.mrf.mxu0
        %v2244 = vadd.f32 %v2130, %v2243
        %v2245 = vpop.f32.mrf.mxu0
        %v2246 = vadd.f32 %v2132, %v2245
        %2247 = vmatmul.bf16.gmra.mxu0 %v1577
        %v2248 = vpop.f32.mrf.mxu0
        %v2249 = vadd.f32 %v2135, %v2248
        %v2250 = vpop.f32.mrf.mxu0
        %v2251 = vadd.f32 %v2137, %v2250
        %2252 = vmatmul.bf16.gmra.mxu0 %v1580
        %v2253 = vpop.f32.mrf.mxu0
        %v2254 = vadd.f32 %v2140, %v2253
        %v2255 = vpop.f32.mrf.mxu0
        %v2256 = vadd.f32 %v2142, %v2255
        %2257 = vmatmul.bf16.gmra.mxu0 %v1583
        %v2258 = vpop.f32.mrf.mxu0
        %v2259 = vadd.f32 %v2145, %v2258
        %v2260 = vpop.f32.mrf.mxu0
        %v2261 = vadd.f32 %v2147, %v2260
        %2262 = vmatmul.bf16.gmra.mxu0 %v1586
        %v2263 = vpop.f32.mrf.mxu0
        %v2264 = vadd.f32 %v2150, %v2263
        %v2265 = vpop.f32.mrf.mxu0
        %v2266 = vadd.f32 %v2152, %v2265
        %2267 = vmatmul.bf16.gmra.mxu0 %v1589
        %v2268 = vpop.f32.mrf.mxu0
        %v2269 = vadd.f32 %v2155, %v2268
        %v2270 = vpop.f32.mrf.mxu0
        %v2271 = vadd.f32 %v2157, %v2270
        %2272 = vmatmul.bf16.gmra.mxu0 %v1592
        %v2273 = vpop.f32.mrf.mxu0
        %v2274 = vadd.f32 %v2160, %v2273
        %v2275 = vpop.f32.mrf.mxu0
        %v2276 = vadd.f32 %v2162, %v2275
        %2277 = vdwg.mxu0
        %2278 = vmatpush.bf16.msra.mxu0 %v1287
        %2279 = vmatpush.bf16.msra.mxu0 %v1280
        %2280 = vmatpush.bf16.msra.mxu0 %v1273
        %2281 = vmatpush.bf16.msra.mxu0 %v1266
        %2282 = vmatpush.bf16.msra.mxu0 %v1259
        %2283 = vmatpush.bf16.msra.mxu0 %v1252
        %2284 = vmatpush.bf16.msra.mxu0 %v1245
        %2285 = vmatpush.bf16.msra.mxu0 %v1238
        %2286 = vmatmul.bf16.gmra.mxu0 %v669
        %v2287 = vpop.f32.mrf.mxu0
        %v2288 = vadd.f32 0.0, %v2287
        %v2289 = vpop.f32.mrf.mxu0
        %v2290 = vadd.f32 0.0, %v2289
        %2291 = vmatmul.bf16.gmra.mxu0 %v672
        %v2292 = vpop.f32.mrf.mxu0
        %v2293 = vadd.f32 0.0, %v2292
        %v2294 = vpop.f32.mrf.mxu0
        %v2295 = vadd.f32 0.0, %v2294
        %2296 = vmatmul.bf16.gmra.mxu0 %v675
        %v2297 = vpop.f32.mrf.mxu0
        %v2298 = vadd.f32 0.0, %v2297
        %v2299 = vpop.f32.mrf.mxu0
        %v2300 = vadd.f32 0.0, %v2299
        %2301 = vmatmul.bf16.gmra.mxu0 %v678
        %v2302 = vpop.f32.mrf.mxu0
        %v2303 = vadd.f32 0.0, %v2302
        %v2304 = vpop.f32.mrf.mxu0
        %v2305 = vadd.f32 0.0, %v2304
        %2306 = vmatmul.bf16.gmra.mxu0 %v681
        %v2307 = vpop.f32.mrf.mxu0
        %v2308 = vadd.f32 0.0, %v2307
        %v2309 = vpop.f32.mrf.mxu0
        %v2310 = vadd.f32 0.0, %v2309
        %2311 = vmatmul.bf16.gmra.mxu0 %v684
        %v2312 = vpop.f32.mrf.mxu0
        %v2313 = vadd.f32 0.0, %v2312
        %v2314 = vpop.f32.mrf.mxu0
        %v2315 = vadd.f32 0.0, %v2314
        %2316 = vmatmul.bf16.gmra.mxu0 %v687
        %v2317 = vpop.f32.mrf.mxu0
        %v2318 = vadd.f32 0.0, %v2317
        %v2319 = vpop.f32.mrf.mxu0
        %v2320 = vadd.f32 0.0, %v2319
        %2321 = vmatmul.bf16.gmra.mxu0 %v690
        %v2322 = vpop.f32.mrf.mxu0
        %v2323 = vadd.f32 0.0, %v2322
        %v2324 = vpop.f32.mrf.mxu0
        %v2325 = vadd.f32 0.0, %v2324
        %2326 = vmatmul.bf16.gmra.mxu0 %v693
        %v2327 = vpop.f32.mrf.mxu0
        %v2328 = vadd.f32 0.0, %v2327
        %v2329 = vpop.f32.mrf.mxu0
        %v2330 = vadd.f32 0.0, %v2329
        %2331 = vmatmul.bf16.gmra.mxu0 %v696
        %v2332 = vpop.f32.mrf.mxu0
        %v2333 = vadd.f32 0.0, %v2332
        %v2334 = vpop.f32.mrf.mxu0
        %v2335 = vadd.f32 0.0, %v2334
        %2336 = vmatmul.bf16.gmra.mxu0 %v699
        %v2337 = vpop.f32.mrf.mxu0
        %v2338 = vadd.f32 0.0, %v2337
        %v2339 = vpop.f32.mrf.mxu0
        %v2340 = vadd.f32 0.0, %v2339
        %2341 = vmatmul.bf16.gmra.mxu0 %v702
        %v2342 = vpop.f32.mrf.mxu0
        %v2343 = vadd.f32 0.0, %v2342
        %v2344 = vpop.f32.mrf.mxu0
        %v2345 = vadd.f32 0.0, %v2344
        %2346 = vmatmul.bf16.gmra.mxu0 %v705
        %v2347 = vpop.f32.mrf.mxu0
        %v2348 = vadd.f32 0.0, %v2347
        %v2349 = vpop.f32.mrf.mxu0
        %v2350 = vadd.f32 0.0, %v2349
        %2351 = vmatmul.bf16.gmra.mxu0 %v708
        %v2352 = vpop.f32.mrf.mxu0
        %v2353 = vadd.f32 0.0, %v2352
        %v2354 = vpop.f32.mrf.mxu0
        %v2355 = vadd.f32 0.0, %v2354
        %2356 = vmatmul.bf16.gmra.mxu0 %v711
        %v2357 = vpop.f32.mrf.mxu0
        %v2358 = vadd.f32 0.0, %v2357
        %v2359 = vpop.f32.mrf.mxu0
        %v2360 = vadd.f32 0.0, %v2359
        %2361 = vmatmul.bf16.gmra.mxu0 %v714
        %v2362 = vpop.f32.mrf.mxu0
        %v2363 = vadd.f32 0.0, %v2362
        %v2364 = vpop.f32.mrf.mxu0
        %v2365 = vadd.f32 0.0, %v2364
        %2366 = vmatmul.bf16.gmra.mxu0 %v717
        %v2367 = vpop.f32.mrf.mxu0
        %v2368 = vadd.f32 0.0, %v2367
        %v2369 = vpop.f32.mrf.mxu0
        %v2370 = vadd.f32 0.0, %v2369
        %2371 = vmatmul.bf16.gmra.mxu0 %v720
        %v2372 = vpop.f32.mrf.mxu0
        %v2373 = vadd.f32 0.0, %v2372
        %v2374 = vpop.f32.mrf.mxu0
        %v2375 = vadd.f32 0.0, %v2374
        %2376 = vmatmul.bf16.gmra.mxu0 %v723
        %v2377 = vpop.f32.mrf.mxu0
        %v2378 = vadd.f32 0.0, %v2377
        %v2379 = vpop.f32.mrf.mxu0
        %v2380 = vadd.f32 0.0, %v2379
        %2381 = vmatmul.bf16.gmra.mxu0 %v726
        %v2382 = vpop.f32.mrf.mxu0
        %v2383 = vadd.f32 0.0, %v2382
        %v2384 = vpop.f32.mrf.mxu0
        %v2385 = vadd.f32 0.0, %v2384
        %2386 = vmatmul.bf16.gmra.mxu0 %v729
        %v2387 = vpop.f32.mrf.mxu0
        %v2388 = vadd.f32 0.0, %v2387
        %v2389 = vpop.f32.mrf.mxu0
        %v2390 = vadd.f32 0.0, %v2389
        %2391 = vdwg.mxu0
        %2392 = vmatpush.bf16.msra.mxu0 %v1343
        %2393 = vmatpush.bf16.msra.mxu0 %v1336
        %2394 = vmatpush.bf16.msra.mxu0 %v1329
        %2395 = vmatpush.bf16.msra.mxu0 %v1322
        %2396 = vmatpush.bf16.msra.mxu0 %v1315
        %2397 = vmatpush.bf16.msra.mxu0 %v1308
        %2398 = vmatpush.bf16.msra.mxu0 %v1301
        %2399 = vmatpush.bf16.msra.mxu0 %v1294
        %2400 = vmatmul.bf16.gmra.mxu0 %v670
        %v2401 = vpop.f32.mrf.mxu0
        %v2402 = vadd.f32 %v2288, %v2401
        %v2403 = vpop.f32.mrf.mxu0
        %v2404 = vadd.f32 %v2290, %v2403
        %2405 = vmatmul.bf16.gmra.mxu0 %v673
        %v2406 = vpop.f32.mrf.mxu0
        %v2407 = vadd.f32 %v2293, %v2406
        %v2408 = vpop.f32.mrf.mxu0
        %v2409 = vadd.f32 %v2295, %v2408
        %2410 = vmatmul.bf16.gmra.mxu0 %v676
        %v2411 = vpop.f32.mrf.mxu0
        %v2412 = vadd.f32 %v2298, %v2411
        %v2413 = vpop.f32.mrf.mxu0
        %v2414 = vadd.f32 %v2300, %v2413
        %2415 = vmatmul.bf16.gmra.mxu0 %v679
        %v2416 = vpop.f32.mrf.mxu0
        %v2417 = vadd.f32 %v2303, %v2416
        %v2418 = vpop.f32.mrf.mxu0
        %v2419 = vadd.f32 %v2305, %v2418
        %2420 = vmatmul.bf16.gmra.mxu0 %v682
        %v2421 = vpop.f32.mrf.mxu0
        %v2422 = vadd.f32 %v2308, %v2421
        %v2423 = vpop.f32.mrf.mxu0
        %v2424 = vadd.f32 %v2310, %v2423
        %2425 = vmatmul.bf16.gmra.mxu0 %v685
        %v2426 = vpop.f32.mrf.mxu0
        %v2427 = vadd.f32 %v2313, %v2426
        %v2428 = vpop.f32.mrf.mxu0
        %v2429 = vadd.f32 %v2315, %v2428
        %2430 = vmatmul.bf16.gmra.mxu0 %v688
        %v2431 = vpop.f32.mrf.mxu0
        %v2432 = vadd.f32 %v2318, %v2431
        %v2433 = vpop.f32.mrf.mxu0
        %v2434 = vadd.f32 %v2320, %v2433
        %2435 = vmatmul.bf16.gmra.mxu0 %v691
        %v2436 = vpop.f32.mrf.mxu0
        %v2437 = vadd.f32 %v2323, %v2436
        %v2438 = vpop.f32.mrf.mxu0
        %v2439 = vadd.f32 %v2325, %v2438
        %2440 = vmatmul.bf16.gmra.mxu0 %v694
        %v2441 = vpop.f32.mrf.mxu0
        %v2442 = vadd.f32 %v2328, %v2441
        %v2443 = vpop.f32.mrf.mxu0
        %v2444 = vadd.f32 %v2330, %v2443
        %2445 = vmatmul.bf16.gmra.mxu0 %v697
        %v2446 = vpop.f32.mrf.mxu0
        %v2447 = vadd.f32 %v2333, %v2446
        %v2448 = vpop.f32.mrf.mxu0
        %v2449 = vadd.f32 %v2335, %v2448
        %2450 = vmatmul.bf16.gmra.mxu0 %v700
        %v2451 = vpop.f32.mrf.mxu0
        %v2452 = vadd.f32 %v2338, %v2451
        %v2453 = vpop.f32.mrf.mxu0
        %v2454 = vadd.f32 %v2340, %v2453
        %2455 = vmatmul.bf16.gmra.mxu0 %v703
        %v2456 = vpop.f32.mrf.mxu0
        %v2457 = vadd.f32 %v2343, %v2456
        %v2458 = vpop.f32.mrf.mxu0
        %v2459 = vadd.f32 %v2345, %v2458
        %2460 = vmatmul.bf16.gmra.mxu0 %v706
        %v2461 = vpop.f32.mrf.mxu0
        %v2462 = vadd.f32 %v2348, %v2461
        %v2463 = vpop.f32.mrf.mxu0
        %v2464 = vadd.f32 %v2350, %v2463
        %2465 = vmatmul.bf16.gmra.mxu0 %v709
        %v2466 = vpop.f32.mrf.mxu0
        %v2467 = vadd.f32 %v2353, %v2466
        %v2468 = vpop.f32.mrf.mxu0
        %v2469 = vadd.f32 %v2355, %v2468
        %2470 = vmatmul.bf16.gmra.mxu0 %v712
        %v2471 = vpop.f32.mrf.mxu0
        %v2472 = vadd.f32 %v2358, %v2471
        %v2473 = vpop.f32.mrf.mxu0
        %v2474 = vadd.f32 %v2360, %v2473
        %2475 = vmatmul.bf16.gmra.mxu0 %v715
        %v2476 = vpop.f32.mrf.mxu0
        %v2477 = vadd.f32 %v2363, %v2476
        %v2478 = vpop.f32.mrf.mxu0
        %v2479 = vadd.f32 %v2365, %v2478
        %2480 = vmatmul.bf16.gmra.mxu0 %v718
        %v2481 = vpop.f32.mrf.mxu0
        %v2482 = vadd.f32 %v2368, %v2481
        %v2483 = vpop.f32.mrf.mxu0
        %v2484 = vadd.f32 %v2370, %v2483
        %2485 = vmatmul.bf16.gmra.mxu0 %v721
        %v2486 = vpop.f32.mrf.mxu0
        %v2487 = vadd.f32 %v2373, %v2486
        %v2488 = vpop.f32.mrf.mxu0
        %v2489 = vadd.f32 %v2375, %v2488
        %2490 = vmatmul.bf16.gmra.mxu0 %v724
        %v2491 = vpop.f32.mrf.mxu0
        %v2492 = vadd.f32 %v2378, %v2491
        %v2493 = vpop.f32.mrf.mxu0
        %v2494 = vadd.f32 %v2380, %v2493
        %2495 = vmatmul.bf16.gmra.mxu0 %v727
        %v2496 = vpop.f32.mrf.mxu0
        %v2497 = vadd.f32 %v2383, %v2496
        %v2498 = vpop.f32.mrf.mxu0
        %v2499 = vadd.f32 %v2385, %v2498
        %2500 = vmatmul.bf16.gmra.mxu0 %v730
        %v2501 = vpop.f32.mrf.mxu0
        %v2502 = vadd.f32 %v2388, %v2501
        %v2503 = vpop.f32.mrf.mxu0
        %v2504 = vadd.f32 %v2390, %v2503
        %2505 = vdwg.mxu0
        %2506 = vmatpush.bf16.msra.mxu0 0
        %2507 = vmatpush.bf16.msra.mxu0 0
        %2508 = vmatpush.bf16.msra.mxu0 0
        %2509 = vmatpush.bf16.msra.mxu0 %v1378
        %2510 = vmatpush.bf16.msra.mxu0 %v1371
        %2511 = vmatpush.bf16.msra.mxu0 %v1364
        %2512 = vmatpush.bf16.msra.mxu0 %v1357
        %2513 = vmatpush.bf16.msra.mxu0 %v1350
        %2514 = vmatmul.bf16.gmra.mxu0 %v1532
        %v2515 = vpop.f32.mrf.mxu0
        %v2516 = vadd.f32 %v2402, %v2515
        %v2517 = vpop.f32.mrf.mxu0
        %v2518 = vadd.f32 %v2404, %v2517
        %2519 = vmatmul.bf16.gmra.mxu0 %v1535
        %v2520 = vpop.f32.mrf.mxu0
        %v2521 = vadd.f32 %v2407, %v2520
        %v2522 = vpop.f32.mrf.mxu0
        %v2523 = vadd.f32 %v2409, %v2522
        %2524 = vmatmul.bf16.gmra.mxu0 %v1538
        %v2525 = vpop.f32.mrf.mxu0
        %v2526 = vadd.f32 %v2412, %v2525
        %v2527 = vpop.f32.mrf.mxu0
        %v2528 = vadd.f32 %v2414, %v2527
        %2529 = vmatmul.bf16.gmra.mxu0 %v1541
        %v2530 = vpop.f32.mrf.mxu0
        %v2531 = vadd.f32 %v2417, %v2530
        %v2532 = vpop.f32.mrf.mxu0
        %v2533 = vadd.f32 %v2419, %v2532
        %2534 = vmatmul.bf16.gmra.mxu0 %v1544
        %v2535 = vpop.f32.mrf.mxu0
        %v2536 = vadd.f32 %v2422, %v2535
        %v2537 = vpop.f32.mrf.mxu0
        %v2538 = vadd.f32 %v2424, %v2537
        %2539 = vmatmul.bf16.gmra.mxu0 %v1547
        %v2540 = vpop.f32.mrf.mxu0
        %v2541 = vadd.f32 %v2427, %v2540
        %v2542 = vpop.f32.mrf.mxu0
        %v2543 = vadd.f32 %v2429, %v2542
        %2544 = vmatmul.bf16.gmra.mxu0 %v1550
        %v2545 = vpop.f32.mrf.mxu0
        %v2546 = vadd.f32 %v2432, %v2545
        %v2547 = vpop.f32.mrf.mxu0
        %v2548 = vadd.f32 %v2434, %v2547
        %2549 = vmatmul.bf16.gmra.mxu0 %v1553
        %v2550 = vpop.f32.mrf.mxu0
        %v2551 = vadd.f32 %v2437, %v2550
        %v2552 = vpop.f32.mrf.mxu0
        %v2553 = vadd.f32 %v2439, %v2552
        %2554 = vmatmul.bf16.gmra.mxu0 %v1556
        %v2555 = vpop.f32.mrf.mxu0
        %v2556 = vadd.f32 %v2442, %v2555
        %v2557 = vpop.f32.mrf.mxu0
        %v2558 = vadd.f32 %v2444, %v2557
        %2559 = vmatmul.bf16.gmra.mxu0 %v1559
        %v2560 = vpop.f32.mrf.mxu0
        %v2561 = vadd.f32 %v2447, %v2560
        %v2562 = vpop.f32.mrf.mxu0
        %v2563 = vadd.f32 %v2449, %v2562
        %2564 = vmatmul.bf16.gmra.mxu0 %v1562
        %v2565 = vpop.f32.mrf.mxu0
        %v2566 = vadd.f32 %v2452, %v2565
        %v2567 = vpop.f32.mrf.mxu0
        %v2568 = vadd.f32 %v2454, %v2567
        %2569 = vmatmul.bf16.gmra.mxu0 %v1565
        %v2570 = vpop.f32.mrf.mxu0
        %v2571 = vadd.f32 %v2457, %v2570
        %v2572 = vpop.f32.mrf.mxu0
        %v2573 = vadd.f32 %v2459, %v2572
        %2574 = vmatmul.bf16.gmra.mxu0 %v1568
        %v2575 = vpop.f32.mrf.mxu0
        %v2576 = vadd.f32 %v2462, %v2575
        %v2577 = vpop.f32.mrf.mxu0
        %v2578 = vadd.f32 %v2464, %v2577
        %2579 = vmatmul.bf16.gmra.mxu0 %v1571
        %v2580 = vpop.f32.mrf.mxu0
        %v2581 = vadd.f32 %v2467, %v2580
        %v2582 = vpop.f32.mrf.mxu0
        %v2583 = vadd.f32 %v2469, %v2582
        %2584 = vmatmul.bf16.gmra.mxu0 %v1574
        %v2585 = vpop.f32.mrf.mxu0
        %v2586 = vadd.f32 %v2472, %v2585
        %v2587 = vpop.f32.mrf.mxu0
        %v2588 = vadd.f32 %v2474, %v2587
        %2589 = vmatmul.bf16.gmra.mxu0 %v1577
        %v2590 = vpop.f32.mrf.mxu0
        %v2591 = vadd.f32 %v2477, %v2590
        %v2592 = vpop.f32.mrf.mxu0
        %v2593 = vadd.f32 %v2479, %v2592
        %2594 = vmatmul.bf16.gmra.mxu0 %v1580
        %v2595 = vpop.f32.mrf.mxu0
        %v2596 = vadd.f32 %v2482, %v2595
        %v2597 = vpop.f32.mrf.mxu0
        %v2598 = vadd.f32 %v2484, %v2597
        %2599 = vmatmul.bf16.gmra.mxu0 %v1583
        %v2600 = vpop.f32.mrf.mxu0
        %v2601 = vadd.f32 %v2487, %v2600
        %v2602 = vpop.f32.mrf.mxu0
        %v2603 = vadd.f32 %v2489, %v2602
        %2604 = vmatmul.bf16.gmra.mxu0 %v1586
        %v2605 = vpop.f32.mrf.mxu0
        %v2606 = vadd.f32 %v2492, %v2605
        %v2607 = vpop.f32.mrf.mxu0
        %v2608 = vadd.f32 %v2494, %v2607
        %2609 = vmatmul.bf16.gmra.mxu0 %v1589
        %v2610 = vpop.f32.mrf.mxu0
        %v2611 = vadd.f32 %v2497, %v2610
        %v2612 = vpop.f32.mrf.mxu0
        %v2613 = vadd.f32 %v2499, %v2612
        %2614 = vmatmul.bf16.gmra.mxu0 %v1592
        %v2615 = vpop.f32.mrf.mxu0
        %v2616 = vadd.f32 %v2502, %v2615
        %v2617 = vpop.f32.mrf.mxu0
        %v2618 = vadd.f32 %v2504, %v2617
        %2619 = vdwg.mxu0
        %2620 = vmatpush.bf16.msra.mxu0 %v1288
        %2621 = vmatpush.bf16.msra.mxu0 %v1281
        %2622 = vmatpush.bf16.msra.mxu0 %v1274
        %2623 = vmatpush.bf16.msra.mxu0 %v1267
        %2624 = vmatpush.bf16.msra.mxu0 %v1260
        %2625 = vmatpush.bf16.msra.mxu0 %v1253
        %2626 = vmatpush.bf16.msra.mxu0 %v1246
        %2627 = vmatpush.bf16.msra.mxu0 %v1239
        %2628 = vmatmul.bf16.gmra.mxu0 %v669
        %v2629 = vpop.f32.mrf.mxu0
        %v2630 = vadd.f32 0.0, %v2629
        %v2631 = vpop.f32.mrf.mxu0
        %v2632 = vadd.f32 0.0, %v2631
        %2633 = vmatmul.bf16.gmra.mxu0 %v672
        %v2634 = vpop.f32.mrf.mxu0
        %v2635 = vadd.f32 0.0, %v2634
        %v2636 = vpop.f32.mrf.mxu0
        %v2637 = vadd.f32 0.0, %v2636
        %2638 = vmatmul.bf16.gmra.mxu0 %v675
        %v2639 = vpop.f32.mrf.mxu0
        %v2640 = vadd.f32 0.0, %v2639
        %v2641 = vpop.f32.mrf.mxu0
        %v2642 = vadd.f32 0.0, %v2641
        %2643 = vmatmul.bf16.gmra.mxu0 %v678
        %v2644 = vpop.f32.mrf.mxu0
        %v2645 = vadd.f32 0.0, %v2644
        %v2646 = vpop.f32.mrf.mxu0
        %v2647 = vadd.f32 0.0, %v2646
        %2648 = vmatmul.bf16.gmra.mxu0 %v681
        %v2649 = vpop.f32.mrf.mxu0
        %v2650 = vadd.f32 0.0, %v2649
        %v2651 = vpop.f32.mrf.mxu0
        %v2652 = vadd.f32 0.0, %v2651
        %2653 = vmatmul.bf16.gmra.mxu0 %v684
        %v2654 = vpop.f32.mrf.mxu0
        %v2655 = vadd.f32 0.0, %v2654
        %v2656 = vpop.f32.mrf.mxu0
        %v2657 = vadd.f32 0.0, %v2656
        %2658 = vmatmul.bf16.gmra.mxu0 %v687
        %v2659 = vpop.f32.mrf.mxu0
        %v2660 = vadd.f32 0.0, %v2659
        %v2661 = vpop.f32.mrf.mxu0
        %v2662 = vadd.f32 0.0, %v2661
        %2663 = vmatmul.bf16.gmra.mxu0 %v690
        %v2664 = vpop.f32.mrf.mxu0
        %v2665 = vadd.f32 0.0, %v2664
        %v2666 = vpop.f32.mrf.mxu0
        %v2667 = vadd.f32 0.0, %v2666
        %2668 = vmatmul.bf16.gmra.mxu0 %v693
        %v2669 = vpop.f32.mrf.mxu0
        %v2670 = vadd.f32 0.0, %v2669
        %v2671 = vpop.f32.mrf.mxu0
        %v2672 = vadd.f32 0.0, %v2671
        %2673 = vmatmul.bf16.gmra.mxu0 %v696
        %v2674 = vpop.f32.mrf.mxu0
        %v2675 = vadd.f32 0.0, %v2674
        %v2676 = vpop.f32.mrf.mxu0
        %v2677 = vadd.f32 0.0, %v2676
        %2678 = vmatmul.bf16.gmra.mxu0 %v699
        %v2679 = vpop.f32.mrf.mxu0
        %v2680 = vadd.f32 0.0, %v2679
        %v2681 = vpop.f32.mrf.mxu0
        %v2682 = vadd.f32 0.0, %v2681
        %2683 = vmatmul.bf16.gmra.mxu0 %v702
        %v2684 = vpop.f32.mrf.mxu0
        %v2685 = vadd.f32 0.0, %v2684
        %v2686 = vpop.f32.mrf.mxu0
        %v2687 = vadd.f32 0.0, %v2686
        %2688 = vmatmul.bf16.gmra.mxu0 %v705
        %v2689 = vpop.f32.mrf.mxu0
        %v2690 = vadd.f32 0.0, %v2689
        %v2691 = vpop.f32.mrf.mxu0
        %v2692 = vadd.f32 0.0, %v2691
        %2693 = vmatmul.bf16.gmra.mxu0 %v708
        %v2694 = vpop.f32.mrf.mxu0
        %v2695 = vadd.f32 0.0, %v2694
        %v2696 = vpop.f32.mrf.mxu0
        %v2697 = vadd.f32 0.0, %v2696
        %2698 = vmatmul.bf16.gmra.mxu0 %v711
        %v2699 = vpop.f32.mrf.mxu0
        %v2700 = vadd.f32 0.0, %v2699
        %v2701 = vpop.f32.mrf.mxu0
        %v2702 = vadd.f32 0.0, %v2701
        %2703 = vmatmul.bf16.gmra.mxu0 %v714
        %v2704 = vpop.f32.mrf.mxu0
        %v2705 = vadd.f32 0.0, %v2704
        %v2706 = vpop.f32.mrf.mxu0
        %v2707 = vadd.f32 0.0, %v2706
        %2708 = vmatmul.bf16.gmra.mxu0 %v717
        %v2709 = vpop.f32.mrf.mxu0
        %v2710 = vadd.f32 0.0, %v2709
        %v2711 = vpop.f32.mrf.mxu0
        %v2712 = vadd.f32 0.0, %v2711
        %2713 = vmatmul.bf16.gmra.mxu0 %v720
        %v2714 = vpop.f32.mrf.mxu0
        %v2715 = vadd.f32 0.0, %v2714
        %v2716 = vpop.f32.mrf.mxu0
        %v2717 = vadd.f32 0.0, %v2716
        %2718 = vmatmul.bf16.gmra.mxu0 %v723
        %v2719 = vpop.f32.mrf.mxu0
        %v2720 = vadd.f32 0.0, %v2719
        %v2721 = vpop.f32.mrf.mxu0
        %v2722 = vadd.f32 0.0, %v2721
        %2723 = vmatmul.bf16.gmra.mxu0 %v726
        %v2724 = vpop.f32.mrf.mxu0
        %v2725 = vadd.f32 0.0, %v2724
        %v2726 = vpop.f32.mrf.mxu0
        %v2727 = vadd.f32 0.0, %v2726
        %2728 = vmatmul.bf16.gmra.mxu0 %v729
        %v2729 = vpop.f32.mrf.mxu0
        %v2730 = vadd.f32 0.0, %v2729
        %v2731 = vpop.f32.mrf.mxu0
        %v2732 = vadd.f32 0.0, %v2731
        %2733 = vdwg.mxu0
        %2734 = vmatpush.bf16.msra.mxu0 %v1344
        %2735 = vmatpush.bf16.msra.mxu0 %v1337
        %2736 = vmatpush.bf16.msra.mxu0 %v1330
        %2737 = vmatpush.bf16.msra.mxu0 %v1323
        %2738 = vmatpush.bf16.msra.mxu0 %v1316
        %2739 = vmatpush.bf16.msra.mxu0 %v1309
        %2740 = vmatpush.bf16.msra.mxu0 %v1302
        %2741 = vmatpush.bf16.msra.mxu0 %v1295
        %2742 = vmatmul.bf16.gmra.mxu0 %v670
        %v2743 = vpop.f32.mrf.mxu0
        %v2744 = vadd.f32 %v2630, %v2743
        %v2745 = vpop.f32.mrf.mxu0
        %v2746 = vadd.f32 %v2632, %v2745
        %2747 = vmatmul.bf16.gmra.mxu0 %v673
        %v2748 = vpop.f32.mrf.mxu0
        %v2749 = vadd.f32 %v2635, %v2748
        %v2750 = vpop.f32.mrf.mxu0
        %v2751 = vadd.f32 %v2637, %v2750
        %2752 = vmatmul.bf16.gmra.mxu0 %v676
        %v2753 = vpop.f32.mrf.mxu0
        %v2754 = vadd.f32 %v2640, %v2753
        %v2755 = vpop.f32.mrf.mxu0
        %v2756 = vadd.f32 %v2642, %v2755
        %2757 = vmatmul.bf16.gmra.mxu0 %v679
        %v2758 = vpop.f32.mrf.mxu0
        %v2759 = vadd.f32 %v2645, %v2758
        %v2760 = vpop.f32.mrf.mxu0
        %v2761 = vadd.f32 %v2647, %v2760
        %2762 = vmatmul.bf16.gmra.mxu0 %v682
        %v2763 = vpop.f32.mrf.mxu0
        %v2764 = vadd.f32 %v2650, %v2763
        %v2765 = vpop.f32.mrf.mxu0
        %v2766 = vadd.f32 %v2652, %v2765
        %2767 = vmatmul.bf16.gmra.mxu0 %v685
        %v2768 = vpop.f32.mrf.mxu0
        %v2769 = vadd.f32 %v2655, %v2768
        %v2770 = vpop.f32.mrf.mxu0
        %v2771 = vadd.f32 %v2657, %v2770
        %2772 = vmatmul.bf16.gmra.mxu0 %v688
        %v2773 = vpop.f32.mrf.mxu0
        %v2774 = vadd.f32 %v2660, %v2773
        %v2775 = vpop.f32.mrf.mxu0
        %v2776 = vadd.f32 %v2662, %v2775
        %2777 = vmatmul.bf16.gmra.mxu0 %v691
        %v2778 = vpop.f32.mrf.mxu0
        %v2779 = vadd.f32 %v2665, %v2778
        %v2780 = vpop.f32.mrf.mxu0
        %v2781 = vadd.f32 %v2667, %v2780
        %2782 = vmatmul.bf16.gmra.mxu0 %v694
        %v2783 = vpop.f32.mrf.mxu0
        %v2784 = vadd.f32 %v2670, %v2783
        %v2785 = vpop.f32.mrf.mxu0
        %v2786 = vadd.f32 %v2672, %v2785
        %2787 = vmatmul.bf16.gmra.mxu0 %v697
        %v2788 = vpop.f32.mrf.mxu0
        %v2789 = vadd.f32 %v2675, %v2788
        %v2790 = vpop.f32.mrf.mxu0
        %v2791 = vadd.f32 %v2677, %v2790
        %2792 = vmatmul.bf16.gmra.mxu0 %v700
        %v2793 = vpop.f32.mrf.mxu0
        %v2794 = vadd.f32 %v2680, %v2793
        %v2795 = vpop.f32.mrf.mxu0
        %v2796 = vadd.f32 %v2682, %v2795
        %2797 = vmatmul.bf16.gmra.mxu0 %v703
        %v2798 = vpop.f32.mrf.mxu0
        %v2799 = vadd.f32 %v2685, %v2798
        %v2800 = vpop.f32.mrf.mxu0
        %v2801 = vadd.f32 %v2687, %v2800
        %2802 = vmatmul.bf16.gmra.mxu0 %v706
        %v2803 = vpop.f32.mrf.mxu0
        %v2804 = vadd.f32 %v2690, %v2803
        %v2805 = vpop.f32.mrf.mxu0
        %v2806 = vadd.f32 %v2692, %v2805
        %2807 = vmatmul.bf16.gmra.mxu0 %v709
        %v2808 = vpop.f32.mrf.mxu0
        %v2809 = vadd.f32 %v2695, %v2808
        %v2810 = vpop.f32.mrf.mxu0
        %v2811 = vadd.f32 %v2697, %v2810
        %2812 = vmatmul.bf16.gmra.mxu0 %v712
        %v2813 = vpop.f32.mrf.mxu0
        %v2814 = vadd.f32 %v2700, %v2813
        %v2815 = vpop.f32.mrf.mxu0
        %v2816 = vadd.f32 %v2702, %v2815
        %2817 = vmatmul.bf16.gmra.mxu0 %v715
        %v2818 = vpop.f32.mrf.mxu0
        %v2819 = vadd.f32 %v2705, %v2818
        %v2820 = vpop.f32.mrf.mxu0
        %v2821 = vadd.f32 %v2707, %v2820
        %2822 = vmatmul.bf16.gmra.mxu0 %v718
        %v2823 = vpop.f32.mrf.mxu0
        %v2824 = vadd.f32 %v2710, %v2823
        %v2825 = vpop.f32.mrf.mxu0
        %v2826 = vadd.f32 %v2712, %v2825
        %2827 = vmatmul.bf16.gmra.mxu0 %v721
        %v2828 = vpop.f32.mrf.mxu0
        %v2829 = vadd.f32 %v2715, %v2828
        %v2830 = vpop.f32.mrf.mxu0
        %v2831 = vadd.f32 %v2717, %v2830
        %2832 = vmatmul.bf16.gmra.mxu0 %v724
        %v2833 = vpop.f32.mrf.mxu0
        %v2834 = vadd.f32 %v2720, %v2833
        %v2835 = vpop.f32.mrf.mxu0
        %v2836 = vadd.f32 %v2722, %v2835
        %2837 = vmatmul.bf16.gmra.mxu0 %v727
        %v2838 = vpop.f32.mrf.mxu0
        %v2839 = vadd.f32 %v2725, %v2838
        %v2840 = vpop.f32.mrf.mxu0
        %v2841 = vadd.f32 %v2727, %v2840
        %2842 = vmatmul.bf16.gmra.mxu0 %v730
        %v2843 = vpop.f32.mrf.mxu0
        %v2844 = vadd.f32 %v2730, %v2843
        %v2845 = vpop.f32.mrf.mxu0
        %v2846 = vadd.f32 %v2732, %v2845
        %2847 = vdwg.mxu0
        %2848 = vmatpush.bf16.msra.mxu0 0
        %2849 = vmatpush.bf16.msra.mxu0 0
        %2850 = vmatpush.bf16.msra.mxu0 0
        %2851 = vmatpush.bf16.msra.mxu0 %v1379
        %2852 = vmatpush.bf16.msra.mxu0 %v1372
        %2853 = vmatpush.bf16.msra.mxu0 %v1365
        %2854 = vmatpush.bf16.msra.mxu0 %v1358
        %2855 = vmatpush.bf16.msra.mxu0 %v1351
        %2856 = vmatmul.bf16.gmra.mxu0 %v1532
        %v2857 = vpop.f32.mrf.mxu0
        %v2858 = vadd.f32 %v2744, %v2857
        %v2859 = vpop.f32.mrf.mxu0
        %v2860 = vadd.f32 %v2746, %v2859
        %2861 = vmatmul.bf16.gmra.mxu0 %v1535
        %v2862 = vpop.f32.mrf.mxu0
        %v2863 = vadd.f32 %v2749, %v2862
        %v2864 = vpop.f32.mrf.mxu0
        %v2865 = vadd.f32 %v2751, %v2864
        %2866 = vmatmul.bf16.gmra.mxu0 %v1538
        %v2867 = vpop.f32.mrf.mxu0
        %v2868 = vadd.f32 %v2754, %v2867
        %v2869 = vpop.f32.mrf.mxu0
        %v2870 = vadd.f32 %v2756, %v2869
        %2871 = vmatmul.bf16.gmra.mxu0 %v1541
        %v2872 = vpop.f32.mrf.mxu0
        %v2873 = vadd.f32 %v2759, %v2872
        %v2874 = vpop.f32.mrf.mxu0
        %v2875 = vadd.f32 %v2761, %v2874
        %2876 = vmatmul.bf16.gmra.mxu0 %v1544
        %v2877 = vpop.f32.mrf.mxu0
        %v2878 = vadd.f32 %v2764, %v2877
        %v2879 = vpop.f32.mrf.mxu0
        %v2880 = vadd.f32 %v2766, %v2879
        %2881 = vmatmul.bf16.gmra.mxu0 %v1547
        %v2882 = vpop.f32.mrf.mxu0
        %v2883 = vadd.f32 %v2769, %v2882
        %v2884 = vpop.f32.mrf.mxu0
        %v2885 = vadd.f32 %v2771, %v2884
        %2886 = vmatmul.bf16.gmra.mxu0 %v1550
        %v2887 = vpop.f32.mrf.mxu0
        %v2888 = vadd.f32 %v2774, %v2887
        %v2889 = vpop.f32.mrf.mxu0
        %v2890 = vadd.f32 %v2776, %v2889
        %2891 = vmatmul.bf16.gmra.mxu0 %v1553
        %v2892 = vpop.f32.mrf.mxu0
        %v2893 = vadd.f32 %v2779, %v2892
        %v2894 = vpop.f32.mrf.mxu0
        %v2895 = vadd.f32 %v2781, %v2894
        %2896 = vmatmul.bf16.gmra.mxu0 %v1556
        %v2897 = vpop.f32.mrf.mxu0
        %v2898 = vadd.f32 %v2784, %v2897
        %v2899 = vpop.f32.mrf.mxu0
        %v2900 = vadd.f32 %v2786, %v2899
        %2901 = vmatmul.bf16.gmra.mxu0 %v1559
        %v2902 = vpop.f32.mrf.mxu0
        %v2903 = vadd.f32 %v2789, %v2902
        %v2904 = vpop.f32.mrf.mxu0
        %v2905 = vadd.f32 %v2791, %v2904
        %2906 = vmatmul.bf16.gmra.mxu0 %v1562
        %v2907 = vpop.f32.mrf.mxu0
        %v2908 = vadd.f32 %v2794, %v2907
        %v2909 = vpop.f32.mrf.mxu0
        %v2910 = vadd.f32 %v2796, %v2909
        %2911 = vmatmul.bf16.gmra.mxu0 %v1565
        %v2912 = vpop.f32.mrf.mxu0
        %v2913 = vadd.f32 %v2799, %v2912
        %v2914 = vpop.f32.mrf.mxu0
        %v2915 = vadd.f32 %v2801, %v2914
        %2916 = vmatmul.bf16.gmra.mxu0 %v1568
        %v2917 = vpop.f32.mrf.mxu0
        %v2918 = vadd.f32 %v2804, %v2917
        %v2919 = vpop.f32.mrf.mxu0
        %v2920 = vadd.f32 %v2806, %v2919
        %2921 = vmatmul.bf16.gmra.mxu0 %v1571
        %v2922 = vpop.f32.mrf.mxu0
        %v2923 = vadd.f32 %v2809, %v2922
        %v2924 = vpop.f32.mrf.mxu0
        %v2925 = vadd.f32 %v2811, %v2924
        %2926 = vmatmul.bf16.gmra.mxu0 %v1574
        %v2927 = vpop.f32.mrf.mxu0
        %v2928 = vadd.f32 %v2814, %v2927
        %v2929 = vpop.f32.mrf.mxu0
        %v2930 = vadd.f32 %v2816, %v2929
        %2931 = vmatmul.bf16.gmra.mxu0 %v1577
        %v2932 = vpop.f32.mrf.mxu0
        %v2933 = vadd.f32 %v2819, %v2932
        %v2934 = vpop.f32.mrf.mxu0
        %v2935 = vadd.f32 %v2821, %v2934
        %2936 = vmatmul.bf16.gmra.mxu0 %v1580
        %v2937 = vpop.f32.mrf.mxu0
        %v2938 = vadd.f32 %v2824, %v2937
        %v2939 = vpop.f32.mrf.mxu0
        %v2940 = vadd.f32 %v2826, %v2939
        %2941 = vmatmul.bf16.gmra.mxu0 %v1583
        %v2942 = vpop.f32.mrf.mxu0
        %v2943 = vadd.f32 %v2829, %v2942
        %v2944 = vpop.f32.mrf.mxu0
        %v2945 = vadd.f32 %v2831, %v2944
        %2946 = vmatmul.bf16.gmra.mxu0 %v1586
        %v2947 = vpop.f32.mrf.mxu0
        %v2948 = vadd.f32 %v2834, %v2947
        %v2949 = vpop.f32.mrf.mxu0
        %v2950 = vadd.f32 %v2836, %v2949
        %2951 = vmatmul.bf16.gmra.mxu0 %v1589
        %v2952 = vpop.f32.mrf.mxu0
        %v2953 = vadd.f32 %v2839, %v2952
        %v2954 = vpop.f32.mrf.mxu0
        %v2955 = vadd.f32 %v2841, %v2954
        %2956 = vmatmul.bf16.gmra.mxu0 %v1592
        %v2957 = vpop.f32.mrf.mxu0
        %v2958 = vadd.f32 %v2844, %v2957
        %v2959 = vpop.f32.mrf.mxu0
        %v2960 = vadd.f32 %v2846, %v2959
        %2961 = vdwg.mxu0
        %2962 = vmatpush.bf16.msra.mxu0 %v1289
        %2963 = vmatpush.bf16.msra.mxu0 %v1282
        %2964 = vmatpush.bf16.msra.mxu0 %v1275
        %2965 = vmatpush.bf16.msra.mxu0 %v1268
        %2966 = vmatpush.bf16.msra.mxu0 %v1261
        %2967 = vmatpush.bf16.msra.mxu0 %v1254
        %2968 = vmatpush.bf16.msra.mxu0 %v1247
        %2969 = vmatpush.bf16.msra.mxu0 %v1240
        %2970 = vmatmul.bf16.gmra.mxu0 %v669
        %v2971 = vpop.f32.mrf.mxu0
        %v2972 = vadd.f32 0.0, %v2971
        %v2973 = vpop.f32.mrf.mxu0
        %v2974 = vadd.f32 0.0, %v2973
        %2975 = vmatmul.bf16.gmra.mxu0 %v672
        %v2976 = vpop.f32.mrf.mxu0
        %v2977 = vadd.f32 0.0, %v2976
        %v2978 = vpop.f32.mrf.mxu0
        %v2979 = vadd.f32 0.0, %v2978
        %2980 = vmatmul.bf16.gmra.mxu0 %v675
        %v2981 = vpop.f32.mrf.mxu0
        %v2982 = vadd.f32 0.0, %v2981
        %v2983 = vpop.f32.mrf.mxu0
        %v2984 = vadd.f32 0.0, %v2983
        %2985 = vmatmul.bf16.gmra.mxu0 %v678
        %v2986 = vpop.f32.mrf.mxu0
        %v2987 = vadd.f32 0.0, %v2986
        %v2988 = vpop.f32.mrf.mxu0
        %v2989 = vadd.f32 0.0, %v2988
        %2990 = vmatmul.bf16.gmra.mxu0 %v681
        %v2991 = vpop.f32.mrf.mxu0
        %v2992 = vadd.f32 0.0, %v2991
        %v2993 = vpop.f32.mrf.mxu0
        %v2994 = vadd.f32 0.0, %v2993
        %2995 = vmatmul.bf16.gmra.mxu0 %v684
        %v2996 = vpop.f32.mrf.mxu0
        %v2997 = vadd.f32 0.0, %v2996
        %v2998 = vpop.f32.mrf.mxu0
        %v2999 = vadd.f32 0.0, %v2998
        %3000 = vmatmul.bf16.gmra.mxu0 %v687
        %v3001 = vpop.f32.mrf.mxu0
        %v3002 = vadd.f32 0.0, %v3001
        %v3003 = vpop.f32.mrf.mxu0
        %v3004 = vadd.f32 0.0, %v3003
        %3005 = vmatmul.bf16.gmra.mxu0 %v690
        %v3006 = vpop.f32.mrf.mxu0
        %v3007 = vadd.f32 0.0, %v3006
        %v3008 = vpop.f32.mrf.mxu0
        %v3009 = vadd.f32 0.0, %v3008
        %3010 = vmatmul.bf16.gmra.mxu0 %v693
        %v3011 = vpop.f32.mrf.mxu0
        %v3012 = vadd.f32 0.0, %v3011
        %v3013 = vpop.f32.mrf.mxu0
        %v3014 = vadd.f32 0.0, %v3013
        %3015 = vmatmul.bf16.gmra.mxu0 %v696
        %v3016 = vpop.f32.mrf.mxu0
        %v3017 = vadd.f32 0.0, %v3016
        %v3018 = vpop.f32.mrf.mxu0
        %v3019 = vadd.f32 0.0, %v3018
        %3020 = vmatmul.bf16.gmra.mxu0 %v699
        %v3021 = vpop.f32.mrf.mxu0
        %v3022 = vadd.f32 0.0, %v3021
        %v3023 = vpop.f32.mrf.mxu0
        %v3024 = vadd.f32 0.0, %v3023
        %3025 = vmatmul.bf16.gmra.mxu0 %v702
        %v3026 = vpop.f32.mrf.mxu0
        %v3027 = vadd.f32 0.0, %v3026
        %v3028 = vpop.f32.mrf.mxu0
        %v3029 = vadd.f32 0.0, %v3028
        %3030 = vmatmul.bf16.gmra.mxu0 %v705
        %v3031 = vpop.f32.mrf.mxu0
        %v3032 = vadd.f32 0.0, %v3031
        %v3033 = vpop.f32.mrf.mxu0
        %v3034 = vadd.f32 0.0, %v3033
        %3035 = vmatmul.bf16.gmra.mxu0 %v708
        %v3036 = vpop.f32.mrf.mxu0
        %v3037 = vadd.f32 0.0, %v3036
        %v3038 = vpop.f32.mrf.mxu0
        %v3039 = vadd.f32 0.0, %v3038
        %3040 = vmatmul.bf16.gmra.mxu0 %v711
        %v3041 = vpop.f32.mrf.mxu0
        %v3042 = vadd.f32 0.0, %v3041
        %v3043 = vpop.f32.mrf.mxu0
        %v3044 = vadd.f32 0.0, %v3043
        %3045 = vmatmul.bf16.gmra.mxu0 %v714
        %v3046 = vpop.f32.mrf.mxu0
        %v3047 = vadd.f32 0.0, %v3046
        %v3048 = vpop.f32.mrf.mxu0
        %v3049 = vadd.f32 0.0, %v3048
        %3050 = vmatmul.bf16.gmra.mxu0 %v717
        %v3051 = vpop.f32.mrf.mxu0
        %v3052 = vadd.f32 0.0, %v3051
        %v3053 = vpop.f32.mrf.mxu0
        %v3054 = vadd.f32 0.0, %v3053
        %3055 = vmatmul.bf16.gmra.mxu0 %v720
        %v3056 = vpop.f32.mrf.mxu0
        %v3057 = vadd.f32 0.0, %v3056
        %v3058 = vpop.f32.mrf.mxu0
        %v3059 = vadd.f32 0.0, %v3058
        %3060 = vmatmul.bf16.gmra.mxu0 %v723
        %v3061 = vpop.f32.mrf.mxu0
        %v3062 = vadd.f32 0.0, %v3061
        %v3063 = vpop.f32.mrf.mxu0
        %v3064 = vadd.f32 0.0, %v3063
        %3065 = vmatmul.bf16.gmra.mxu0 %v726
        %v3066 = vpop.f32.mrf.mxu0
        %v3067 = vadd.f32 0.0, %v3066
        %v3068 = vpop.f32.mrf.mxu0
        %v3069 = vadd.f32 0.0, %v3068
        %3070 = vmatmul.bf16.gmra.mxu0 %v729
        %v3071 = vpop.f32.mrf.mxu0
        %v3072 = vadd.f32 0.0, %v3071
        %v3073 = vpop.f32.mrf.mxu0
        %v3074 = vadd.f32 0.0, %v3073
        %3075 = vdwg.mxu0
        %3076 = vmatpush.bf16.msra.mxu0 %v1345
        %3077 = vmatpush.bf16.msra.mxu0 %v1338
        %3078 = vmatpush.bf16.msra.mxu0 %v1331
        %3079 = vmatpush.bf16.msra.mxu0 %v1324
        %3080 = vmatpush.bf16.msra.mxu0 %v1317
        %3081 = vmatpush.bf16.msra.mxu0 %v1310
        %3082 = vmatpush.bf16.msra.mxu0 %v1303
        %3083 = vmatpush.bf16.msra.mxu0 %v1296
        %3084 = vmatmul.bf16.gmra.mxu0 %v670
        %v3085 = vpop.f32.mrf.mxu0
        %v3086 = vadd.f32 %v2972, %v3085
        %v3087 = vpop.f32.mrf.mxu0
        %v3088 = vadd.f32 %v2974, %v3087
        %3089 = vmatmul.bf16.gmra.mxu0 %v673
        %v3090 = vpop.f32.mrf.mxu0
        %v3091 = vadd.f32 %v2977, %v3090
        %v3092 = vpop.f32.mrf.mxu0
        %v3093 = vadd.f32 %v2979, %v3092
        %3094 = vmatmul.bf16.gmra.mxu0 %v676
        %v3095 = vpop.f32.mrf.mxu0
        %v3096 = vadd.f32 %v2982, %v3095
        %v3097 = vpop.f32.mrf.mxu0
        %v3098 = vadd.f32 %v2984, %v3097
        %3099 = vmatmul.bf16.gmra.mxu0 %v679
        %v3100 = vpop.f32.mrf.mxu0
        %v3101 = vadd.f32 %v2987, %v3100
        %v3102 = vpop.f32.mrf.mxu0
        %v3103 = vadd.f32 %v2989, %v3102
        %3104 = vmatmul.bf16.gmra.mxu0 %v682
        %v3105 = vpop.f32.mrf.mxu0
        %v3106 = vadd.f32 %v2992, %v3105
        %v3107 = vpop.f32.mrf.mxu0
        %v3108 = vadd.f32 %v2994, %v3107
        %3109 = vmatmul.bf16.gmra.mxu0 %v685
        %v3110 = vpop.f32.mrf.mxu0
        %v3111 = vadd.f32 %v2997, %v3110
        %v3112 = vpop.f32.mrf.mxu0
        %v3113 = vadd.f32 %v2999, %v3112
        %3114 = vmatmul.bf16.gmra.mxu0 %v688
        %v3115 = vpop.f32.mrf.mxu0
        %v3116 = vadd.f32 %v3002, %v3115
        %v3117 = vpop.f32.mrf.mxu0
        %v3118 = vadd.f32 %v3004, %v3117
        %3119 = vmatmul.bf16.gmra.mxu0 %v691
        %v3120 = vpop.f32.mrf.mxu0
        %v3121 = vadd.f32 %v3007, %v3120
        %v3122 = vpop.f32.mrf.mxu0
        %v3123 = vadd.f32 %v3009, %v3122
        %3124 = vmatmul.bf16.gmra.mxu0 %v694
        %v3125 = vpop.f32.mrf.mxu0
        %v3126 = vadd.f32 %v3012, %v3125
        %v3127 = vpop.f32.mrf.mxu0
        %v3128 = vadd.f32 %v3014, %v3127
        %3129 = vmatmul.bf16.gmra.mxu0 %v697
        %v3130 = vpop.f32.mrf.mxu0
        %v3131 = vadd.f32 %v3017, %v3130
        %v3132 = vpop.f32.mrf.mxu0
        %v3133 = vadd.f32 %v3019, %v3132
        %3134 = vmatmul.bf16.gmra.mxu0 %v700
        %v3135 = vpop.f32.mrf.mxu0
        %v3136 = vadd.f32 %v3022, %v3135
        %v3137 = vpop.f32.mrf.mxu0
        %v3138 = vadd.f32 %v3024, %v3137
        %3139 = vmatmul.bf16.gmra.mxu0 %v703
        %v3140 = vpop.f32.mrf.mxu0
        %v3141 = vadd.f32 %v3027, %v3140
        %v3142 = vpop.f32.mrf.mxu0
        %v3143 = vadd.f32 %v3029, %v3142
        %3144 = vmatmul.bf16.gmra.mxu0 %v706
        %v3145 = vpop.f32.mrf.mxu0
        %v3146 = vadd.f32 %v3032, %v3145
        %v3147 = vpop.f32.mrf.mxu0
        %v3148 = vadd.f32 %v3034, %v3147
        %3149 = vmatmul.bf16.gmra.mxu0 %v709
        %v3150 = vpop.f32.mrf.mxu0
        %v3151 = vadd.f32 %v3037, %v3150
        %v3152 = vpop.f32.mrf.mxu0
        %v3153 = vadd.f32 %v3039, %v3152
        %3154 = vmatmul.bf16.gmra.mxu0 %v712
        %v3155 = vpop.f32.mrf.mxu0
        %v3156 = vadd.f32 %v3042, %v3155
        %v3157 = vpop.f32.mrf.mxu0
        %v3158 = vadd.f32 %v3044, %v3157
        %3159 = vmatmul.bf16.gmra.mxu0 %v715
        %v3160 = vpop.f32.mrf.mxu0
        %v3161 = vadd.f32 %v3047, %v3160
        %v3162 = vpop.f32.mrf.mxu0
        %v3163 = vadd.f32 %v3049, %v3162
        %3164 = vmatmul.bf16.gmra.mxu0 %v718
        %v3165 = vpop.f32.mrf.mxu0
        %v3166 = vadd.f32 %v3052, %v3165
        %v3167 = vpop.f32.mrf.mxu0
        %v3168 = vadd.f32 %v3054, %v3167
        %3169 = vmatmul.bf16.gmra.mxu0 %v721
        %v3170 = vpop.f32.mrf.mxu0
        %v3171 = vadd.f32 %v3057, %v3170
        %v3172 = vpop.f32.mrf.mxu0
        %v3173 = vadd.f32 %v3059, %v3172
        %3174 = vmatmul.bf16.gmra.mxu0 %v724
        %v3175 = vpop.f32.mrf.mxu0
        %v3176 = vadd.f32 %v3062, %v3175
        %v3177 = vpop.f32.mrf.mxu0
        %v3178 = vadd.f32 %v3064, %v3177
        %3179 = vmatmul.bf16.gmra.mxu0 %v727
        %v3180 = vpop.f32.mrf.mxu0
        %v3181 = vadd.f32 %v3067, %v3180
        %v3182 = vpop.f32.mrf.mxu0
        %v3183 = vadd.f32 %v3069, %v3182
        %3184 = vmatmul.bf16.gmra.mxu0 %v730
        %v3185 = vpop.f32.mrf.mxu0
        %v3186 = vadd.f32 %v3072, %v3185
        %v3187 = vpop.f32.mrf.mxu0
        %v3188 = vadd.f32 %v3074, %v3187
        %3189 = vdwg.mxu0
        %3190 = vmatpush.bf16.msra.mxu0 0
        %3191 = vmatpush.bf16.msra.mxu0 0
        %3192 = vmatpush.bf16.msra.mxu0 0
        %3193 = vmatpush.bf16.msra.mxu0 %v1380
        %3194 = vmatpush.bf16.msra.mxu0 %v1373
        %3195 = vmatpush.bf16.msra.mxu0 %v1366
        %3196 = vmatpush.bf16.msra.mxu0 %v1359
        %3197 = vmatpush.bf16.msra.mxu0 %v1352
        %3198 = vmatmul.bf16.gmra.mxu0 %v1532
        %v3199 = vpop.f32.mrf.mxu0
        %v3200 = vadd.f32 %v3086, %v3199
        %v3201 = vpop.f32.mrf.mxu0
        %v3202 = vadd.f32 %v3088, %v3201
        %3203 = vmatmul.bf16.gmra.mxu0 %v1535
        %v3204 = vpop.f32.mrf.mxu0
        %v3205 = vadd.f32 %v3091, %v3204
        %v3206 = vpop.f32.mrf.mxu0
        %v3207 = vadd.f32 %v3093, %v3206
        %3208 = vmatmul.bf16.gmra.mxu0 %v1538
        %v3209 = vpop.f32.mrf.mxu0
        %v3210 = vadd.f32 %v3096, %v3209
        %v3211 = vpop.f32.mrf.mxu0
        %v3212 = vadd.f32 %v3098, %v3211
        %3213 = vmatmul.bf16.gmra.mxu0 %v1541
        %v3214 = vpop.f32.mrf.mxu0
        %v3215 = vadd.f32 %v3101, %v3214
        %v3216 = vpop.f32.mrf.mxu0
        %v3217 = vadd.f32 %v3103, %v3216
        %3218 = vmatmul.bf16.gmra.mxu0 %v1544
        %v3219 = vpop.f32.mrf.mxu0
        %v3220 = vadd.f32 %v3106, %v3219
        %v3221 = vpop.f32.mrf.mxu0
        %v3222 = vadd.f32 %v3108, %v3221
        %3223 = vmatmul.bf16.gmra.mxu0 %v1547
        %v3224 = vpop.f32.mrf.mxu0
        %v3225 = vadd.f32 %v3111, %v3224
        %v3226 = vpop.f32.mrf.mxu0
        %v3227 = vadd.f32 %v3113, %v3226
        %3228 = vmatmul.bf16.gmra.mxu0 %v1550
        %v3229 = vpop.f32.mrf.mxu0
        %v3230 = vadd.f32 %v3116, %v3229
        %v3231 = vpop.f32.mrf.mxu0
        %v3232 = vadd.f32 %v3118, %v3231
        %3233 = vmatmul.bf16.gmra.mxu0 %v1553
        %v3234 = vpop.f32.mrf.mxu0
        %v3235 = vadd.f32 %v3121, %v3234
        %v3236 = vpop.f32.mrf.mxu0
        %v3237 = vadd.f32 %v3123, %v3236
        %3238 = vmatmul.bf16.gmra.mxu0 %v1556
        %v3239 = vpop.f32.mrf.mxu0
        %v3240 = vadd.f32 %v3126, %v3239
        %v3241 = vpop.f32.mrf.mxu0
        %v3242 = vadd.f32 %v3128, %v3241
        %3243 = vmatmul.bf16.gmra.mxu0 %v1559
        %v3244 = vpop.f32.mrf.mxu0
        %v3245 = vadd.f32 %v3131, %v3244
        %v3246 = vpop.f32.mrf.mxu0
        %v3247 = vadd.f32 %v3133, %v3246
        %3248 = vmatmul.bf16.gmra.mxu0 %v1562
        %v3249 = vpop.f32.mrf.mxu0
        %v3250 = vadd.f32 %v3136, %v3249
        %v3251 = vpop.f32.mrf.mxu0
        %v3252 = vadd.f32 %v3138, %v3251
        %3253 = vmatmul.bf16.gmra.mxu0 %v1565
        %v3254 = vpop.f32.mrf.mxu0
        %v3255 = vadd.f32 %v3141, %v3254
        %v3256 = vpop.f32.mrf.mxu0
        %v3257 = vadd.f32 %v3143, %v3256
        %3258 = vmatmul.bf16.gmra.mxu0 %v1568
        %v3259 = vpop.f32.mrf.mxu0
        %v3260 = vadd.f32 %v3146, %v3259
        %v3261 = vpop.f32.mrf.mxu0
        %v3262 = vadd.f32 %v3148, %v3261
        %3263 = vmatmul.bf16.gmra.mxu0 %v1571
        %v3264 = vpop.f32.mrf.mxu0
        %v3265 = vadd.f32 %v3151, %v3264
        %v3266 = vpop.f32.mrf.mxu0
        %v3267 = vadd.f32 %v3153, %v3266
        %3268 = vmatmul.bf16.gmra.mxu0 %v1574
        %v3269 = vpop.f32.mrf.mxu0
        %v3270 = vadd.f32 %v3156, %v3269
        %v3271 = vpop.f32.mrf.mxu0
        %v3272 = vadd.f32 %v3158, %v3271
        %3273 = vmatmul.bf16.gmra.mxu0 %v1577
        %v3274 = vpop.f32.mrf.mxu0
        %v3275 = vadd.f32 %v3161, %v3274
        %v3276 = vpop.f32.mrf.mxu0
        %v3277 = vadd.f32 %v3163, %v3276
        %3278 = vmatmul.bf16.gmra.mxu0 %v1580
        %v3279 = vpop.f32.mrf.mxu0
        %v3280 = vadd.f32 %v3166, %v3279
        %v3281 = vpop.f32.mrf.mxu0
        %v3282 = vadd.f32 %v3168, %v3281
        %3283 = vmatmul.bf16.gmra.mxu0 %v1583
        %v3284 = vpop.f32.mrf.mxu0
        %v3285 = vadd.f32 %v3171, %v3284
        %v3286 = vpop.f32.mrf.mxu0
        %v3287 = vadd.f32 %v3173, %v3286
        %3288 = vmatmul.bf16.gmra.mxu0 %v1586
        %v3289 = vpop.f32.mrf.mxu0
        %v3290 = vadd.f32 %v3176, %v3289
        %v3291 = vpop.f32.mrf.mxu0
        %v3292 = vadd.f32 %v3178, %v3291
        %3293 = vmatmul.bf16.gmra.mxu0 %v1589
        %v3294 = vpop.f32.mrf.mxu0
        %v3295 = vadd.f32 %v3181, %v3294
        %v3296 = vpop.f32.mrf.mxu0
        %v3297 = vadd.f32 %v3183, %v3296
        %3298 = vmatmul.bf16.gmra.mxu0 %v1592
        %v3299 = vpop.f32.mrf.mxu0
        %v3300 = vadd.f32 %v3186, %v3299
        %v3301 = vpop.f32.mrf.mxu0
        %v3302 = vadd.f32 %v3188, %v3301
        %3303 = vdwg.mxu0
        %3304 = vmatpush.bf16.msra.mxu0 %v1290
        %3305 = vmatpush.bf16.msra.mxu0 %v1283
        %3306 = vmatpush.bf16.msra.mxu0 %v1276
        %3307 = vmatpush.bf16.msra.mxu0 %v1269
        %3308 = vmatpush.bf16.msra.mxu0 %v1262
        %3309 = vmatpush.bf16.msra.mxu0 %v1255
        %3310 = vmatpush.bf16.msra.mxu0 %v1248
        %3311 = vmatpush.bf16.msra.mxu0 %v1241
        %3312 = vmatmul.bf16.gmra.mxu0 %v669
        %v3313 = vpop.f32.mrf.mxu0
        %v3314 = vadd.f32 0.0, %v3313
        %v3315 = vpop.f32.mrf.mxu0
        %v3316 = vadd.f32 0.0, %v3315
        %3317 = vmatmul.bf16.gmra.mxu0 %v672
        %v3318 = vpop.f32.mrf.mxu0
        %v3319 = vadd.f32 0.0, %v3318
        %v3320 = vpop.f32.mrf.mxu0
        %v3321 = vadd.f32 0.0, %v3320
        %3322 = vmatmul.bf16.gmra.mxu0 %v675
        %v3323 = vpop.f32.mrf.mxu0
        %v3324 = vadd.f32 0.0, %v3323
        %v3325 = vpop.f32.mrf.mxu0
        %v3326 = vadd.f32 0.0, %v3325
        %3327 = vmatmul.bf16.gmra.mxu0 %v678
        %v3328 = vpop.f32.mrf.mxu0
        %v3329 = vadd.f32 0.0, %v3328
        %v3330 = vpop.f32.mrf.mxu0
        %v3331 = vadd.f32 0.0, %v3330
        %3332 = vmatmul.bf16.gmra.mxu0 %v681
        %v3333 = vpop.f32.mrf.mxu0
        %v3334 = vadd.f32 0.0, %v3333
        %v3335 = vpop.f32.mrf.mxu0
        %v3336 = vadd.f32 0.0, %v3335
        %3337 = vmatmul.bf16.gmra.mxu0 %v684
        %v3338 = vpop.f32.mrf.mxu0
        %v3339 = vadd.f32 0.0, %v3338
        %v3340 = vpop.f32.mrf.mxu0
        %v3341 = vadd.f32 0.0, %v3340
        %3342 = vmatmul.bf16.gmra.mxu0 %v687
        %v3343 = vpop.f32.mrf.mxu0
        %v3344 = vadd.f32 0.0, %v3343
        %v3345 = vpop.f32.mrf.mxu0
        %v3346 = vadd.f32 0.0, %v3345
        %3347 = vmatmul.bf16.gmra.mxu0 %v690
        %v3348 = vpop.f32.mrf.mxu0
        %v3349 = vadd.f32 0.0, %v3348
        %v3350 = vpop.f32.mrf.mxu0
        %v3351 = vadd.f32 0.0, %v3350
        %3352 = vmatmul.bf16.gmra.mxu0 %v693
        %v3353 = vpop.f32.mrf.mxu0
        %v3354 = vadd.f32 0.0, %v3353
        %v3355 = vpop.f32.mrf.mxu0
        %v3356 = vadd.f32 0.0, %v3355
        %3357 = vmatmul.bf16.gmra.mxu0 %v696
        %v3358 = vpop.f32.mrf.mxu0
        %v3359 = vadd.f32 0.0, %v3358
        %v3360 = vpop.f32.mrf.mxu0
        %v3361 = vadd.f32 0.0, %v3360
        %3362 = vmatmul.bf16.gmra.mxu0 %v699
        %v3363 = vpop.f32.mrf.mxu0
        %v3364 = vadd.f32 0.0, %v3363
        %v3365 = vpop.f32.mrf.mxu0
        %v3366 = vadd.f32 0.0, %v3365
        %3367 = vmatmul.bf16.gmra.mxu0 %v702
        %v3368 = vpop.f32.mrf.mxu0
        %v3369 = vadd.f32 0.0, %v3368
        %v3370 = vpop.f32.mrf.mxu0
        %v3371 = vadd.f32 0.0, %v3370
        %3372 = vmatmul.bf16.gmra.mxu0 %v705
        %v3373 = vpop.f32.mrf.mxu0
        %v3374 = vadd.f32 0.0, %v3373
        %v3375 = vpop.f32.mrf.mxu0
        %v3376 = vadd.f32 0.0, %v3375
        %3377 = vmatmul.bf16.gmra.mxu0 %v708
        %v3378 = vpop.f32.mrf.mxu0
        %v3379 = vadd.f32 0.0, %v3378
        %v3380 = vpop.f32.mrf.mxu0
        %v3381 = vadd.f32 0.0, %v3380
        %3382 = vmatmul.bf16.gmra.mxu0 %v711
        %v3383 = vpop.f32.mrf.mxu0
        %v3384 = vadd.f32 0.0, %v3383
        %v3385 = vpop.f32.mrf.mxu0
        %v3386 = vadd.f32 0.0, %v3385
        %3387 = vmatmul.bf16.gmra.mxu0 %v714
        %v3388 = vpop.f32.mrf.mxu0
        %v3389 = vadd.f32 0.0, %v3388
        %v3390 = vpop.f32.mrf.mxu0
        %v3391 = vadd.f32 0.0, %v3390
        %3392 = vmatmul.bf16.gmra.mxu0 %v717
        %v3393 = vpop.f32.mrf.mxu0
        %v3394 = vadd.f32 0.0, %v3393
        %v3395 = vpop.f32.mrf.mxu0
        %v3396 = vadd.f32 0.0, %v3395
        %3397 = vmatmul.bf16.gmra.mxu0 %v720
        %v3398 = vpop.f32.mrf.mxu0
        %v3399 = vadd.f32 0.0, %v3398
        %v3400 = vpop.f32.mrf.mxu0
        %v3401 = vadd.f32 0.0, %v3400
        %3402 = vmatmul.bf16.gmra.mxu0 %v723
        %v3403 = vpop.f32.mrf.mxu0
        %v3404 = vadd.f32 0.0, %v3403
        %v3405 = vpop.f32.mrf.mxu0
        %v3406 = vadd.f32 0.0, %v3405
        %3407 = vmatmul.bf16.gmra.mxu0 %v726
        %v3408 = vpop.f32.mrf.mxu0
        %v3409 = vadd.f32 0.0, %v3408
        %v3410 = vpop.f32.mrf.mxu0
        %v3411 = vadd.f32 0.0, %v3410
        %3412 = vmatmul.bf16.gmra.mxu0 %v729
        %v3413 = vpop.f32.mrf.mxu0
        %v3414 = vadd.f32 0.0, %v3413
        %v3415 = vpop.f32.mrf.mxu0
        %v3416 = vadd.f32 0.0, %v3415
        %3417 = vdwg.mxu0
        %3418 = vmatpush.bf16.msra.mxu0 %v1346
        %3419 = vmatpush.bf16.msra.mxu0 %v1339
        %3420 = vmatpush.bf16.msra.mxu0 %v1332
        %3421 = vmatpush.bf16.msra.mxu0 %v1325
        %3422 = vmatpush.bf16.msra.mxu0 %v1318
        %3423 = vmatpush.bf16.msra.mxu0 %v1311
        %3424 = vmatpush.bf16.msra.mxu0 %v1304
        %3425 = vmatpush.bf16.msra.mxu0 %v1297
        %3426 = vmatmul.bf16.gmra.mxu0 %v670
        %v3427 = vpop.f32.mrf.mxu0
        %v3428 = vadd.f32 %v3314, %v3427
        %v3429 = vpop.f32.mrf.mxu0
        %v3430 = vadd.f32 %v3316, %v3429
        %3431 = vmatmul.bf16.gmra.mxu0 %v673
        %v3432 = vpop.f32.mrf.mxu0
        %v3433 = vadd.f32 %v3319, %v3432
        %v3434 = vpop.f32.mrf.mxu0
        %v3435 = vadd.f32 %v3321, %v3434
        %3436 = vmatmul.bf16.gmra.mxu0 %v676
        %v3437 = vpop.f32.mrf.mxu0
        %v3438 = vadd.f32 %v3324, %v3437
        %v3439 = vpop.f32.mrf.mxu0
        %v3440 = vadd.f32 %v3326, %v3439
        %3441 = vmatmul.bf16.gmra.mxu0 %v679
        %v3442 = vpop.f32.mrf.mxu0
        %v3443 = vadd.f32 %v3329, %v3442
        %v3444 = vpop.f32.mrf.mxu0
        %v3445 = vadd.f32 %v3331, %v3444
        %3446 = vmatmul.bf16.gmra.mxu0 %v682
        %v3447 = vpop.f32.mrf.mxu0
        %v3448 = vadd.f32 %v3334, %v3447
        %v3449 = vpop.f32.mrf.mxu0
        %v3450 = vadd.f32 %v3336, %v3449
        %3451 = vmatmul.bf16.gmra.mxu0 %v685
        %v3452 = vpop.f32.mrf.mxu0
        %v3453 = vadd.f32 %v3339, %v3452
        %v3454 = vpop.f32.mrf.mxu0
        %v3455 = vadd.f32 %v3341, %v3454
        %3456 = vmatmul.bf16.gmra.mxu0 %v688
        %v3457 = vpop.f32.mrf.mxu0
        %v3458 = vadd.f32 %v3344, %v3457
        %v3459 = vpop.f32.mrf.mxu0
        %v3460 = vadd.f32 %v3346, %v3459
        %3461 = vmatmul.bf16.gmra.mxu0 %v691
        %v3462 = vpop.f32.mrf.mxu0
        %v3463 = vadd.f32 %v3349, %v3462
        %v3464 = vpop.f32.mrf.mxu0
        %v3465 = vadd.f32 %v3351, %v3464
        %3466 = vmatmul.bf16.gmra.mxu0 %v694
        %v3467 = vpop.f32.mrf.mxu0
        %v3468 = vadd.f32 %v3354, %v3467
        %v3469 = vpop.f32.mrf.mxu0
        %v3470 = vadd.f32 %v3356, %v3469
        %3471 = vmatmul.bf16.gmra.mxu0 %v697
        %v3472 = vpop.f32.mrf.mxu0
        %v3473 = vadd.f32 %v3359, %v3472
        %v3474 = vpop.f32.mrf.mxu0
        %v3475 = vadd.f32 %v3361, %v3474
        %3476 = vmatmul.bf16.gmra.mxu0 %v700
        %v3477 = vpop.f32.mrf.mxu0
        %v3478 = vadd.f32 %v3364, %v3477
        %v3479 = vpop.f32.mrf.mxu0
        %v3480 = vadd.f32 %v3366, %v3479
        %3481 = vmatmul.bf16.gmra.mxu0 %v703
        %v3482 = vpop.f32.mrf.mxu0
        %v3483 = vadd.f32 %v3369, %v3482
        %v3484 = vpop.f32.mrf.mxu0
        %v3485 = vadd.f32 %v3371, %v3484
        %3486 = vmatmul.bf16.gmra.mxu0 %v706
        %v3487 = vpop.f32.mrf.mxu0
        %v3488 = vadd.f32 %v3374, %v3487
        %v3489 = vpop.f32.mrf.mxu0
        %v3490 = vadd.f32 %v3376, %v3489
        %3491 = vmatmul.bf16.gmra.mxu0 %v709
        %v3492 = vpop.f32.mrf.mxu0
        %v3493 = vadd.f32 %v3379, %v3492
        %v3494 = vpop.f32.mrf.mxu0
        %v3495 = vadd.f32 %v3381, %v3494
        %3496 = vmatmul.bf16.gmra.mxu0 %v712
        %v3497 = vpop.f32.mrf.mxu0
        %v3498 = vadd.f32 %v3384, %v3497
        %v3499 = vpop.f32.mrf.mxu0
        %v3500 = vadd.f32 %v3386, %v3499
        %3501 = vmatmul.bf16.gmra.mxu0 %v715
        %v3502 = vpop.f32.mrf.mxu0
        %v3503 = vadd.f32 %v3389, %v3502
        %v3504 = vpop.f32.mrf.mxu0
        %v3505 = vadd.f32 %v3391, %v3504
        %3506 = vmatmul.bf16.gmra.mxu0 %v718
        %v3507 = vpop.f32.mrf.mxu0
        %v3508 = vadd.f32 %v3394, %v3507
        %v3509 = vpop.f32.mrf.mxu0
        %v3510 = vadd.f32 %v3396, %v3509
        %3511 = vmatmul.bf16.gmra.mxu0 %v721
        %v3512 = vpop.f32.mrf.mxu0
        %v3513 = vadd.f32 %v3399, %v3512
        %v3514 = vpop.f32.mrf.mxu0
        %v3515 = vadd.f32 %v3401, %v3514
        %3516 = vmatmul.bf16.gmra.mxu0 %v724
        %v3517 = vpop.f32.mrf.mxu0
        %v3518 = vadd.f32 %v3404, %v3517
        %v3519 = vpop.f32.mrf.mxu0
        %v3520 = vadd.f32 %v3406, %v3519
        %3521 = vmatmul.bf16.gmra.mxu0 %v727
        %v3522 = vpop.f32.mrf.mxu0
        %v3523 = vadd.f32 %v3409, %v3522
        %v3524 = vpop.f32.mrf.mxu0
        %v3525 = vadd.f32 %v3411, %v3524
        %3526 = vmatmul.bf16.gmra.mxu0 %v730
        %v3527 = vpop.f32.mrf.mxu0
        %v3528 = vadd.f32 %v3414, %v3527
        %v3529 = vpop.f32.mrf.mxu0
        %v3530 = vadd.f32 %v3416, %v3529
        %3531 = vdwg.mxu0
        %3532 = vmatpush.bf16.msra.mxu0 0
        %3533 = vmatpush.bf16.msra.mxu0 0
        %3534 = vmatpush.bf16.msra.mxu0 0
        %3535 = vmatpush.bf16.msra.mxu0 %v1381
        %3536 = vmatpush.bf16.msra.mxu0 %v1374
        %3537 = vmatpush.bf16.msra.mxu0 %v1367
        %3538 = vmatpush.bf16.msra.mxu0 %v1360
        %3539 = vmatpush.bf16.msra.mxu0 %v1353
        %3540 = vmatmul.bf16.gmra.mxu0 %v1532
        %v3541 = vpop.f32.mrf.mxu0
        %v3542 = vadd.f32 %v3428, %v3541
        %v3543 = vpop.f32.mrf.mxu0
        %v3544 = vadd.f32 %v3430, %v3543
        %3545 = vmatmul.bf16.gmra.mxu0 %v1535
        %v3546 = vpop.f32.mrf.mxu0
        %v3547 = vadd.f32 %v3433, %v3546
        %v3548 = vpop.f32.mrf.mxu0
        %v3549 = vadd.f32 %v3435, %v3548
        %3550 = vmatmul.bf16.gmra.mxu0 %v1538
        %v3551 = vpop.f32.mrf.mxu0
        %v3552 = vadd.f32 %v3438, %v3551
        %v3553 = vpop.f32.mrf.mxu0
        %v3554 = vadd.f32 %v3440, %v3553
        %3555 = vmatmul.bf16.gmra.mxu0 %v1541
        %v3556 = vpop.f32.mrf.mxu0
        %v3557 = vadd.f32 %v3443, %v3556
        %v3558 = vpop.f32.mrf.mxu0
        %v3559 = vadd.f32 %v3445, %v3558
        %3560 = vmatmul.bf16.gmra.mxu0 %v1544
        %v3561 = vpop.f32.mrf.mxu0
        %v3562 = vadd.f32 %v3448, %v3561
        %v3563 = vpop.f32.mrf.mxu0
        %v3564 = vadd.f32 %v3450, %v3563
        %3565 = vmatmul.bf16.gmra.mxu0 %v1547
        %v3566 = vpop.f32.mrf.mxu0
        %v3567 = vadd.f32 %v3453, %v3566
        %v3568 = vpop.f32.mrf.mxu0
        %v3569 = vadd.f32 %v3455, %v3568
        %3570 = vmatmul.bf16.gmra.mxu0 %v1550
        %v3571 = vpop.f32.mrf.mxu0
        %v3572 = vadd.f32 %v3458, %v3571
        %v3573 = vpop.f32.mrf.mxu0
        %v3574 = vadd.f32 %v3460, %v3573
        %3575 = vmatmul.bf16.gmra.mxu0 %v1553
        %v3576 = vpop.f32.mrf.mxu0
        %v3577 = vadd.f32 %v3463, %v3576
        %v3578 = vpop.f32.mrf.mxu0
        %v3579 = vadd.f32 %v3465, %v3578
        %3580 = vmatmul.bf16.gmra.mxu0 %v1556
        %v3581 = vpop.f32.mrf.mxu0
        %v3582 = vadd.f32 %v3468, %v3581
        %v3583 = vpop.f32.mrf.mxu0
        %v3584 = vadd.f32 %v3470, %v3583
        %3585 = vmatmul.bf16.gmra.mxu0 %v1559
        %v3586 = vpop.f32.mrf.mxu0
        %v3587 = vadd.f32 %v3473, %v3586
        %v3588 = vpop.f32.mrf.mxu0
        %v3589 = vadd.f32 %v3475, %v3588
        %3590 = vmatmul.bf16.gmra.mxu0 %v1562
        %v3591 = vpop.f32.mrf.mxu0
        %v3592 = vadd.f32 %v3478, %v3591
        %v3593 = vpop.f32.mrf.mxu0
        %v3594 = vadd.f32 %v3480, %v3593
        %3595 = vmatmul.bf16.gmra.mxu0 %v1565
        %v3596 = vpop.f32.mrf.mxu0
        %v3597 = vadd.f32 %v3483, %v3596
        %v3598 = vpop.f32.mrf.mxu0
        %v3599 = vadd.f32 %v3485, %v3598
        %3600 = vmatmul.bf16.gmra.mxu0 %v1568
        %v3601 = vpop.f32.mrf.mxu0
        %v3602 = vadd.f32 %v3488, %v3601
        %v3603 = vpop.f32.mrf.mxu0
        %v3604 = vadd.f32 %v3490, %v3603
        %3605 = vmatmul.bf16.gmra.mxu0 %v1571
        %v3606 = vpop.f32.mrf.mxu0
        %v3607 = vadd.f32 %v3493, %v3606
        %v3608 = vpop.f32.mrf.mxu0
        %v3609 = vadd.f32 %v3495, %v3608
        %3610 = vmatmul.bf16.gmra.mxu0 %v1574
        %v3611 = vpop.f32.mrf.mxu0
        %v3612 = vadd.f32 %v3498, %v3611
        %v3613 = vpop.f32.mrf.mxu0
        %v3614 = vadd.f32 %v3500, %v3613
        %3615 = vmatmul.bf16.gmra.mxu0 %v1577
        %v3616 = vpop.f32.mrf.mxu0
        %v3617 = vadd.f32 %v3503, %v3616
        %v3618 = vpop.f32.mrf.mxu0
        %v3619 = vadd.f32 %v3505, %v3618
        %3620 = vmatmul.bf16.gmra.mxu0 %v1580
        %v3621 = vpop.f32.mrf.mxu0
        %v3622 = vadd.f32 %v3508, %v3621
        %v3623 = vpop.f32.mrf.mxu0
        %v3624 = vadd.f32 %v3510, %v3623
        %3625 = vmatmul.bf16.gmra.mxu0 %v1583
        %v3626 = vpop.f32.mrf.mxu0
        %v3627 = vadd.f32 %v3513, %v3626
        %v3628 = vpop.f32.mrf.mxu0
        %v3629 = vadd.f32 %v3515, %v3628
        %3630 = vmatmul.bf16.gmra.mxu0 %v1586
        %v3631 = vpop.f32.mrf.mxu0
        %v3632 = vadd.f32 %v3518, %v3631
        %v3633 = vpop.f32.mrf.mxu0
        %v3634 = vadd.f32 %v3520, %v3633
        %3635 = vmatmul.bf16.gmra.mxu0 %v1589
        %v3636 = vpop.f32.mrf.mxu0
        %v3637 = vadd.f32 %v3523, %v3636
        %v3638 = vpop.f32.mrf.mxu0
        %v3639 = vadd.f32 %v3525, %v3638
        %3640 = vmatmul.bf16.gmra.mxu0 %v1592
        %v3641 = vpop.f32.mrf.mxu0
        %v3642 = vadd.f32 %v3528, %v3641
        %v3643 = vpop.f32.mrf.mxu0
        %v3644 = vadd.f32 %v3530, %v3643
        %3645 = vdwg.mxu0
        %3646 = vmatpush.bf16.msra.mxu0 %v1291
        %3647 = vmatpush.bf16.msra.mxu0 %v1284
        %3648 = vmatpush.bf16.msra.mxu0 %v1277
        %3649 = vmatpush.bf16.msra.mxu0 %v1270
        %3650 = vmatpush.bf16.msra.mxu0 %v1263
        %3651 = vmatpush.bf16.msra.mxu0 %v1256
        %3652 = vmatpush.bf16.msra.mxu0 %v1249
        %3653 = vmatpush.bf16.msra.mxu0 %v1242
        %3654 = vmatmul.bf16.gmra.mxu0 %v669
        %v3655 = vpop.f32.mrf.mxu0
        %v3656 = vadd.f32 0.0, %v3655
        %v3657 = vpop.f32.mrf.mxu0
        %v3658 = vadd.f32 0.0, %v3657
        %3659 = vmatmul.bf16.gmra.mxu0 %v672
        %v3660 = vpop.f32.mrf.mxu0
        %v3661 = vadd.f32 0.0, %v3660
        %v3662 = vpop.f32.mrf.mxu0
        %v3663 = vadd.f32 0.0, %v3662
        %3664 = vmatmul.bf16.gmra.mxu0 %v675
        %v3665 = vpop.f32.mrf.mxu0
        %v3666 = vadd.f32 0.0, %v3665
        %v3667 = vpop.f32.mrf.mxu0
        %v3668 = vadd.f32 0.0, %v3667
        %3669 = vmatmul.bf16.gmra.mxu0 %v678
        %v3670 = vpop.f32.mrf.mxu0
        %v3671 = vadd.f32 0.0, %v3670
        %v3672 = vpop.f32.mrf.mxu0
        %v3673 = vadd.f32 0.0, %v3672
        %3674 = vmatmul.bf16.gmra.mxu0 %v681
        %v3675 = vpop.f32.mrf.mxu0
        %v3676 = vadd.f32 0.0, %v3675
        %v3677 = vpop.f32.mrf.mxu0
        %v3678 = vadd.f32 0.0, %v3677
        %3679 = vmatmul.bf16.gmra.mxu0 %v684
        %v3680 = vpop.f32.mrf.mxu0
        %v3681 = vadd.f32 0.0, %v3680
        %v3682 = vpop.f32.mrf.mxu0
        %v3683 = vadd.f32 0.0, %v3682
        %3684 = vmatmul.bf16.gmra.mxu0 %v687
        %v3685 = vpop.f32.mrf.mxu0
        %v3686 = vadd.f32 0.0, %v3685
        %v3687 = vpop.f32.mrf.mxu0
        %v3688 = vadd.f32 0.0, %v3687
        %3689 = vmatmul.bf16.gmra.mxu0 %v690
        %v3690 = vpop.f32.mrf.mxu0
        %v3691 = vadd.f32 0.0, %v3690
        %v3692 = vpop.f32.mrf.mxu0
        %v3693 = vadd.f32 0.0, %v3692
        %3694 = vmatmul.bf16.gmra.mxu0 %v693
        %v3695 = vpop.f32.mrf.mxu0
        %v3696 = vadd.f32 0.0, %v3695
        %v3697 = vpop.f32.mrf.mxu0
        %v3698 = vadd.f32 0.0, %v3697
        %3699 = vmatmul.bf16.gmra.mxu0 %v696
        %v3700 = vpop.f32.mrf.mxu0
        %v3701 = vadd.f32 0.0, %v3700
        %v3702 = vpop.f32.mrf.mxu0
        %v3703 = vadd.f32 0.0, %v3702
        %3704 = vmatmul.bf16.gmra.mxu0 %v699
        %v3705 = vpop.f32.mrf.mxu0
        %v3706 = vadd.f32 0.0, %v3705
        %v3707 = vpop.f32.mrf.mxu0
        %v3708 = vadd.f32 0.0, %v3707
        %3709 = vmatmul.bf16.gmra.mxu0 %v702
        %v3710 = vpop.f32.mrf.mxu0
        %v3711 = vadd.f32 0.0, %v3710
        %v3712 = vpop.f32.mrf.mxu0
        %v3713 = vadd.f32 0.0, %v3712
        %3714 = vmatmul.bf16.gmra.mxu0 %v705
        %v3715 = vpop.f32.mrf.mxu0
        %v3716 = vadd.f32 0.0, %v3715
        %v3717 = vpop.f32.mrf.mxu0
        %v3718 = vadd.f32 0.0, %v3717
        %3719 = vmatmul.bf16.gmra.mxu0 %v708
        %v3720 = vpop.f32.mrf.mxu0
        %v3721 = vadd.f32 0.0, %v3720
        %v3722 = vpop.f32.mrf.mxu0
        %v3723 = vadd.f32 0.0, %v3722
        %3724 = vmatmul.bf16.gmra.mxu0 %v711
        %v3725 = vpop.f32.mrf.mxu0
        %v3726 = vadd.f32 0.0, %v3725
        %v3727 = vpop.f32.mrf.mxu0
        %v3728 = vadd.f32 0.0, %v3727
        %3729 = vmatmul.bf16.gmra.mxu0 %v714
        %v3730 = vpop.f32.mrf.mxu0
        %v3731 = vadd.f32 0.0, %v3730
        %v3732 = vpop.f32.mrf.mxu0
        %v3733 = vadd.f32 0.0, %v3732
        %3734 = vmatmul.bf16.gmra.mxu0 %v717
        %v3735 = vpop.f32.mrf.mxu0
        %v3736 = vadd.f32 0.0, %v3735
        %v3737 = vpop.f32.mrf.mxu0
        %v3738 = vadd.f32 0.0, %v3737
        %3739 = vmatmul.bf16.gmra.mxu0 %v720
        %v3740 = vpop.f32.mrf.mxu0
        %v3741 = vadd.f32 0.0, %v3740
        %v3742 = vpop.f32.mrf.mxu0
        %v3743 = vadd.f32 0.0, %v3742
        %3744 = vmatmul.bf16.gmra.mxu0 %v723
        %v3745 = vpop.f32.mrf.mxu0
        %v3746 = vadd.f32 0.0, %v3745
        %v3747 = vpop.f32.mrf.mxu0
        %v3748 = vadd.f32 0.0, %v3747
        %3749 = vmatmul.bf16.gmra.mxu0 %v726
        %v3750 = vpop.f32.mrf.mxu0
        %v3751 = vadd.f32 0.0, %v3750
        %v3752 = vpop.f32.mrf.mxu0
        %v3753 = vadd.f32 0.0, %v3752
        %3754 = vmatmul.bf16.gmra.mxu0 %v729
        %v3755 = vpop.f32.mrf.mxu0
        %v3756 = vadd.f32 0.0, %v3755
        %v3757 = vpop.f32.mrf.mxu0
        %v3758 = vadd.f32 0.0, %v3757
        %3759 = vdwg.mxu0
        %3760 = vmatpush.bf16.msra.mxu0 %v1347
        %3761 = vmatpush.bf16.msra.mxu0 %v1340
        %3762 = vmatpush.bf16.msra.mxu0 %v1333
        %3763 = vmatpush.bf16.msra.mxu0 %v1326
        %3764 = vmatpush.bf16.msra.mxu0 %v1319
        %3765 = vmatpush.bf16.msra.mxu0 %v1312
        %3766 = vmatpush.bf16.msra.mxu0 %v1305
        %3767 = vmatpush.bf16.msra.mxu0 %v1298
        %3768 = vmatmul.bf16.gmra.mxu0 %v670
        %v3769 = vpop.f32.mrf.mxu0
        %v3770 = vadd.f32 %v3656, %v3769
        %v3771 = vpop.f32.mrf.mxu0
        %v3772 = vadd.f32 %v3658, %v3771
        %3773 = vmatmul.bf16.gmra.mxu0 %v673
        %v3774 = vpop.f32.mrf.mxu0
        %v3775 = vadd.f32 %v3661, %v3774
        %v3776 = vpop.f32.mrf.mxu0
        %v3777 = vadd.f32 %v3663, %v3776
        %3778 = vmatmul.bf16.gmra.mxu0 %v676
        %v3779 = vpop.f32.mrf.mxu0
        %v3780 = vadd.f32 %v3666, %v3779
        %v3781 = vpop.f32.mrf.mxu0
        %v3782 = vadd.f32 %v3668, %v3781
        %3783 = vmatmul.bf16.gmra.mxu0 %v679
        %v3784 = vpop.f32.mrf.mxu0
        %v3785 = vadd.f32 %v3671, %v3784
        %v3786 = vpop.f32.mrf.mxu0
        %v3787 = vadd.f32 %v3673, %v3786
        %3788 = vmatmul.bf16.gmra.mxu0 %v682
        %v3789 = vpop.f32.mrf.mxu0
        %v3790 = vadd.f32 %v3676, %v3789
        %v3791 = vpop.f32.mrf.mxu0
        %v3792 = vadd.f32 %v3678, %v3791
        %3793 = vmatmul.bf16.gmra.mxu0 %v685
        %v3794 = vpop.f32.mrf.mxu0
        %v3795 = vadd.f32 %v3681, %v3794
        %v3796 = vpop.f32.mrf.mxu0
        %v3797 = vadd.f32 %v3683, %v3796
        %3798 = vmatmul.bf16.gmra.mxu0 %v688
        %v3799 = vpop.f32.mrf.mxu0
        %v3800 = vadd.f32 %v3686, %v3799
        %v3801 = vpop.f32.mrf.mxu0
        %v3802 = vadd.f32 %v3688, %v3801
        %3803 = vmatmul.bf16.gmra.mxu0 %v691
        %v3804 = vpop.f32.mrf.mxu0
        %v3805 = vadd.f32 %v3691, %v3804
        %v3806 = vpop.f32.mrf.mxu0
        %v3807 = vadd.f32 %v3693, %v3806
        %3808 = vmatmul.bf16.gmra.mxu0 %v694
        %v3809 = vpop.f32.mrf.mxu0
        %v3810 = vadd.f32 %v3696, %v3809
        %v3811 = vpop.f32.mrf.mxu0
        %v3812 = vadd.f32 %v3698, %v3811
        %3813 = vmatmul.bf16.gmra.mxu0 %v697
        %v3814 = vpop.f32.mrf.mxu0
        %v3815 = vadd.f32 %v3701, %v3814
        %v3816 = vpop.f32.mrf.mxu0
        %v3817 = vadd.f32 %v3703, %v3816
        %3818 = vmatmul.bf16.gmra.mxu0 %v700
        %v3819 = vpop.f32.mrf.mxu0
        %v3820 = vadd.f32 %v3706, %v3819
        %v3821 = vpop.f32.mrf.mxu0
        %v3822 = vadd.f32 %v3708, %v3821
        %3823 = vmatmul.bf16.gmra.mxu0 %v703
        %v3824 = vpop.f32.mrf.mxu0
        %v3825 = vadd.f32 %v3711, %v3824
        %v3826 = vpop.f32.mrf.mxu0
        %v3827 = vadd.f32 %v3713, %v3826
        %3828 = vmatmul.bf16.gmra.mxu0 %v706
        %v3829 = vpop.f32.mrf.mxu0
        %v3830 = vadd.f32 %v3716, %v3829
        %v3831 = vpop.f32.mrf.mxu0
        %v3832 = vadd.f32 %v3718, %v3831
        %3833 = vmatmul.bf16.gmra.mxu0 %v709
        %v3834 = vpop.f32.mrf.mxu0
        %v3835 = vadd.f32 %v3721, %v3834
        %v3836 = vpop.f32.mrf.mxu0
        %v3837 = vadd.f32 %v3723, %v3836
        %3838 = vmatmul.bf16.gmra.mxu0 %v712
        %v3839 = vpop.f32.mrf.mxu0
        %v3840 = vadd.f32 %v3726, %v3839
        %v3841 = vpop.f32.mrf.mxu0
        %v3842 = vadd.f32 %v3728, %v3841
        %3843 = vmatmul.bf16.gmra.mxu0 %v715
        %v3844 = vpop.f32.mrf.mxu0
        %v3845 = vadd.f32 %v3731, %v3844
        %v3846 = vpop.f32.mrf.mxu0
        %v3847 = vadd.f32 %v3733, %v3846
        %3848 = vmatmul.bf16.gmra.mxu0 %v718
        %v3849 = vpop.f32.mrf.mxu0
        %v3850 = vadd.f32 %v3736, %v3849
        %v3851 = vpop.f32.mrf.mxu0
        %v3852 = vadd.f32 %v3738, %v3851
        %3853 = vmatmul.bf16.gmra.mxu0 %v721
        %v3854 = vpop.f32.mrf.mxu0
        %v3855 = vadd.f32 %v3741, %v3854
        %v3856 = vpop.f32.mrf.mxu0
        %v3857 = vadd.f32 %v3743, %v3856
        %3858 = vmatmul.bf16.gmra.mxu0 %v724
        %v3859 = vpop.f32.mrf.mxu0
        %v3860 = vadd.f32 %v3746, %v3859
        %v3861 = vpop.f32.mrf.mxu0
        %v3862 = vadd.f32 %v3748, %v3861
        %3863 = vmatmul.bf16.gmra.mxu0 %v727
        %v3864 = vpop.f32.mrf.mxu0
        %v3865 = vadd.f32 %v3751, %v3864
        %v3866 = vpop.f32.mrf.mxu0
        %v3867 = vadd.f32 %v3753, %v3866
        %3868 = vmatmul.bf16.gmra.mxu0 %v730
        %v3869 = vpop.f32.mrf.mxu0
        %v3870 = vadd.f32 %v3756, %v3869
        %v3871 = vpop.f32.mrf.mxu0
        %v3872 = vadd.f32 %v3758, %v3871
        %3873 = vdwg.mxu0
        %3874 = vmatpush.bf16.msra.mxu0 0
        %3875 = vmatpush.bf16.msra.mxu0 0
        %3876 = vmatpush.bf16.msra.mxu0 0
        %3877 = vmatpush.bf16.msra.mxu0 %v1382
        %3878 = vmatpush.bf16.msra.mxu0 %v1375
        %3879 = vmatpush.bf16.msra.mxu0 %v1368
        %3880 = vmatpush.bf16.msra.mxu0 %v1361
        %3881 = vmatpush.bf16.msra.mxu0 %v1354
        %3882 = vmatmul.bf16.gmra.mxu0 %v1532
        %v3883 = vpop.f32.mrf.mxu0
        %v3884 = vadd.f32 %v3770, %v3883
        %v3885 = vpop.f32.mrf.mxu0
        %v3886 = vadd.f32 %v3772, %v3885
        %3887 = vmatmul.bf16.gmra.mxu0 %v1535
        %v3888 = vpop.f32.mrf.mxu0
        %v3889 = vadd.f32 %v3775, %v3888
        %v3890 = vpop.f32.mrf.mxu0
        %v3891 = vadd.f32 %v3777, %v3890
        %3892 = vmatmul.bf16.gmra.mxu0 %v1538
        %v3893 = vpop.f32.mrf.mxu0
        %v3894 = vadd.f32 %v3780, %v3893
        %v3895 = vpop.f32.mrf.mxu0
        %v3896 = vadd.f32 %v3782, %v3895
        %3897 = vmatmul.bf16.gmra.mxu0 %v1541
        %v3898 = vpop.f32.mrf.mxu0
        %v3899 = vadd.f32 %v3785, %v3898
        %v3900 = vpop.f32.mrf.mxu0
        %v3901 = vadd.f32 %v3787, %v3900
        %3902 = vmatmul.bf16.gmra.mxu0 %v1544
        %v3903 = vpop.f32.mrf.mxu0
        %v3904 = vadd.f32 %v3790, %v3903
        %v3905 = vpop.f32.mrf.mxu0
        %v3906 = vadd.f32 %v3792, %v3905
        %3907 = vmatmul.bf16.gmra.mxu0 %v1547
        %v3908 = vpop.f32.mrf.mxu0
        %v3909 = vadd.f32 %v3795, %v3908
        %v3910 = vpop.f32.mrf.mxu0
        %v3911 = vadd.f32 %v3797, %v3910
        %3912 = vmatmul.bf16.gmra.mxu0 %v1550
        %v3913 = vpop.f32.mrf.mxu0
        %v3914 = vadd.f32 %v3800, %v3913
        %v3915 = vpop.f32.mrf.mxu0
        %v3916 = vadd.f32 %v3802, %v3915
        %3917 = vmatmul.bf16.gmra.mxu0 %v1553
        %v3918 = vpop.f32.mrf.mxu0
        %v3919 = vadd.f32 %v3805, %v3918
        %v3920 = vpop.f32.mrf.mxu0
        %v3921 = vadd.f32 %v3807, %v3920
        %3922 = vmatmul.bf16.gmra.mxu0 %v1556
        %v3923 = vpop.f32.mrf.mxu0
        %v3924 = vadd.f32 %v3810, %v3923
        %v3925 = vpop.f32.mrf.mxu0
        %v3926 = vadd.f32 %v3812, %v3925
        %3927 = vmatmul.bf16.gmra.mxu0 %v1559
        %v3928 = vpop.f32.mrf.mxu0
        %v3929 = vadd.f32 %v3815, %v3928
        %v3930 = vpop.f32.mrf.mxu0
        %v3931 = vadd.f32 %v3817, %v3930
        %3932 = vmatmul.bf16.gmra.mxu0 %v1562
        %v3933 = vpop.f32.mrf.mxu0
        %v3934 = vadd.f32 %v3820, %v3933
        %v3935 = vpop.f32.mrf.mxu0
        %v3936 = vadd.f32 %v3822, %v3935
        %3937 = vmatmul.bf16.gmra.mxu0 %v1565
        %v3938 = vpop.f32.mrf.mxu0
        %v3939 = vadd.f32 %v3825, %v3938
        %v3940 = vpop.f32.mrf.mxu0
        %v3941 = vadd.f32 %v3827, %v3940
        %3942 = vmatmul.bf16.gmra.mxu0 %v1568
        %v3943 = vpop.f32.mrf.mxu0
        %v3944 = vadd.f32 %v3830, %v3943
        %v3945 = vpop.f32.mrf.mxu0
        %v3946 = vadd.f32 %v3832, %v3945
        %3947 = vmatmul.bf16.gmra.mxu0 %v1571
        %v3948 = vpop.f32.mrf.mxu0
        %v3949 = vadd.f32 %v3835, %v3948
        %v3950 = vpop.f32.mrf.mxu0
        %v3951 = vadd.f32 %v3837, %v3950
        %3952 = vmatmul.bf16.gmra.mxu0 %v1574
        %v3953 = vpop.f32.mrf.mxu0
        %v3954 = vadd.f32 %v3840, %v3953
        %v3955 = vpop.f32.mrf.mxu0
        %v3956 = vadd.f32 %v3842, %v3955
        %3957 = vmatmul.bf16.gmra.mxu0 %v1577
        %v3958 = vpop.f32.mrf.mxu0
        %v3959 = vadd.f32 %v3845, %v3958
        %v3960 = vpop.f32.mrf.mxu0
        %v3961 = vadd.f32 %v3847, %v3960
        %3962 = vmatmul.bf16.gmra.mxu0 %v1580
        %v3963 = vpop.f32.mrf.mxu0
        %v3964 = vadd.f32 %v3850, %v3963
        %v3965 = vpop.f32.mrf.mxu0
        %v3966 = vadd.f32 %v3852, %v3965
        %3967 = vmatmul.bf16.gmra.mxu0 %v1583
        %v3968 = vpop.f32.mrf.mxu0
        %v3969 = vadd.f32 %v3855, %v3968
        %v3970 = vpop.f32.mrf.mxu0
        %v3971 = vadd.f32 %v3857, %v3970
        %3972 = vmatmul.bf16.gmra.mxu0 %v1586
        %v3973 = vpop.f32.mrf.mxu0
        %v3974 = vadd.f32 %v3860, %v3973
        %v3975 = vpop.f32.mrf.mxu0
        %v3976 = vadd.f32 %v3862, %v3975
        %3977 = vmatmul.bf16.gmra.mxu0 %v1589
        %v3978 = vpop.f32.mrf.mxu0
        %v3979 = vadd.f32 %v3865, %v3978
        %v3980 = vpop.f32.mrf.mxu0
        %v3981 = vadd.f32 %v3867, %v3980
        %3982 = vmatmul.bf16.gmra.mxu0 %v1592
        %v3983 = vpop.f32.mrf.mxu0
        %v3984 = vadd.f32 %v3870, %v3983
        %v3985 = vpop.f32.mrf.mxu0
        %v3986 = vadd.f32 %v3872, %v3985
        %3987 = vdwg.mxu0
        %3988 = vst [vmem:[%s203] sm:$0xff] %v1832
        %3989 = vst [vmem:[%s203 + $0x8] sm:$0xff] %v2174
        %3990 = vst [vmem:[%s203 + $0x10] sm:$0xff] %v2516
        %3991 = vst [vmem:[%s203 + $0x18] sm:$0xff] %v2858
        %3992 = vst [vmem:[%s203 + $0x20] sm:$0xff] %v3200
        %3993 = vst [vmem:[%s203 + $0x28] sm:$0xff] %v3542
        %vm3994 = vcmask 130048
        %3995 = vst.msk [vmem:[%s203 + $0x30] sm:$0xff] %vm3994, %v3884
        %3996 = vst [vmem:[%s203 + $0x38] sm:$0xff] %v1834
        %3997 = vst [vmem:[%s203 + $0x40] sm:$0xff] %v2176
        %3998 = vst [vmem:[%s203 + $0x48] sm:$0xff] %v2518
        %3999 = vst [vmem:[%s203 + $0x50] sm:$0xff] %v2860
        %4000 = vst [vmem:[%s203 + $0x58] sm:$0xff] %v3202
        %4001 = vst [vmem:[%s203 + $0x60] sm:$0xff] %v3544
        %4002 = vst.msk [vmem:[%s203 + $0x68] sm:$0xff] %vm3994, %v3886
        %4003 = vst [vmem:[%s203 + $0x70] sm:$0xff] %v1837
        %4004 = vst [vmem:[%s203 + $0x78] sm:$0xff] %v2179
        %4005 = vst [vmem:[%s203 + $0x80] sm:$0xff] %v2521
        %4006 = vst [vmem:[%s203 + $0x88] sm:$0xff] %v2863
        %4007 = vst [vmem:[%s203 + $0x90] sm:$0xff] %v3205
        %4008 = vst [vmem:[%s203 + $0x98] sm:$0xff] %v3547
        %4009 = vst.msk [vmem:[%s203 + $0xa0] sm:$0xff] %vm3994, %v3889
        %4010 = vst [vmem:[%s203 + $0xa8] sm:$0xff] %v1839
        %4011 = vst [vmem:[%s203 + $0xb0] sm:$0xff] %v2181
        %4012 = vst [vmem:[%s203 + $0xb8] sm:$0xff] %v2523
        %4013 = vst [vmem:[%s203 + $0xc0] sm:$0xff] %v2865
        %4014 = vst [vmem:[%s203 + $0xc8] sm:$0xff] %v3207
        %4015 = vst [vmem:[%s203 + $0xd0] sm:$0xff] %v3549
        %4016 = vst.msk [vmem:[%s203 + $0xd8] sm:$0xff] %vm3994, %v3891
        %4017 = vst [vmem:[%s203 + $0xe0] sm:$0xff] %v1842
        %4018 = vst [vmem:[%s203 + $0xe8] sm:$0xff] %v2184
        %4019 = vst [vmem:[%s203 + $0xf0] sm:$0xff] %v2526
        %4020 = vst [vmem:[%s203 + $0xf8] sm:$0xff] %v2868
        %4021 = vst [vmem:[%s203 + $0x100] sm:$0xff] %v3210
        %4022 = vst [vmem:[%s203 + $0x108] sm:$0xff] %v3552
        %4023 = vst.msk [vmem:[%s203 + $0x110] sm:$0xff] %vm3994, %v3894
        %4024 = vst [vmem:[%s203 + $0x118] sm:$0xff] %v1844
        %4025 = vst [vmem:[%s203 + $0x120] sm:$0xff] %v2186
        %4026 = vst [vmem:[%s203 + $0x128] sm:$0xff] %v2528
        %4027 = vst [vmem:[%s203 + $0x130] sm:$0xff] %v2870
        %4028 = vst [vmem:[%s203 + $0x138] sm:$0xff] %v3212
        %4029 = vst [vmem:[%s203 + $0x140] sm:$0xff] %v3554
        %4030 = vst.msk [vmem:[%s203 + $0x148] sm:$0xff] %vm3994, %v3896
        %4031 = vst [vmem:[%s203 + $0x150] sm:$0xff] %v1847
        %4032 = vst [vmem:[%s203 + $0x158] sm:$0xff] %v2189
        %4033 = vst [vmem:[%s203 + $0x160] sm:$0xff] %v2531
        %4034 = vst [vmem:[%s203 + $0x168] sm:$0xff] %v2873
        %4035 = vst [vmem:[%s203 + $0x170] sm:$0xff] %v3215
        %4036 = vst [vmem:[%s203 + $0x178] sm:$0xff] %v3557
        %4037 = vst.msk [vmem:[%s203 + $0x180] sm:$0xff] %vm3994, %v3899
        %4038 = vst [vmem:[%s203 + $0x188] sm:$0xff] %v1849
        %4039 = vst [vmem:[%s203 + $0x190] sm:$0xff] %v2191
        %4040 = vst [vmem:[%s203 + $0x198] sm:$0xff] %v2533
        %4041 = vst [vmem:[%s203 + $0x1a0] sm:$0xff] %v2875
        %4042 = vst [vmem:[%s203 + $0x1a8] sm:$0xff] %v3217
        %4043 = vst [vmem:[%s203 + $0x1b0] sm:$0xff] %v3559
        %4044 = vst.msk [vmem:[%s203 + $0x1b8] sm:$0xff] %vm3994, %v3901
        %4045 = vst [vmem:[%s203 + $0x1c0] sm:$0xff] %v1852
        %4046 = vst [vmem:[%s203 + $0x1c8] sm:$0xff] %v2194
        %4047 = vst [vmem:[%s203 + $0x1d0] sm:$0xff] %v2536
        %4048 = vst [vmem:[%s203 + $0x1d8] sm:$0xff] %v2878
        %4049 = vst [vmem:[%s203 + $0x1e0] sm:$0xff] %v3220
        %4050 = vst [vmem:[%s203 + $0x1e8] sm:$0xff] %v3562
        %4051 = vst.msk [vmem:[%s203 + $0x1f0] sm:$0xff] %vm3994, %v3904
        %4052 = vst [vmem:[%s203 + $0x1f8] sm:$0xff] %v1854
        %4053 = vst [vmem:[%s203 + $0x200] sm:$0xff] %v2196
        %4054 = vst [vmem:[%s203 + $0x208] sm:$0xff] %v2538
        %4055 = vst [vmem:[%s203 + $0x210] sm:$0xff] %v2880
        %4056 = vst [vmem:[%s203 + $0x218] sm:$0xff] %v3222
        %4057 = vst [vmem:[%s203 + $0x220] sm:$0xff] %v3564
        %4058 = vst.msk [vmem:[%s203 + $0x228] sm:$0xff] %vm3994, %v3906
        %4059 = vst [vmem:[%s203 + $0x230] sm:$0xff] %v1857
        %4060 = vst [vmem:[%s203 + $0x238] sm:$0xff] %v2199
        %4061 = vst [vmem:[%s203 + $0x240] sm:$0xff] %v2541
        %4062 = vst [vmem:[%s203 + $0x248] sm:$0xff] %v2883
        %4063 = vst [vmem:[%s203 + $0x250] sm:$0xff] %v3225
        %4064 = vst [vmem:[%s203 + $0x258] sm:$0xff] %v3567
        %4065 = vst.msk [vmem:[%s203 + $0x260] sm:$0xff] %vm3994, %v3909
        %4066 = vst [vmem:[%s203 + $0x268] sm:$0xff] %v1859
        %4067 = vst [vmem:[%s203 + $0x270] sm:$0xff] %v2201
        %4068 = vst [vmem:[%s203 + $0x278] sm:$0xff] %v2543
        %4069 = vst [vmem:[%s203 + $0x280] sm:$0xff] %v2885
        %4070 = vst [vmem:[%s203 + $0x288] sm:$0xff] %v3227
        %4071 = vst [vmem:[%s203 + $0x290] sm:$0xff] %v3569
        %4072 = vst.msk [vmem:[%s203 + $0x298] sm:$0xff] %vm3994, %v3911
        %4073 = vst [vmem:[%s203 + $0x2a0] sm:$0xff] %v1862
        %4074 = vst [vmem:[%s203 + $0x2a8] sm:$0xff] %v2204
        %4075 = vst [vmem:[%s203 + $0x2b0] sm:$0xff] %v2546
        %4076 = vst [vmem:[%s203 + $0x2b8] sm:$0xff] %v2888
        %4077 = vst [vmem:[%s203 + $0x2c0] sm:$0xff] %v3230
        %4078 = vst [vmem:[%s203 + $0x2c8] sm:$0xff] %v3572
        %4079 = vst.msk [vmem:[%s203 + $0x2d0] sm:$0xff] %vm3994, %v3914
        %4080 = vst [vmem:[%s203 + $0x2d8] sm:$0xff] %v1864
        %4081 = vst [vmem:[%s203 + $0x2e0] sm:$0xff] %v2206
        %4082 = vst [vmem:[%s203 + $0x2e8] sm:$0xff] %v2548
        %4083 = vst [vmem:[%s203 + $0x2f0] sm:$0xff] %v2890
        %4084 = vst [vmem:[%s203 + $0x2f8] sm:$0xff] %v3232
        %4085 = vst [vmem:[%s203 + $0x300] sm:$0xff] %v3574
        %4086 = vst.msk [vmem:[%s203 + $0x308] sm:$0xff] %vm3994, %v3916
        %4087 = vst [vmem:[%s203 + $0x310] sm:$0xff] %v1867
        %4088 = vst [vmem:[%s203 + $0x318] sm:$0xff] %v2209
        %4089 = vst [vmem:[%s203 + $0x320] sm:$0xff] %v2551
        %4090 = vst [vmem:[%s203 + $0x328] sm:$0xff] %v2893
        %4091 = vst [vmem:[%s203 + $0x330] sm:$0xff] %v3235
        %4092 = vst [vmem:[%s203 + $0x338] sm:$0xff] %v3577
        %4093 = vst.msk [vmem:[%s203 + $0x340] sm:$0xff] %vm3994, %v3919
        %4094 = vst [vmem:[%s203 + $0x348] sm:$0xff] %v1869
        %4095 = vst [vmem:[%s203 + $0x350] sm:$0xff] %v2211
        %4096 = vst [vmem:[%s203 + $0x358] sm:$0xff] %v2553
        %4097 = vst [vmem:[%s203 + $0x360] sm:$0xff] %v2895
        %4098 = vst [vmem:[%s203 + $0x368] sm:$0xff] %v3237
        %4099 = vst [vmem:[%s203 + $0x370] sm:$0xff] %v3579
        %4100 = vst.msk [vmem:[%s203 + $0x378] sm:$0xff] %vm3994, %v3921
        %4101 = vst [vmem:[%s203 + $0x380] sm:$0xff] %v1872
        %4102 = vst [vmem:[%s203 + $0x388] sm:$0xff] %v2214
        %4103 = vst [vmem:[%s203 + $0x390] sm:$0xff] %v2556
        %4104 = vst [vmem:[%s203 + $0x398] sm:$0xff] %v2898
        %4105 = vst [vmem:[%s203 + $0x3a0] sm:$0xff] %v3240
        %4106 = vst [vmem:[%s203 + $0x3a8] sm:$0xff] %v3582
        %4107 = vst.msk [vmem:[%s203 + $0x3b0] sm:$0xff] %vm3994, %v3924
        %4108 = vst [vmem:[%s203 + $0x3b8] sm:$0xff] %v1874
        %4109 = vst [vmem:[%s203 + $0x3c0] sm:$0xff] %v2216
        %4110 = vst [vmem:[%s203 + $0x3c8] sm:$0xff] %v2558
        %4111 = vst [vmem:[%s203 + $0x3d0] sm:$0xff] %v2900
        %4112 = vst [vmem:[%s203 + $0x3d8] sm:$0xff] %v3242
        %4113 = vst [vmem:[%s203 + $0x3e0] sm:$0xff] %v3584
        %4114 = vst.msk [vmem:[%s203 + $0x3e8] sm:$0xff] %vm3994, %v3926
        %4115 = vst [vmem:[%s203 + $0x3f0] sm:$0xff] %v1877
        %4116 = vst [vmem:[%s203 + $0x3f8] sm:$0xff] %v2219
        %4117 = vst [vmem:[%s203 + $0x400] sm:$0xff] %v2561
        %4118 = vst [vmem:[%s203 + $0x408] sm:$0xff] %v2903
        %4119 = vst [vmem:[%s203 + $0x410] sm:$0xff] %v3245
        %4120 = vst [vmem:[%s203 + $0x418] sm:$0xff] %v3587
        %4121 = vst.msk [vmem:[%s203 + $0x420] sm:$0xff] %vm3994, %v3929
        %4122 = vst [vmem:[%s203 + $0x428] sm:$0xff] %v1879
        %4123 = vst [vmem:[%s203 + $0x430] sm:$0xff] %v2221
        %4124 = vst [vmem:[%s203 + $0x438] sm:$0xff] %v2563
        %4125 = vst [vmem:[%s203 + $0x440] sm:$0xff] %v2905
        %4126 = vst [vmem:[%s203 + $0x448] sm:$0xff] %v3247
        %4127 = vst [vmem:[%s203 + $0x450] sm:$0xff] %v3589
        %4128 = vst.msk [vmem:[%s203 + $0x458] sm:$0xff] %vm3994, %v3931
        %4129 = vst [vmem:[%s203 + $0x460] sm:$0xff] %v1882
        %4130 = vst [vmem:[%s203 + $0x468] sm:$0xff] %v2224
        %4131 = vst [vmem:[%s203 + $0x470] sm:$0xff] %v2566
        %4132 = vst [vmem:[%s203 + $0x478] sm:$0xff] %v2908
        %4133 = vst [vmem:[%s203 + $0x480] sm:$0xff] %v3250
        %4134 = vst [vmem:[%s203 + $0x488] sm:$0xff] %v3592
        %4135 = vst.msk [vmem:[%s203 + $0x490] sm:$0xff] %vm3994, %v3934
        %4136 = vst [vmem:[%s203 + $0x498] sm:$0xff] %v1884
        %4137 = vst [vmem:[%s203 + $0x4a0] sm:$0xff] %v2226
        %4138 = vst [vmem:[%s203 + $0x4a8] sm:$0xff] %v2568
        %4139 = vst [vmem:[%s203 + $0x4b0] sm:$0xff] %v2910
        %4140 = vst [vmem:[%s203 + $0x4b8] sm:$0xff] %v3252
        %4141 = vst [vmem:[%s203 + $0x4c0] sm:$0xff] %v3594
        %4142 = vst.msk [vmem:[%s203 + $0x4c8] sm:$0xff] %vm3994, %v3936
        %4143 = vst [vmem:[%s203 + $0x4d0] sm:$0xff] %v1887
        %4144 = vst [vmem:[%s203 + $0x4d8] sm:$0xff] %v2229
        %4145 = vst [vmem:[%s203 + $0x4e0] sm:$0xff] %v2571
        %4146 = vst [vmem:[%s203 + $0x4e8] sm:$0xff] %v2913
        %4147 = vst [vmem:[%s203 + $0x4f0] sm:$0xff] %v3255
        %4148 = vst [vmem:[%s203 + $0x4f8] sm:$0xff] %v3597
        %4149 = vst.msk [vmem:[%s203 + $0x500] sm:$0xff] %vm3994, %v3939
        %4150 = vst [vmem:[%s203 + $0x508] sm:$0xff] %v1889
        %4151 = vst [vmem:[%s203 + $0x510] sm:$0xff] %v2231
        %4152 = vst [vmem:[%s203 + $0x518] sm:$0xff] %v2573
        %4153 = vst [vmem:[%s203 + $0x520] sm:$0xff] %v2915
        %4154 = vst [vmem:[%s203 + $0x528] sm:$0xff] %v3257
        %4155 = vst [vmem:[%s203 + $0x530] sm:$0xff] %v3599
        %4156 = vst.msk [vmem:[%s203 + $0x538] sm:$0xff] %vm3994, %v3941
        %4157 = vst [vmem:[%s203 + $0x540] sm:$0xff] %v1892
        %4158 = vst [vmem:[%s203 + $0x548] sm:$0xff] %v2234
        %4159 = vst [vmem:[%s203 + $0x550] sm:$0xff] %v2576
        %4160 = vst [vmem:[%s203 + $0x558] sm:$0xff] %v2918
        %4161 = vst [vmem:[%s203 + $0x560] sm:$0xff] %v3260
        %4162 = vst [vmem:[%s203 + $0x568] sm:$0xff] %v3602
        %4163 = vst.msk [vmem:[%s203 + $0x570] sm:$0xff] %vm3994, %v3944
        %4164 = vst [vmem:[%s203 + $0x578] sm:$0xff] %v1894
        %4165 = vst [vmem:[%s203 + $0x580] sm:$0xff] %v2236
        %4166 = vst [vmem:[%s203 + $0x588] sm:$0xff] %v2578
        %4167 = vst [vmem:[%s203 + $0x590] sm:$0xff] %v2920
        %4168 = vst [vmem:[%s203 + $0x598] sm:$0xff] %v3262
        %4169 = vst [vmem:[%s203 + $0x5a0] sm:$0xff] %v3604
        %4170 = vst.msk [vmem:[%s203 + $0x5a8] sm:$0xff] %vm3994, %v3946
        %4171 = vst [vmem:[%s203 + $0x5b0] sm:$0xff] %v1897
        %4172 = vst [vmem:[%s203 + $0x5b8] sm:$0xff] %v2239
        %4173 = vst [vmem:[%s203 + $0x5c0] sm:$0xff] %v2581
        %4174 = vst [vmem:[%s203 + $0x5c8] sm:$0xff] %v2923
        %4175 = vst [vmem:[%s203 + $0x5d0] sm:$0xff] %v3265
        %4176 = vst [vmem:[%s203 + $0x5d8] sm:$0xff] %v3607
        %4177 = vst.msk [vmem:[%s203 + $0x5e0] sm:$0xff] %vm3994, %v3949
        %4178 = vst [vmem:[%s203 + $0x5e8] sm:$0xff] %v1899
        %4179 = vst [vmem:[%s203 + $0x5f0] sm:$0xff] %v2241
        %4180 = vst [vmem:[%s203 + $0x5f8] sm:$0xff] %v2583
        %4181 = vst [vmem:[%s203 + $0x600] sm:$0xff] %v2925
        %4182 = vst [vmem:[%s203 + $0x608] sm:$0xff] %v3267
        %4183 = vst [vmem:[%s203 + $0x610] sm:$0xff] %v3609
        %4184 = vst.msk [vmem:[%s203 + $0x618] sm:$0xff] %vm3994, %v3951
        %4185 = vst [vmem:[%s203 + $0x620] sm:$0xff] %v1902
        %4186 = vst [vmem:[%s203 + $0x628] sm:$0xff] %v2244
        %4187 = vst [vmem:[%s203 + $0x630] sm:$0xff] %v2586
        %4188 = vst [vmem:[%s203 + $0x638] sm:$0xff] %v2928
        %4189 = vst [vmem:[%s203 + $0x640] sm:$0xff] %v3270
        %4190 = vst [vmem:[%s203 + $0x648] sm:$0xff] %v3612
        %4191 = vst.msk [vmem:[%s203 + $0x650] sm:$0xff] %vm3994, %v3954
        %4192 = vst [vmem:[%s203 + $0x658] sm:$0xff] %v1904
        %4193 = vst [vmem:[%s203 + $0x660] sm:$0xff] %v2246
        %4194 = vst [vmem:[%s203 + $0x668] sm:$0xff] %v2588
        %4195 = vst [vmem:[%s203 + $0x670] sm:$0xff] %v2930
        %4196 = vst [vmem:[%s203 + $0x678] sm:$0xff] %v3272
        %4197 = vst [vmem:[%s203 + $0x680] sm:$0xff] %v3614
        %4198 = vst.msk [vmem:[%s203 + $0x688] sm:$0xff] %vm3994, %v3956
        %4199 = vst [vmem:[%s203 + $0x690] sm:$0xff] %v1907
        %4200 = vst [vmem:[%s203 + $0x698] sm:$0xff] %v2249
        %4201 = vst [vmem:[%s203 + $0x6a0] sm:$0xff] %v2591
        %4202 = vst [vmem:[%s203 + $0x6a8] sm:$0xff] %v2933
        %4203 = vst [vmem:[%s203 + $0x6b0] sm:$0xff] %v3275
        %4204 = vst [vmem:[%s203 + $0x6b8] sm:$0xff] %v3617
        %4205 = vst.msk [vmem:[%s203 + $0x6c0] sm:$0xff] %vm3994, %v3959
        %4206 = vst [vmem:[%s203 + $0x6c8] sm:$0xff] %v1909
        %4207 = vst [vmem:[%s203 + $0x6d0] sm:$0xff] %v2251
        %4208 = vst [vmem:[%s203 + $0x6d8] sm:$0xff] %v2593
        %4209 = vst [vmem:[%s203 + $0x6e0] sm:$0xff] %v2935
        %4210 = vst [vmem:[%s203 + $0x6e8] sm:$0xff] %v3277
        %4211 = vst [vmem:[%s203 + $0x6f0] sm:$0xff] %v3619
        %4212 = vst.msk [vmem:[%s203 + $0x6f8] sm:$0xff] %vm3994, %v3961
        %4213 = vst [vmem:[%s203 + $0x700] sm:$0xff] %v1912
        %4214 = vst [vmem:[%s203 + $0x708] sm:$0xff] %v2254
        %4215 = vst [vmem:[%s203 + $0x710] sm:$0xff] %v2596
        %4216 = vst [vmem:[%s203 + $0x718] sm:$0xff] %v2938
        %4217 = vst [vmem:[%s203 + $0x720] sm:$0xff] %v3280
        %4218 = vst [vmem:[%s203 + $0x728] sm:$0xff] %v3622
        %4219 = vst.msk [vmem:[%s203 + $0x730] sm:$0xff] %vm3994, %v3964
        %4220 = vst [vmem:[%s203 + $0x738] sm:$0xff] %v1914
        %4221 = vst [vmem:[%s203 + $0x740] sm:$0xff] %v2256
        %4222 = vst [vmem:[%s203 + $0x748] sm:$0xff] %v2598
        %4223 = vst [vmem:[%s203 + $0x750] sm:$0xff] %v2940
        %4224 = vst [vmem:[%s203 + $0x758] sm:$0xff] %v3282
        %4225 = vst [vmem:[%s203 + $0x760] sm:$0xff] %v3624
        %4226 = vst.msk [vmem:[%s203 + $0x768] sm:$0xff] %vm3994, %v3966
        %4227 = vst [vmem:[%s203 + $0x770] sm:$0xff] %v1917
        %4228 = vst [vmem:[%s203 + $0x778] sm:$0xff] %v2259
        %4229 = vst [vmem:[%s203 + $0x780] sm:$0xff] %v2601
        %4230 = vst [vmem:[%s203 + $0x788] sm:$0xff] %v2943
        %4231 = vst [vmem:[%s203 + $0x790] sm:$0xff] %v3285
        %4232 = vst [vmem:[%s203 + $0x798] sm:$0xff] %v3627
        %4233 = vst.msk [vmem:[%s203 + $0x7a0] sm:$0xff] %vm3994, %v3969
        %4234 = vst [vmem:[%s203 + $0x7a8] sm:$0xff] %v1919
        %4235 = vst [vmem:[%s203 + $0x7b0] sm:$0xff] %v2261
        %4236 = vst [vmem:[%s203 + $0x7b8] sm:$0xff] %v2603
        %4237 = vst [vmem:[%s203 + $0x7c0] sm:$0xff] %v2945
        %4238 = vst [vmem:[%s203 + $0x7c8] sm:$0xff] %v3287
        %4239 = vst [vmem:[%s203 + $0x7d0] sm:$0xff] %v3629
        %4240 = vst.msk [vmem:[%s203 + $0x7d8] sm:$0xff] %vm3994, %v3971
        %4241 = vst [vmem:[%s203 + $0x7e0] sm:$0xff] %v1922
        %4242 = vst [vmem:[%s203 + $0x7e8] sm:$0xff] %v2264
        %4243 = vst [vmem:[%s203 + $0x7f0] sm:$0xff] %v2606
        %4244 = vst [vmem:[%s203 + $0x7f8] sm:$0xff] %v2948
        %4245 = vst [vmem:[%s203 + $0x800] sm:$0xff] %v3290
        %4246 = vst [vmem:[%s203 + $0x808] sm:$0xff] %v3632
        %4247 = vst.msk [vmem:[%s203 + $0x810] sm:$0xff] %vm3994, %v3974
        %4248 = vst [vmem:[%s203 + $0x818] sm:$0xff] %v1924
        %4249 = vst [vmem:[%s203 + $0x820] sm:$0xff] %v2266
        %4250 = vst [vmem:[%s203 + $0x828] sm:$0xff] %v2608
        %4251 = vst [vmem:[%s203 + $0x830] sm:$0xff] %v2950
        %4252 = vst [vmem:[%s203 + $0x838] sm:$0xff] %v3292
        %4253 = vst [vmem:[%s203 + $0x840] sm:$0xff] %v3634
        %4254 = vst.msk [vmem:[%s203 + $0x848] sm:$0xff] %vm3994, %v3976
        %4255 = vst [vmem:[%s203 + $0x850] sm:$0xff] %v1927
        %4256 = vst [vmem:[%s203 + $0x858] sm:$0xff] %v2269
        %4257 = vst [vmem:[%s203 + $0x860] sm:$0xff] %v2611
        %4258 = vst [vmem:[%s203 + $0x868] sm:$0xff] %v2953
        %4259 = vst [vmem:[%s203 + $0x870] sm:$0xff] %v3295
        %4260 = vst [vmem:[%s203 + $0x878] sm:$0xff] %v3637
        %4261 = vst.msk [vmem:[%s203 + $0x880] sm:$0xff] %vm3994, %v3979
        %4262 = vst [vmem:[%s203 + $0x888] sm:$0xff] %v1929
        %4263 = vst [vmem:[%s203 + $0x890] sm:$0xff] %v2271
        %4264 = vst [vmem:[%s203 + $0x898] sm:$0xff] %v2613
        %4265 = vst [vmem:[%s203 + $0x8a0] sm:$0xff] %v2955
        %4266 = vst [vmem:[%s203 + $0x8a8] sm:$0xff] %v3297
        %4267 = vst [vmem:[%s203 + $0x8b0] sm:$0xff] %v3639
        %4268 = vst.msk [vmem:[%s203 + $0x8b8] sm:$0xff] %vm3994, %v3981
        %4269 = vst [vmem:[%s203 + $0x8c0] sm:$0xff] %v1932
        %4270 = vst [vmem:[%s203 + $0x8c8] sm:$0xff] %v2274
        %4271 = vst [vmem:[%s203 + $0x8d0] sm:$0xff] %v2616
        %4272 = vst [vmem:[%s203 + $0x8d8] sm:$0xff] %v2958
        %4273 = vst [vmem:[%s203 + $0x8e0] sm:$0xff] %v3300
        %4274 = vst [vmem:[%s203 + $0x8e8] sm:$0xff] %v3642
        %4275 = vst.msk [vmem:[%s203 + $0x8f0] sm:$0xff] %vm3994, %v3984
        %4276 = vst [vmem:[%s203 + $0x8f8] sm:$0xff] %v1934
        %4277 = vst [vmem:[%s203 + $0x900] sm:$0xff] %v2276
        %4278 = vst [vmem:[%s203 + $0x908] sm:$0xff] %v2618
        %4279 = vst [vmem:[%s203 + $0x910] sm:$0xff] %v2960
        %4280 = vst [vmem:[%s203 + $0x918] sm:$0xff] %v3302
        %4281 = vst [vmem:[%s203 + $0x920] sm:$0xff] %v3644
        %4282 = vst.msk [vmem:[%s203 + $0x928] sm:$0xff] %vm3994, %v3986
        %s4283 = sand.u32 %s94, 1
        %s4284 = scalar_lea.sflag [#allocation4], %s4283
        %s4285 = sand.u32 %s94, 1
        %s4286 = smul.addr %s4285, 2352
        %s4287 = scalar_lea.vmem [#allocation7], %s4286
        // Predicated region
        $region37: #{tpu_custom_call.1} parent=27 // pred_check
          %p4288 = pneg %p104
        $region38: #{tpu_custom_call.1} parent=27 // pred_check_branch
          %4290 = sbr.rel (%p4288) target = $region40
        $region39: #{tpu_custom_call.1} parent=27 // pred_region
          %s4291 = smul.u32 42, %s25
          %4293 = vsyncadd %s4284, 0
          %s4294 = smul.addr %s4291, 7
          %s4295 = smul.addr %s24, 588
          %s4296 = sadd.s32 %s4294, %s4295
          %s4297 = smul.addr %s4296, 8
          %s4298 = scalar_lea.hbm %s2, %s4297
          %s4299 = sshll.u32 %s4287, 4
          %s4300 = int_to_ptr.vmem [resolvable:$true] %s4299
          %s4301 = sshll.u32 %s4298, 4
          %s4302 = int_to_ptr.hbm [resolvable:$true] %s4301
          %4307 = dma.vmem_to_hbm [thread:$0]  %s4300, 37632, %s4302, %s4284, 896, 896, 56
        $region40: #{tpu_custom_call.1} parent=27 // pred_fallthru
          _
      $region28: #{tpu_custom_call.1} parent=5 // pred_fallthru
        _
      %p4308 = scmp.le.s32.totalorder 2, %s15
      // Predicated region
      $region41: #{tpu_custom_call.1} parent=5 // pred_check
        %p4309 = pneg %p4308
      $region42: #{tpu_custom_call.1} parent=5 // pred_check_branch
        %4311 = sbr.rel (%p4309) target = $region44
      $region43: #{tpu_custom_call.1} parent=5 // pred_region
        %s4312 = ssub.s32 %s15, 2
        // Predicated region
        $region45: #{tpu_custom_call.1} parent=43 // pred_check
          %p4313 = pneg %p110
        $region46: #{tpu_custom_call.1} parent=43 // pred_check_branch
          %4315 = sbr.rel (%p4313) target = $region48
        $region47: #{tpu_custom_call.1} parent=43 // pred_region
          %s4316 = sand.u32 %s95, 1
          %s4317 = scalar_lea.sflag [#allocation4], %s4316
          %s4318 = sand.u32 %s95, 1
          %s4319 = smul.addr %s4318, 2352
          %s4320 = scalar_lea.vmem [#allocation7], %s4319
          %4322 = dma.done %s4317, 37632
        $region48: #{tpu_custom_call.1} parent=43 // pred_fallthru
          _
      $region44: #{tpu_custom_call.1} parent=5 // pred_fallthru
        _
    $region6: #{tpu_custom_call.1} parent=1 // loop_footer
      %s19 = sadd.s32 1, %s15
    $region7: #{tpu_custom_call.1} parent=1 // loop_footer_branch
      %14 = sbr.rel target = $region3
    $region8: #{tpu_custom_call.1} parent=1 // loop_exit
      _
    %4323 = vsyncpa [#allocation3], 1
    %s4324 = scalar_lea.sflag [#allocation3], 1
    %4325 = vsyncpa %s4324, 1
    %4326 = vsyncpa [#allocation6], 1
    %4327 = vsyncpa [#allocation4], 1
    %s4328 = scalar_lea.sflag [#allocation4], 1
    %4329 = vsyncpa %s4328, 1

</llo_original>
